<compile_context>
chip_gen: v7x
topology: tpu7x:2x2x1
jax: 0.10.0
libtpu: 0.0.40
codegen_flags: <defaults>
</compile_context>

<pallas_src>
import math
import numpy as np
import jax
import jax.numpy as jnp
from jax.experimental import pallas as pl
from jax.experimental.pallas import tpu as pltpu


FF_PAD = 128    # dim_ff (=96) zero-padded to a full 128-lane vreg
OUT_PAD = 128   # fc output (horizon*input_dim) zero-padded to 128 lanes


# ----------------------------------------------------------------------------
# shared forward math (used by the Pallas kernel body AND the pure-JAX ref)
# ----------------------------------------------------------------------------
def _bmm(x, w):
    """(Bt, M, K) @ (K, N) -> (Bt, M, N). bf16 MXU operands, f32 accumulate."""
    bt = x.shape[0]
    wb = jnp.broadcast_to(w.astype(jnp.bfloat16)[None], (bt,) + w.shape)
    return jax.lax.dot_general(
        x.astype(jnp.bfloat16), wb,
        dimension_numbers=(((2,), (1,)), ((0,), (0,))),
        preferred_element_type=jnp.float32)


def _layernorm(x, w, b, eps=1e-5):
    d = x.shape[-1]
    mu = jnp.sum(x, axis=-1, keepdims=True) * (1.0 / d)
    xc = x - mu
    var = jnp.sum(xc * xc, axis=-1, keepdims=True) * (1.0 / d)
    return xc * jax.lax.rsqrt(var + eps) * w + b


def _forward_math(x, add0, ew, inw, inb, ow, ob, l1w, l1b, l2w, l2b,
                  f1w, f1b, f2w, f2b, vsig, uT, fw, fb,
                  *, n_heads, n_layers, in_kernel):
    """x: (Bt, T, F) f32 -> (Bt, 1, OUT_PAD) f32."""
    d_model = ew.shape[1]
    dh = d_model // n_heads

    def recip(v):
        return pl.reciprocal(v, approx=True) if in_kernel else 1.0 / v

    # embedding; add0 already folds conv bias + pos-enc + CLS token embedding
    h = _bmm(x, ew) + add0                                          # (Bt,T,D)

    for l in range(n_layers):
        # QKV projection (Q columns pre-scaled by 1/sqrt(dh) on the host)
        qkv = _bmm(h, inw[l]) + inb[l]                              # (Bt,T,3D)
        head_outs = []
        for hh in range(n_heads):
            qh = qkv[..., hh * dh:(hh + 1) * dh]
            kh = qkv[..., d_model + hh * dh:d_model + (hh + 1) * dh]
            vh = qkv[..., 2 * d_model + hh * dh:2 * d_model + (hh + 1) * dh]
            s = jax.lax.dot_general(                                # (Bt,T,T)
                qh.astype(jnp.bfloat16), kh.astype(jnp.bfloat16),
                (((2,), (2,)), ((0,), (0,))),
                preferred_element_type=jnp.float32)
            s = s - jnp.max(s, axis=-1, keepdims=True)
            p = jnp.exp(s)
            p = p * recip(jnp.sum(p, axis=-1, keepdims=True))
            oh = jax.lax.dot_general(                               # (Bt,T,dh)
                p.astype(jnp.bfloat16), vh.astype(jnp.bfloat16),
                (((2,), (1,)), ((0,), (0,))),
                preferred_element_type=jnp.float32)
            # fold the head-concat into a row-slice of the output projection
            head_outs.append(_bmm(oh, ow[l][hh * dh:(hh + 1) * dh, :]))
        attn = head_outs[0]
        for t in head_outs[1:]:
            attn = attn + t
        attn = attn + ob[l]
        h = _layernorm(h + attn, l1w[l], l1b[l])
        ff = jnp.maximum(_bmm(h, f1w[l]) + f1b[l], 0.0)             # padded FF
        ff = _bmm(ff, f2w[l]) + f2b[l]
        h = _layernorm(h + ff, l2w[l], l2b[l])

    # CLS-token latent, strictly-stable Koopman step, fc head
    z = h[:, 0:1, :]                                                # (Bt,1,D)
    z = _bmm(z, vsig)                                               # z @ (V*sigma)
    z = _bmm(z, uT)                                                 #   @ U^T
    return _bmm(z, fw) + fb                                         # (Bt,1,OUT_PAD)


# ----------------------------------------------------------------------------
# Pallas kernel
# ----------------------------------------------------------------------------
def _make_kernel(n_heads, n_layers):
    def kernel(*refs):
        *in_refs, o_ref = refs
        vals = [r[...] for r in in_refs]
        o_ref[...] = _forward_math(*vals, n_heads=n_heads,
                                   n_layers=n_layers, in_kernel=True)
    return kernel


def _sincos_pe(max_len, d_model):
    pos = np.arange(max_len, dtype=np.float32)[:, None]
    div = np.exp(np.arange(0, d_model, 2, dtype=np.float32)
                 * (-np.log(10000.0) / d_model))
    pe = np.zeros((max_len, d_model), dtype=np.float32)
    pe[:, 0::2] = np.sin(pos * div)
    pe[:, 1::2] = np.cos(pos * div)
    return jnp.asarray(pe)


def _prepare(x, params, cfg):
    """Host glue: patch unfolding, parameter folds, QR, lane padding."""
    B, S, C = x.shape
    patch_len = cfg["patch_len"]
    d_model = cfg["d_model"]
    n_heads = cfg["n_heads"]
    n_layers = cfg["n_layers"]
    rho_max = cfg["rho_max"]
    dh = d_model // n_heads

    n_tok = S // patch_len
    T = n_tok + 1                     # +1 CLS token
    F = C * patch_len

    # Conv1d(C, D, kernel=stride=patch_len) on NCL input == per-patch
    # channel-major flatten + dense matmul (exact).
    patches = (x[:, :n_tok * patch_len, :]
               .reshape(B, n_tok, patch_len, C)
               .transpose(0, 1, 3, 2)
               .reshape(B, n_tok, F)).astype(jnp.float32)
    # token 0 is the CLS slot: zero input row (its embedding lives in add0)
    x3d = jnp.concatenate([jnp.zeros((B, 1, F), jnp.float32), patches], axis=1)

    # (T, D) additive term: row 0 = cls + pe[0]; rows t>=1 = conv bias + pe[t]
    pe = _sincos_pe(T, d_model)
    add0 = jnp.concatenate([params["cls"] + pe[0:1],
                            params["eb"] + pe[1:]], axis=0).astype(jnp.float32)

    # fold the 1/sqrt(dh) attention scale into the Q part of in_proj (exact)
    scale = 1.0 / math.sqrt(dh)
    qscale = jnp.concatenate([jnp.full((d_model,), scale, jnp.float32),
                              jnp.ones((2 * d_model,), jnp.float32)])
    inw = params["inw"] * qscale
    inb = params["inb"] * qscale

    # pad dim_ff (96) -> 128 lanes with zeros (exact: ReLU(0)=0, zero f2w rows)
    dim_ff = params["f1w"].shape[-1]
    f1w = jnp.pad(params["f1w"], ((0, 0), (0, 0), (0, FF_PAD - dim_ff)))
    f1b = jnp.pad(params["f1b"], ((0, 0), (0, 0), (0, FF_PAD - dim_ff)))
    f2w = jnp.pad(params["f2w"], ((0, 0), (0, FF_PAD - dim_ff), (0, 0)))

    # Koopman factors: QR has no Pallas equivalent -> plain JAX (param-only).
    # Fold sigmoid(S)*rho_max into the columns of V:
    #   z @ K^T = ((z @ V) * sigma) @ U^T = (z @ (V*sigma)) @ U^T
    U = jnp.linalg.qr(params["U_raw"])[0]
    V = jnp.linalg.qr(params["V_raw"])[0]
    sig = jax.nn.sigmoid(params["S_raw"]) * rho_max
    vsig = V * sig[None, :]
    uT = U.T

    # lane-dense fc head: pad output dim to 128, slice on the host
    out_dim = params["fw"].shape[1]
    fw = jnp.pad(params["fw"], ((0, 0), (0, OUT_PAD - out_dim)))
    fb = jnp.pad(params["fb"], ((0, 0), (0, OUT_PAD - out_dim))).reshape(1, 1, OUT_PAD)

    args = (x3d, add0, params["ew"], inw, inb, params["ow"], params["ob"],
            params["l1w"], params["l1b"], params["l2w"], params["l2b"],
            f1w, f1b, f2w, params["f2b"], vsig, uT, fw, fb)
    meta = dict(B=B, T=T, F=F, out_dim=out_dim,
                n_heads=n_heads, n_layers=n_layers)
    return args, meta


def koopformer_pallas(x, params, cfg, *, b_tile=1):
    """b_tile = batches per grid step (tunable; footprint << 64 MiB VMEM so the
    same tile works on v5e/v6e/v7x)."""
    args, meta = _prepare(x, params, cfg)
    x3d = args[0]
    B, T, F = x3d.shape

    b_tile = max(1, min(b_tile, B))
    B_pad = ((B + b_tile - 1) // b_tile) * b_tile
    if B_pad != B:
        x3d = jnp.pad(x3d, ((0, B_pad - B), (0, 0), (0, 0)))
        args = (x3d,) + args[1:]

    grid = (B_pad // b_tile,)

    in_specs = [pl.BlockSpec((b_tile, T, F), lambda b: (b, 0, 0))]
    for a in args[1:]:
        # parameters: full-block, VMEM-resident (same block index every step)
        in_specs.append(pl.BlockSpec(a.shape, lambda b, n=a.ndim: (0,) * n))
    out_spec = pl.BlockSpec((b_tile, 1, OUT_PAD), lambda b: (b, 0, 0))

    fn = pl.pallas_call(
        _make_kernel(meta["n_heads"], meta["n_layers"]),
        grid_spec=pltpu.PrefetchScalarGridSpec(
            num_scalar_prefetch=0, grid=grid,
            in_specs=in_specs, out_specs=out_spec),
        out_shape=jax.ShapeDtypeStruct((B_pad, 1, OUT_PAD), jnp.float32),
        compiler_params=pltpu.CompilerParams(
            dimension_semantics=("parallel",),          # megacore on v7x
            vmem_limit_bytes=48 * 1024 * 1024),
    )
    out = fn(*args)
    return out[:meta["B"], 0, :meta["out_dim"]]


def koopformer_ref(x, params, cfg):
    args, meta = _prepare(x, params, cfg)
    out = _forward_math(*args, n_heads=meta["n_heads"],
                        n_layers=meta["n_layers"], in_kernel=False)
    return out[:, 0, :meta["out_dim"]]


# ----------------------------------------------------------------------------
# deterministic parameter init (shapes per the PyTorch module's __init__)
# ----------------------------------------------------------------------------
def init_params(key, input_dim, horizon, patch_len,
                d_model=64, n_heads=4, dim_ff=96, n_layers=3):
    in_feat = input_dim * patch_len
    out_dim = horizon * input_dim
    keys = iter(jax.random.split(key, 40))

    def nrm(shape, scale=1.0):
        return scale * jax.random.normal(next(keys), shape, jnp.float32)

    p = {}
    p["ew"] = nrm((in_feat, d_model), 1.0 / math.sqrt(in_feat))   # conv-as-matmul
    p["eb"] = nrm((1, d_model), 0.02)                             # conv bias
    p["cls"] = nrm((1, d_model), 1.0)                             # CLS token
    p["inw"] = nrm((n_layers, d_model, 3 * d_model), 1.0 / math.sqrt(d_model))
    p["inb"] = nrm((n_layers, 1, 3 * d_model), 0.02)
    p["ow"] = nrm((n_layers, d_model, d_model), 1.0 / math.sqrt(d_model))
    p["ob"] = nrm((n_layers, 1, d_model), 0.02)
    p["l1w"] = jnp.ones((n_layers, 1, d_model), jnp.float32)
    p["l1b"] = jnp.zeros((n_layers, 1, d_model), jnp.float32)
    p["l2w"] = jnp.ones((n_layers, 1, d_model), jnp.float32)
    p["l2b"] = jnp.zeros((n_layers, 1, d_model), jnp.float32)
    p["f1w"] = nrm((n_layers, d_model, dim_ff), 1.0 / math.sqrt(d_model))
    p["f1b"] = nrm((n_layers, 1, dim_ff), 0.02)
    p["f2w"] = nrm((n_layers, dim_ff, d_model), 1.0 / math.sqrt(dim_ff))
    p["f2b"] = nrm((n_layers, 1, d_model), 0.02)
    p["U_raw"] = nrm((d_model, d_model))
    p["V_raw"] = nrm((d_model, d_model))
    p["S_raw"] = nrm((d_model,))
    p["fw"] = nrm((d_model, out_dim), 1.0 / math.sqrt(d_model))   # fc
    p["fb"] = nrm((1, out_dim), 0.02)
    return p


# TODO(synk): dropout inside nn.TransformerEncoderLayer is treated as identity
# (inference semantics); training-mode dropout is not implemented.

if __name__ == "__main__":
    key = jax.random.PRNGKey(0)
    kp, kx = jax.random.split(key)

    B, input_dim, seq_len, horizon = 2, 4, 8, 3
    d_model, n_heads, dim_ff, n_layers = 64, 4, 96, 3

    x = jax.random.normal(kx, (B, seq_len, input_dim), jnp.float32)

    for patch_len in (1, 2):   # pointwise-embed path and conv-patch path
        cfg = dict(patch_len=patch_len, d_model=d_model, n_heads=n_heads,
                   n_layers=n_layers, rho_max=0.99)
        params = init_params(kp, input_dim, horizon, patch_len,
                             d_model=d_model, n_heads=n_heads,
                             dim_ff=dim_ff, n_layers=n_layers)
        pred = koopformer_pallas(x, params, cfg, b_tile=1)
        jax.block_until_ready(pred)
        assert pred.shape == (B, horizon * input_dim)
        ref = koopformer_ref(x, params, cfg)
        err = float(jnp.max(jnp.abs(pred - ref)))
        assert err < 2e-2, f"patch_len={patch_len} max abs err {err}"

    print("KERNEL_OK")
</pallas_src>

<mosaic_0001>
module attributes {stable_mosaic.version = 11 : i64} {
  func.func @kernel(%arg0: i32, %arg1: memref<1x9x4xf32, #tpu.memory_space<vmem>>, %arg2: memref<9x64xf32, #tpu.memory_space<vmem>>, %arg3: memref<4x64xf32, #tpu.memory_space<vmem>>, %arg4: memref<3x64x192xf32, #tpu.memory_space<vmem>>, %arg5: memref<3x1x192xf32, #tpu.memory_space<vmem>>, %arg6: memref<3x64x64xf32, #tpu.memory_space<vmem>>, %arg7: memref<3x1x64xf32, #tpu.memory_space<vmem>>, %arg8: memref<3x1x64xf32, #tpu.memory_space<vmem>>, %arg9: memref<3x1x64xf32, #tpu.memory_space<vmem>>, %arg10: memref<3x1x64xf32, #tpu.memory_space<vmem>>, %arg11: memref<3x1x64xf32, #tpu.memory_space<vmem>>, %arg12: memref<3x64x128xf32, #tpu.memory_space<vmem>>, %arg13: memref<3x1x128xf32, #tpu.memory_space<vmem>>, %arg14: memref<3x128x64xf32, #tpu.memory_space<vmem>>, %arg15: memref<3x1x64xf32, #tpu.memory_space<vmem>>, %arg16: memref<64x64xf32, #tpu.memory_space<vmem>>, %arg17: memref<64x64xf32, #tpu.memory_space<vmem>>, %arg18: memref<64x128xf32, #tpu.memory_space<vmem>>, %arg19: memref<1x1x128xf32, #tpu.memory_space<vmem>>, %arg20: memref<1x1x128xf32, #tpu.memory_space<vmem>>) attributes {dimension_semantics = [#tpu.dimension_semantics<parallel>], iteration_bounds = array<i64: 2>, scalar_prefetch = 0 : i64, scratch_operands = 0 : i64, tpu.core_type = #tpu.core_type<tc>, window_params = [{transform_indices = @transform_0, window_bounds = array<i64: 1, 9, 4>}, {pipeline_mode = #tpu.pipeline_mode<synchronous>, transform_indices = @transform_1, window_bounds = array<i64: 9, 64>}, {pipeline_mode = #tpu.pipeline_mode<synchronous>, transform_indices = @transform_2, window_bounds = array<i64: 4, 64>}, {pipeline_mode = #tpu.pipeline_mode<synchronous>, transform_indices = @transform_3, window_bounds = array<i64: 3, 64, 192>}, {pipeline_mode = #tpu.pipeline_mode<synchronous>, transform_indices = @transform_4, window_bounds = array<i64: 3, 1, 192>}, {pipeline_mode = #tpu.pipeline_mode<synchronous>, transform_indices = @transform_5, window_bounds = array<i64: 3, 64, 64>}, {pipeline_mode = #tpu.pipeline_mode<synchronous>, transform_indices = @transform_6, window_bounds = array<i64: 3, 1, 64>}, {pipeline_mode = #tpu.pipeline_mode<synchronous>, transform_indices = @transform_7, window_bounds = array<i64: 3, 1, 64>}, {pipeline_mode = #tpu.pipeline_mode<synchronous>, transform_indices = @transform_8, window_bounds = array<i64: 3, 1, 64>}, {pipeline_mode = #tpu.pipeline_mode<synchronous>, transform_indices = @transform_9, window_bounds = array<i64: 3, 1, 64>}, {pipeline_mode = #tpu.pipeline_mode<synchronous>, transform_indices = @transform_10, window_bounds = array<i64: 3, 1, 64>}, {pipeline_mode = #tpu.pipeline_mode<synchronous>, transform_indices = @transform_11, window_bounds = array<i64: 3, 64, 128>}, {pipeline_mode = #tpu.pipeline_mode<synchronous>, transform_indices = @transform_12, window_bounds = array<i64: 3, 1, 128>}, {pipeline_mode = #tpu.pipeline_mode<synchronous>, transform_indices = @transform_13, window_bounds = array<i64: 3, 128, 64>}, {pipeline_mode = #tpu.pipeline_mode<synchronous>, transform_indices = @transform_14, window_bounds = array<i64: 3, 1, 64>}, {pipeline_mode = #tpu.pipeline_mode<synchronous>, transform_indices = @transform_15, window_bounds = array<i64: 64, 64>}, {pipeline_mode = #tpu.pipeline_mode<synchronous>, transform_indices = @transform_16, window_bounds = array<i64: 64, 64>}, {pipeline_mode = #tpu.pipeline_mode<synchronous>, transform_indices = @transform_17, window_bounds = array<i64: 64, 128>}, {pipeline_mode = #tpu.pipeline_mode<synchronous>, transform_indices = @transform_18, window_bounds = array<i64: 1, 1, 128>}, {transform_indices = @transform_19, window_bounds = array<i64: 1, 1, 128>}]} {
    %c0 = arith.constant 0 : index
    %c0_0 = arith.constant 0 : index
    %c0_1 = arith.constant 0 : index
    %0 = vector.load %arg1[%c0, %c0_0, %c0_1] : memref<1x9x4xf32, #tpu.memory_space<vmem>>, vector<1x9x4xf32>
    %c0_2 = arith.constant 0 : index
    %c0_3 = arith.constant 0 : index
    %1 = vector.load %arg2[%c0_2, %c0_3] : memref<9x64xf32, #tpu.memory_space<vmem>>, vector<9x64xf32>
    %c0_4 = arith.constant 0 : index
    %c0_5 = arith.constant 0 : index
    %2 = vector.load %arg3[%c0_4, %c0_5] : memref<4x64xf32, #tpu.memory_space<vmem>>, vector<4x64xf32>
    %c0_6 = arith.constant 0 : index
    %c0_7 = arith.constant 0 : index
    %c0_8 = arith.constant 0 : index
    %3 = vector.load %arg4[%c0_6, %c0_7, %c0_8] : memref<3x64x192xf32, #tpu.memory_space<vmem>>, vector<3x64x192xf32>
    %c0_9 = arith.constant 0 : index
    %c0_10 = arith.constant 0 : index
    %c0_11 = arith.constant 0 : index
    %4 = vector.load %arg5[%c0_9, %c0_10, %c0_11] : memref<3x1x192xf32, #tpu.memory_space<vmem>>, vector<3x1x192xf32>
    %c0_12 = arith.constant 0 : index
    %c0_13 = arith.constant 0 : index
    %c0_14 = arith.constant 0 : index
    %5 = vector.load %arg6[%c0_12, %c0_13, %c0_14] : memref<3x64x64xf32, #tpu.memory_space<vmem>>, vector<3x64x64xf32>
    %c0_15 = arith.constant 0 : index
    %c0_16 = arith.constant 0 : index
    %c0_17 = arith.constant 0 : index
    %6 = vector.load %arg7[%c0_15, %c0_16, %c0_17] : memref<3x1x64xf32, #tpu.memory_space<vmem>>, vector<3x1x64xf32>
    %c0_18 = arith.constant 0 : index
    %c0_19 = arith.constant 0 : index
    %c0_20 = arith.constant 0 : index
    %7 = vector.load %arg8[%c0_18, %c0_19, %c0_20] : memref<3x1x64xf32, #tpu.memory_space<vmem>>, vector<3x1x64xf32>
    %c0_21 = arith.constant 0 : index
    %c0_22 = arith.constant 0 : index
    %c0_23 = arith.constant 0 : index
    %8 = vector.load %arg9[%c0_21, %c0_22, %c0_23] : memref<3x1x64xf32, #tpu.memory_space<vmem>>, vector<3x1x64xf32>
    %c0_24 = arith.constant 0 : index
    %c0_25 = arith.constant 0 : index
    %c0_26 = arith.constant 0 : index
    %9 = vector.load %arg10[%c0_24, %c0_25, %c0_26] : memref<3x1x64xf32, #tpu.memory_space<vmem>>, vector<3x1x64xf32>
    %c0_27 = arith.constant 0 : index
    %c0_28 = arith.constant 0 : index
    %c0_29 = arith.constant 0 : index
    %10 = vector.load %arg11[%c0_27, %c0_28, %c0_29] : memref<3x1x64xf32, #tpu.memory_space<vmem>>, vector<3x1x64xf32>
    %c0_30 = arith.constant 0 : index
    %c0_31 = arith.constant 0 : index
    %c0_32 = arith.constant 0 : index
    %11 = vector.load %arg12[%c0_30, %c0_31, %c0_32] : memref<3x64x128xf32, #tpu.memory_space<vmem>>, vector<3x64x128xf32>
    %c0_33 = arith.constant 0 : index
    %c0_34 = arith.constant 0 : index
    %c0_35 = arith.constant 0 : index
    %12 = vector.load %arg13[%c0_33, %c0_34, %c0_35] : memref<3x1x128xf32, #tpu.memory_space<vmem>>, vector<3x1x128xf32>
    %c0_36 = arith.constant 0 : index
    %c0_37 = arith.constant 0 : index
    %c0_38 = arith.constant 0 : index
    %13 = vector.load %arg14[%c0_36, %c0_37, %c0_38] : memref<3x128x64xf32, #tpu.memory_space<vmem>>, vector<3x128x64xf32>
    %c0_39 = arith.constant 0 : index
    %c0_40 = arith.constant 0 : index
    %c0_41 = arith.constant 0 : index
    %14 = vector.load %arg15[%c0_39, %c0_40, %c0_41] : memref<3x1x64xf32, #tpu.memory_space<vmem>>, vector<3x1x64xf32>
    %c0_42 = arith.constant 0 : index
    %c0_43 = arith.constant 0 : index
    %15 = vector.load %arg16[%c0_42, %c0_43] : memref<64x64xf32, #tpu.memory_space<vmem>>, vector<64x64xf32>
    %c0_44 = arith.constant 0 : index
    %c0_45 = arith.constant 0 : index
    %16 = vector.load %arg17[%c0_44, %c0_45] : memref<64x64xf32, #tpu.memory_space<vmem>>, vector<64x64xf32>
    %c0_46 = arith.constant 0 : index
    %c0_47 = arith.constant 0 : index
    %17 = vector.load %arg18[%c0_46, %c0_47] : memref<64x128xf32, #tpu.memory_space<vmem>>, vector<64x128xf32>
    %c0_48 = arith.constant 0 : index
    %c0_49 = arith.constant 0 : index
    %c0_50 = arith.constant 0 : index
    %18 = vector.load %arg19[%c0_48, %c0_49, %c0_50] : memref<1x1x128xf32, #tpu.memory_space<vmem>>, vector<1x1x128xf32>
    %19 = arith.truncf %2 : vector<4x64xf32> to vector<4x64xbf16>
    %20 = vector.shape_cast %19 : vector<4x64xbf16> to vector<1x4x64xbf16>
    %21 = arith.truncf %0 : vector<1x9x4xf32> to vector<1x9x4xbf16>
    %cst = arith.constant dense<0.000000e+00> : vector<1x9x64xf32>
    %22 = tpu.matmul %21, %20, %cst {dimension_numbers = #tpu.dot_dimension_numbers<[2], [1], [1], [2], [0, 0, 0, 1, 1, 2], [0], [0]>} : vector<1x9x4xbf16>, vector<1x4x64xbf16>, vector<1x9x64xf32> -> vector<1x9x64xf32>
    %23 = vector.shape_cast %1 : vector<9x64xf32> to vector<1x9x64xf32>
    %24 = arith.addf %22, %23 : vector<1x9x64xf32>
    %25 = vector.extract_strided_slice %3 {offsets = [0, 0, 0], sizes = [1, 64, 192], strides = [1, 1, 1]} : vector<3x64x192xf32> to vector<1x64x192xf32>
    %26 = vector.shape_cast %25 : vector<1x64x192xf32> to vector<64x192xf32>
    %27 = arith.truncf %26 : vector<64x192xf32> to vector<64x192xbf16>
    %28 = vector.shape_cast %27 : vector<64x192xbf16> to vector<1x64x192xbf16>
    %29 = arith.truncf %24 : vector<1x9x64xf32> to vector<1x9x64xbf16>
    %cst_51 = arith.constant dense<0.000000e+00> : vector<1x9x192xf32>
    %30 = tpu.matmul %29, %28, %cst_51 {dimension_numbers = #tpu.dot_dimension_numbers<[2], [1], [1], [2], [0, 0, 0, 1, 1, 2], [0], [0]>} : vector<1x9x64xbf16>, vector<1x64x192xbf16>, vector<1x9x192xf32> -> vector<1x9x192xf32>
    %31 = vector.extract_strided_slice %4 {offsets = [0, 0, 0], sizes = [1, 1, 192], strides = [1, 1, 1]} : vector<3x1x192xf32> to vector<1x1x192xf32>
    %32 = vector.shape_cast %31 : vector<1x1x192xf32> to vector<1x192xf32>
    %33 = vector.shape_cast %32 : vector<1x192xf32> to vector<1x1x192xf32>
    %34 = vector.broadcast %33 : vector<1x1x192xf32> to vector<1x9x192xf32>
    %35 = arith.addf %30, %34 : vector<1x9x192xf32>
    %36 = vector.extract_strided_slice %35 {offsets = [0, 0, 0], sizes = [1, 9, 16], strides = [1, 1, 1]} : vector<1x9x192xf32> to vector<1x9x16xf32>
    %37 = vector.extract_strided_slice %35 {offsets = [0, 0, 64], sizes = [1, 9, 16], strides = [1, 1, 1]} : vector<1x9x192xf32> to vector<1x9x16xf32>
    %38 = vector.extract_strided_slice %35 {offsets = [0, 0, 128], sizes = [1, 9, 16], strides = [1, 1, 1]} : vector<1x9x192xf32> to vector<1x9x16xf32>
    %39 = arith.truncf %36 : vector<1x9x16xf32> to vector<1x9x16xbf16>
    %40 = arith.truncf %37 : vector<1x9x16xf32> to vector<1x9x16xbf16>
    %cst_52 = arith.constant dense<0.000000e+00> : vector<1x9x9xf32>
    %41 = tpu.matmul %39, %40, %cst_52 {dimension_numbers = #tpu.dot_dimension_numbers<[2], [2], [1], [1], [0, 0, 0, 1, 1, 1], [0], [0]>} : vector<1x9x16xbf16>, vector<1x9x16xbf16>, vector<1x9x9xf32> -> vector<1x9x9xf32>
    %cst_53 = arith.constant dense<0xFF800000> : vector<1x9xf32>
    %42 = vector.multi_reduction <maximumf>, %41, %cst_53 [2] : vector<1x9x9xf32> to vector<1x9xf32>
    %43 = vector.shape_cast %42 : vector<1x9xf32> to vector<1x9x1xf32>
    %44 = vector.broadcast %43 : vector<1x9x1xf32> to vector<1x9x9xf32>
    %45 = arith.subf %41, %44 : vector<1x9x9xf32>
    %46 = math.exp %45 : vector<1x9x9xf32>
    %cst_54 = arith.constant dense<0.000000e+00> : vector<1x9xf32>
    %47 = vector.multi_reduction <add>, %46, %cst_54 [2] : vector<1x9x9xf32> to vector<1x9xf32>
    %48 = vector.shape_cast %47 : vector<1x9xf32> to vector<1x9x1xf32>
    %49 = tpu.reciprocal %48 {approx = true} : vector<1x9x1xf32> -> vector<1x9x1xf32>
    %50 = vector.broadcast %49 : vector<1x9x1xf32> to vector<1x9x9xf32>
    %51 = arith.mulf %46, %50 : vector<1x9x9xf32>
    %52 = arith.truncf %51 : vector<1x9x9xf32> to vector<1x9x9xbf16>
    %53 = arith.truncf %38 : vector<1x9x16xf32> to vector<1x9x16xbf16>
    %cst_55 = arith.constant dense<0.000000e+00> : vector<1x9x16xf32>
    %54 = tpu.matmul %52, %53, %cst_55 {dimension_numbers = #tpu.dot_dimension_numbers<[2], [1], [1], [2], [0, 0, 0, 1, 1, 2], [0], [0]>} : vector<1x9x9xbf16>, vector<1x9x16xbf16>, vector<1x9x16xf32> -> vector<1x9x16xf32>
    %55 = vector.extract_strided_slice %5 {offsets = [0, 0, 0], sizes = [1, 64, 64], strides = [1, 1, 1]} : vector<3x64x64xf32> to vector<1x64x64xf32>
    %56 = vector.shape_cast %55 : vector<1x64x64xf32> to vector<64x64xf32>
    %57 = vector.extract_strided_slice %56 {offsets = [0, 0], sizes = [16, 64], strides = [1, 1]} : vector<64x64xf32> to vector<16x64xf32>
    %58 = arith.truncf %57 : vector<16x64xf32> to vector<16x64xbf16>
    %59 = vector.shape_cast %58 : vector<16x64xbf16> to vector<1x16x64xbf16>
    %60 = arith.truncf %54 : vector<1x9x16xf32> to vector<1x9x16xbf16>
    %cst_56 = arith.constant dense<0.000000e+00> : vector<1x9x64xf32>
    %61 = tpu.matmul %60, %59, %cst_56 {dimension_numbers = #tpu.dot_dimension_numbers<[2], [1], [1], [2], [0, 0, 0, 1, 1, 2], [0], [0]>} : vector<1x9x16xbf16>, vector<1x16x64xbf16>, vector<1x9x64xf32> -> vector<1x9x64xf32>
    %62 = vector.extract_strided_slice %35 {offsets = [0, 0, 16], sizes = [1, 9, 16], strides = [1, 1, 1]} : vector<1x9x192xf32> to vector<1x9x16xf32>
    %63 = vector.extract_strided_slice %35 {offsets = [0, 0, 80], sizes = [1, 9, 16], strides = [1, 1, 1]} : vector<1x9x192xf32> to vector<1x9x16xf32>
    %64 = vector.extract_strided_slice %35 {offsets = [0, 0, 144], sizes = [1, 9, 16], strides = [1, 1, 1]} : vector<1x9x192xf32> to vector<1x9x16xf32>
    %65 = arith.truncf %62 : vector<1x9x16xf32> to vector<1x9x16xbf16>
    %66 = arith.truncf %63 : vector<1x9x16xf32> to vector<1x9x16xbf16>
    %cst_57 = arith.constant dense<0.000000e+00> : vector<1x9x9xf32>
    %67 = tpu.matmul %65, %66, %cst_57 {dimension_numbers = #tpu.dot_dimension_numbers<[2], [2], [1], [1], [0, 0, 0, 1, 1, 1], [0], [0]>} : vector<1x9x16xbf16>, vector<1x9x16xbf16>, vector<1x9x9xf32> -> vector<1x9x9xf32>
    %cst_58 = arith.constant dense<0xFF800000> : vector<1x9xf32>
    %68 = vector.multi_reduction <maximumf>, %67, %cst_58 [2] : vector<1x9x9xf32> to vector<1x9xf32>
    %69 = vector.shape_cast %68 : vector<1x9xf32> to vector<1x9x1xf32>
    %70 = vector.broadcast %69 : vector<1x9x1xf32> to vector<1x9x9xf32>
    %71 = arith.subf %67, %70 : vector<1x9x9xf32>
    %72 = math.exp %71 : vector<1x9x9xf32>
    %cst_59 = arith.constant dense<0.000000e+00> : vector<1x9xf32>
    %73 = vector.multi_reduction <add>, %72, %cst_59 [2] : vector<1x9x9xf32> to vector<1x9xf32>
    %74 = vector.shape_cast %73 : vector<1x9xf32> to vector<1x9x1xf32>
    %75 = tpu.reciprocal %74 {approx = true} : vector<1x9x1xf32> -> vector<1x9x1xf32>
    %76 = vector.broadcast %75 : vector<1x9x1xf32> to vector<1x9x9xf32>
    %77 = arith.mulf %72, %76 : vector<1x9x9xf32>
    %78 = arith.truncf %77 : vector<1x9x9xf32> to vector<1x9x9xbf16>
    %79 = arith.truncf %64 : vector<1x9x16xf32> to vector<1x9x16xbf16>
    %cst_60 = arith.constant dense<0.000000e+00> : vector<1x9x16xf32>
    %80 = tpu.matmul %78, %79, %cst_60 {dimension_numbers = #tpu.dot_dimension_numbers<[2], [1], [1], [2], [0, 0, 0, 1, 1, 2], [0], [0]>} : vector<1x9x9xbf16>, vector<1x9x16xbf16>, vector<1x9x16xf32> -> vector<1x9x16xf32>
    %81 = vector.extract_strided_slice %5 {offsets = [0, 0, 0], sizes = [1, 64, 64], strides = [1, 1, 1]} : vector<3x64x64xf32> to vector<1x64x64xf32>
    %82 = vector.shape_cast %81 : vector<1x64x64xf32> to vector<64x64xf32>
    %83 = vector.extract_strided_slice %82 {offsets = [16, 0], sizes = [16, 64], strides = [1, 1]} : vector<64x64xf32> to vector<16x64xf32>
    %84 = arith.truncf %83 : vector<16x64xf32> to vector<16x64xbf16>
    %85 = vector.shape_cast %84 : vector<16x64xbf16> to vector<1x16x64xbf16>
    %86 = arith.truncf %80 : vector<1x9x16xf32> to vector<1x9x16xbf16>
    %cst_61 = arith.constant dense<0.000000e+00> : vector<1x9x64xf32>
    %87 = tpu.matmul %86, %85, %cst_61 {dimension_numbers = #tpu.dot_dimension_numbers<[2], [1], [1], [2], [0, 0, 0, 1, 1, 2], [0], [0]>} : vector<1x9x16xbf16>, vector<1x16x64xbf16>, vector<1x9x64xf32> -> vector<1x9x64xf32>
    %88 = vector.extract_strided_slice %35 {offsets = [0, 0, 32], sizes = [1, 9, 16], strides = [1, 1, 1]} : vector<1x9x192xf32> to vector<1x9x16xf32>
    %89 = vector.extract_strided_slice %35 {offsets = [0, 0, 96], sizes = [1, 9, 16], strides = [1, 1, 1]} : vector<1x9x192xf32> to vector<1x9x16xf32>
    %90 = vector.extract_strided_slice %35 {offsets = [0, 0, 160], sizes = [1, 9, 16], strides = [1, 1, 1]} : vector<1x9x192xf32> to vector<1x9x16xf32>
    %91 = arith.truncf %88 : vector<1x9x16xf32> to vector<1x9x16xbf16>
    %92 = arith.truncf %89 : vector<1x9x16xf32> to vector<1x9x16xbf16>
    %cst_62 = arith.constant dense<0.000000e+00> : vector<1x9x9xf32>
    %93 = tpu.matmul %91, %92, %cst_62 {dimension_numbers = #tpu.dot_dimension_numbers<[2], [2], [1], [1], [0, 0, 0, 1, 1, 1], [0], [0]>} : vector<1x9x16xbf16>, vector<1x9x16xbf16>, vector<1x9x9xf32> -> vector<1x9x9xf32>
    %cst_63 = arith.constant dense<0xFF800000> : vector<1x9xf32>
    %94 = vector.multi_reduction <maximumf>, %93, %cst_63 [2] : vector<1x9x9xf32> to vector<1x9xf32>
    %95 = vector.shape_cast %94 : vector<1x9xf32> to vector<1x9x1xf32>
    %96 = vector.broadcast %95 : vector<1x9x1xf32> to vector<1x9x9xf32>
    %97 = arith.subf %93, %96 : vector<1x9x9xf32>
    %98 = math.exp %97 : vector<1x9x9xf32>
    %cst_64 = arith.constant dense<0.000000e+00> : vector<1x9xf32>
    %99 = vector.multi_reduction <add>, %98, %cst_64 [2] : vector<1x9x9xf32> to vector<1x9xf32>
    %100 = vector.shape_cast %99 : vector<1x9xf32> to vector<1x9x1xf32>
    %101 = tpu.reciprocal %100 {approx = true} : vector<1x9x1xf32> -> vector<1x9x1xf32>
    %102 = vector.broadcast %101 : vector<1x9x1xf32> to vector<1x9x9xf32>
    %103 = arith.mulf %98, %102 : vector<1x9x9xf32>
    %104 = arith.truncf %103 : vector<1x9x9xf32> to vector<1x9x9xbf16>
    %105 = arith.truncf %90 : vector<1x9x16xf32> to vector<1x9x16xbf16>
    %cst_65 = arith.constant dense<0.000000e+00> : vector<1x9x16xf32>
    %106 = tpu.matmul %104, %105, %cst_65 {dimension_numbers = #tpu.dot_dimension_numbers<[2], [1], [1], [2], [0, 0, 0, 1, 1, 2], [0], [0]>} : vector<1x9x9xbf16>, vector<1x9x16xbf16>, vector<1x9x16xf32> -> vector<1x9x16xf32>
    %107 = vector.extract_strided_slice %5 {offsets = [0, 0, 0], sizes = [1, 64, 64], strides = [1, 1, 1]} : vector<3x64x64xf32> to vector<1x64x64xf32>
    %108 = vector.shape_cast %107 : vector<1x64x64xf32> to vector<64x64xf32>
    %109 = vector.extract_strided_slice %108 {offsets = [32, 0], sizes = [16, 64], strides = [1, 1]} : vector<64x64xf32> to vector<16x64xf32>
    %110 = arith.truncf %109 : vector<16x64xf32> to vector<16x64xbf16>
    %111 = vector.shape_cast %110 : vector<16x64xbf16> to vector<1x16x64xbf16>
    %112 = arith.truncf %106 : vector<1x9x16xf32> to vector<1x9x16xbf16>
    %cst_66 = arith.constant dense<0.000000e+00> : vector<1x9x64xf32>
    %113 = tpu.matmul %112, %111, %cst_66 {dimension_numbers = #tpu.dot_dimension_numbers<[2], [1], [1], [2], [0, 0, 0, 1, 1, 2], [0], [0]>} : vector<1x9x16xbf16>, vector<1x16x64xbf16>, vector<1x9x64xf32> -> vector<1x9x64xf32>
    %114 = vector.extract_strided_slice %35 {offsets = [0, 0, 48], sizes = [1, 9, 16], strides = [1, 1, 1]} : vector<1x9x192xf32> to vector<1x9x16xf32>
    %115 = vector.extract_strided_slice %35 {offsets = [0, 0, 112], sizes = [1, 9, 16], strides = [1, 1, 1]} : vector<1x9x192xf32> to vector<1x9x16xf32>
    %116 = vector.extract_strided_slice %35 {offsets = [0, 0, 176], sizes = [1, 9, 16], strides = [1, 1, 1]} : vector<1x9x192xf32> to vector<1x9x16xf32>
    %117 = arith.truncf %114 : vector<1x9x16xf32> to vector<1x9x16xbf16>
    %118 = arith.truncf %115 : vector<1x9x16xf32> to vector<1x9x16xbf16>
    %cst_67 = arith.constant dense<0.000000e+00> : vector<1x9x9xf32>
    %119 = tpu.matmul %117, %118, %cst_67 {dimension_numbers = #tpu.dot_dimension_numbers<[2], [2], [1], [1], [0, 0, 0, 1, 1, 1], [0], [0]>} : vector<1x9x16xbf16>, vector<1x9x16xbf16>, vector<1x9x9xf32> -> vector<1x9x9xf32>
    %cst_68 = arith.constant dense<0xFF800000> : vector<1x9xf32>
    %120 = vector.multi_reduction <maximumf>, %119, %cst_68 [2] : vector<1x9x9xf32> to vector<1x9xf32>
    %121 = vector.shape_cast %120 : vector<1x9xf32> to vector<1x9x1xf32>
    %122 = vector.broadcast %121 : vector<1x9x1xf32> to vector<1x9x9xf32>
    %123 = arith.subf %119, %122 : vector<1x9x9xf32>
    %124 = math.exp %123 : vector<1x9x9xf32>
    %cst_69 = arith.constant dense<0.000000e+00> : vector<1x9xf32>
    %125 = vector.multi_reduction <add>, %124, %cst_69 [2] : vector<1x9x9xf32> to vector<1x9xf32>
    %126 = vector.shape_cast %125 : vector<1x9xf32> to vector<1x9x1xf32>
    %127 = tpu.reciprocal %126 {approx = true} : vector<1x9x1xf32> -> vector<1x9x1xf32>
    %128 = vector.broadcast %127 : vector<1x9x1xf32> to vector<1x9x9xf32>
    %129 = arith.mulf %124, %128 : vector<1x9x9xf32>
    %130 = arith.truncf %129 : vector<1x9x9xf32> to vector<1x9x9xbf16>
    %131 = arith.truncf %116 : vector<1x9x16xf32> to vector<1x9x16xbf16>
    %cst_70 = arith.constant dense<0.000000e+00> : vector<1x9x16xf32>
    %132 = tpu.matmul %130, %131, %cst_70 {dimension_numbers = #tpu.dot_dimension_numbers<[2], [1], [1], [2], [0, 0, 0, 1, 1, 2], [0], [0]>} : vector<1x9x9xbf16>, vector<1x9x16xbf16>, vector<1x9x16xf32> -> vector<1x9x16xf32>
    %133 = vector.extract_strided_slice %5 {offsets = [0, 0, 0], sizes = [1, 64, 64], strides = [1, 1, 1]} : vector<3x64x64xf32> to vector<1x64x64xf32>
    %134 = vector.shape_cast %133 : vector<1x64x64xf32> to vector<64x64xf32>
    %135 = vector.extract_strided_slice %134 {offsets = [48, 0], sizes = [16, 64], strides = [1, 1]} : vector<64x64xf32> to vector<16x64xf32>
    %136 = arith.truncf %135 : vector<16x64xf32> to vector<16x64xbf16>
    %137 = vector.shape_cast %136 : vector<16x64xbf16> to vector<1x16x64xbf16>
    %138 = arith.truncf %132 : vector<1x9x16xf32> to vector<1x9x16xbf16>
    %cst_71 = arith.constant dense<0.000000e+00> : vector<1x9x64xf32>
    %139 = tpu.matmul %138, %137, %cst_71 {dimension_numbers = #tpu.dot_dimension_numbers<[2], [1], [1], [2], [0, 0, 0, 1, 1, 2], [0], [0]>} : vector<1x9x16xbf16>, vector<1x16x64xbf16>, vector<1x9x64xf32> -> vector<1x9x64xf32>
    %140 = arith.addf %61, %87 : vector<1x9x64xf32>
    %141 = arith.addf %140, %113 : vector<1x9x64xf32>
    %142 = arith.addf %141, %139 : vector<1x9x64xf32>
    %143 = vector.extract_strided_slice %6 {offsets = [0, 0, 0], sizes = [1, 1, 64], strides = [1, 1, 1]} : vector<3x1x64xf32> to vector<1x1x64xf32>
    %144 = vector.shape_cast %143 : vector<1x1x64xf32> to vector<1x64xf32>
    %145 = vector.shape_cast %144 : vector<1x64xf32> to vector<1x1x64xf32>
    %146 = vector.broadcast %145 : vector<1x1x64xf32> to vector<1x9x64xf32>
    %147 = arith.addf %142, %146 : vector<1x9x64xf32>
    %148 = arith.addf %24, %147 : vector<1x9x64xf32>
    %149 = vector.extract_strided_slice %7 {offsets = [0, 0, 0], sizes = [1, 1, 64], strides = [1, 1, 1]} : vector<3x1x64xf32> to vector<1x1x64xf32>
    %150 = vector.shape_cast %149 : vector<1x1x64xf32> to vector<1x64xf32>
    %151 = vector.extract_strided_slice %8 {offsets = [0, 0, 0], sizes = [1, 1, 64], strides = [1, 1, 1]} : vector<3x1x64xf32> to vector<1x1x64xf32>
    %152 = vector.shape_cast %151 : vector<1x1x64xf32> to vector<1x64xf32>
    %cst_72 = arith.constant dense<0.000000e+00> : vector<1x9xf32>
    %153 = vector.multi_reduction <add>, %148, %cst_72 [2] : vector<1x9x64xf32> to vector<1x9xf32>
    %154 = vector.shape_cast %153 : vector<1x9xf32> to vector<1x9x1xf32>
    %cst_73 = arith.constant 1.562500e-02 : f32
    %155 = vector.broadcast %cst_73 : f32 to vector<1x9x1xf32>
    %156 = arith.mulf %154, %155 : vector<1x9x1xf32>
    %157 = vector.broadcast %156 : vector<1x9x1xf32> to vector<1x9x64xf32>
    %158 = arith.subf %148, %157 : vector<1x9x64xf32>
    %159 = arith.mulf %158, %158 : vector<1x9x64xf32>
    %cst_74 = arith.constant dense<0.000000e+00> : vector<1x9xf32>
    %160 = vector.multi_reduction <add>, %159, %cst_74 [2] : vector<1x9x64xf32> to vector<1x9xf32>
    %161 = vector.shape_cast %160 : vector<1x9xf32> to vector<1x9x1xf32>
    %cst_75 = arith.constant 1.562500e-02 : f32
    %162 = vector.broadcast %cst_75 : f32 to vector<1x9x1xf32>
    %163 = arith.mulf %161, %162 : vector<1x9x1xf32>
    %cst_76 = arith.constant 9.99999974E-6 : f32
    %164 = vector.broadcast %cst_76 : f32 to vector<1x9x1xf32>
    %165 = arith.addf %163, %164 : vector<1x9x1xf32>
    %166 = math.rsqrt %165 : vector<1x9x1xf32>
    %167 = vector.broadcast %166 : vector<1x9x1xf32> to vector<1x9x64xf32>
    %168 = arith.mulf %158, %167 : vector<1x9x64xf32>
    %169 = vector.shape_cast %150 : vector<1x64xf32> to vector<1x1x64xf32>
    %170 = vector.broadcast %169 : vector<1x1x64xf32> to vector<1x9x64xf32>
    %171 = arith.mulf %168, %170 : vector<1x9x64xf32>
    %172 = vector.shape_cast %152 : vector<1x64xf32> to vector<1x1x64xf32>
    %173 = vector.broadcast %172 : vector<1x1x64xf32> to vector<1x9x64xf32>
    %174 = arith.addf %171, %173 : vector<1x9x64xf32>
    %175 = vector.extract_strided_slice %11 {offsets = [0, 0, 0], sizes = [1, 64, 128], strides = [1, 1, 1]} : vector<3x64x128xf32> to vector<1x64x128xf32>
    %176 = vector.shape_cast %175 : vector<1x64x128xf32> to vector<64x128xf32>
    %177 = arith.truncf %176 : vector<64x128xf32> to vector<64x128xbf16>
    %178 = vector.shape_cast %177 : vector<64x128xbf16> to vector<1x64x128xbf16>
    %179 = arith.truncf %174 : vector<1x9x64xf32> to vector<1x9x64xbf16>
    %cst_77 = arith.constant dense<0.000000e+00> : vector<1x9x128xf32>
    %180 = tpu.matmul %179, %178, %cst_77 {dimension_numbers = #tpu.dot_dimension_numbers<[2], [1], [1], [2], [0, 0, 0, 1, 1, 2], [0], [0]>} : vector<1x9x64xbf16>, vector<1x64x128xbf16>, vector<1x9x128xf32> -> vector<1x9x128xf32>
    %181 = vector.extract_strided_slice %12 {offsets = [0, 0, 0], sizes = [1, 1, 128], strides = [1, 1, 1]} : vector<3x1x128xf32> to vector<1x1x128xf32>
    %182 = vector.shape_cast %181 : vector<1x1x128xf32> to vector<1x128xf32>
    %183 = vector.shape_cast %182 : vector<1x128xf32> to vector<1x1x128xf32>
    %184 = vector.broadcast %183 : vector<1x1x128xf32> to vector<1x9x128xf32>
    %185 = arith.addf %180, %184 : vector<1x9x128xf32>
    %cst_78 = arith.constant 0.000000e+00 : f32
    %186 = vector.broadcast %cst_78 : f32 to vector<1x9x128xf32>
    %187 = arith.maximumf %185, %186 : vector<1x9x128xf32>
    %188 = vector.extract_strided_slice %13 {offsets = [0, 0, 0], sizes = [1, 128, 64], strides = [1, 1, 1]} : vector<3x128x64xf32> to vector<1x128x64xf32>
    %189 = vector.shape_cast %188 : vector<1x128x64xf32> to vector<128x64xf32>
    %190 = arith.truncf %189 : vector<128x64xf32> to vector<128x64xbf16>
    %191 = vector.shape_cast %190 : vector<128x64xbf16> to vector<1x128x64xbf16>
    %192 = arith.truncf %187 : vector<1x9x128xf32> to vector<1x9x128xbf16>
    %cst_79 = arith.constant dense<0.000000e+00> : vector<1x9x64xf32>
    %193 = tpu.matmul %192, %191, %cst_79 {dimension_numbers = #tpu.dot_dimension_numbers<[2], [1], [1], [2], [0, 0, 0, 1, 1, 2], [0], [0]>} : vector<1x9x128xbf16>, vector<1x128x64xbf16>, vector<1x9x64xf32> -> vector<1x9x64xf32>
    %194 = vector.extract_strided_slice %14 {offsets = [0, 0, 0], sizes = [1, 1, 64], strides = [1, 1, 1]} : vector<3x1x64xf32> to vector<1x1x64xf32>
    %195 = vector.shape_cast %194 : vector<1x1x64xf32> to vector<1x64xf32>
    %196 = vector.shape_cast %195 : vector<1x64xf32> to vector<1x1x64xf32>
    %197 = vector.broadcast %196 : vector<1x1x64xf32> to vector<1x9x64xf32>
    %198 = arith.addf %193, %197 : vector<1x9x64xf32>
    %199 = arith.addf %174, %198 : vector<1x9x64xf32>
    %200 = vector.extract_strided_slice %9 {offsets = [0, 0, 0], sizes = [1, 1, 64], strides = [1, 1, 1]} : vector<3x1x64xf32> to vector<1x1x64xf32>
    %201 = vector.shape_cast %200 : vector<1x1x64xf32> to vector<1x64xf32>
    %202 = vector.extract_strided_slice %10 {offsets = [0, 0, 0], sizes = [1, 1, 64], strides = [1, 1, 1]} : vector<3x1x64xf32> to vector<1x1x64xf32>
    %203 = vector.shape_cast %202 : vector<1x1x64xf32> to vector<1x64xf32>
    %cst_80 = arith.constant dense<0.000000e+00> : vector<1x9xf32>
    %204 = vector.multi_reduction <add>, %199, %cst_80 [2] : vector<1x9x64xf32> to vector<1x9xf32>
    %205 = vector.shape_cast %204 : vector<1x9xf32> to vector<1x9x1xf32>
    %cst_81 = arith.constant 1.562500e-02 : f32
    %206 = vector.broadcast %cst_81 : f32 to vector<1x9x1xf32>
    %207 = arith.mulf %205, %206 : vector<1x9x1xf32>
    %208 = vector.broadcast %207 : vector<1x9x1xf32> to vector<1x9x64xf32>
    %209 = arith.subf %199, %208 : vector<1x9x64xf32>
    %210 = arith.mulf %209, %209 : vector<1x9x64xf32>
    %cst_82 = arith.constant dense<0.000000e+00> : vector<1x9xf32>
    %211 = vector.multi_reduction <add>, %210, %cst_82 [2] : vector<1x9x64xf32> to vector<1x9xf32>
    %212 = vector.shape_cast %211 : vector<1x9xf32> to vector<1x9x1xf32>
    %cst_83 = arith.constant 1.562500e-02 : f32
    %213 = vector.broadcast %cst_83 : f32 to vector<1x9x1xf32>
    %214 = arith.mulf %212, %213 : vector<1x9x1xf32>
    %cst_84 = arith.constant 9.99999974E-6 : f32
    %215 = vector.broadcast %cst_84 : f32 to vector<1x9x1xf32>
    %216 = arith.addf %214, %215 : vector<1x9x1xf32>
    %217 = math.rsqrt %216 : vector<1x9x1xf32>
    %218 = vector.broadcast %217 : vector<1x9x1xf32> to vector<1x9x64xf32>
    %219 = arith.mulf %209, %218 : vector<1x9x64xf32>
    %220 = vector.shape_cast %201 : vector<1x64xf32> to vector<1x1x64xf32>
    %221 = vector.broadcast %220 : vector<1x1x64xf32> to vector<1x9x64xf32>
    %222 = arith.mulf %219, %221 : vector<1x9x64xf32>
    %223 = vector.shape_cast %203 : vector<1x64xf32> to vector<1x1x64xf32>
    %224 = vector.broadcast %223 : vector<1x1x64xf32> to vector<1x9x64xf32>
    %225 = arith.addf %222, %224 : vector<1x9x64xf32>
    %226 = vector.extract_strided_slice %3 {offsets = [1, 0, 0], sizes = [1, 64, 192], strides = [1, 1, 1]} : vector<3x64x192xf32> to vector<1x64x192xf32>
    %227 = vector.shape_cast %226 : vector<1x64x192xf32> to vector<64x192xf32>
    %228 = arith.truncf %227 : vector<64x192xf32> to vector<64x192xbf16>
    %229 = vector.shape_cast %228 : vector<64x192xbf16> to vector<1x64x192xbf16>
    %230 = arith.truncf %225 : vector<1x9x64xf32> to vector<1x9x64xbf16>
    %cst_85 = arith.constant dense<0.000000e+00> : vector<1x9x192xf32>
    %231 = tpu.matmul %230, %229, %cst_85 {dimension_numbers = #tpu.dot_dimension_numbers<[2], [1], [1], [2], [0, 0, 0, 1, 1, 2], [0], [0]>} : vector<1x9x64xbf16>, vector<1x64x192xbf16>, vector<1x9x192xf32> -> vector<1x9x192xf32>
    %232 = vector.extract_strided_slice %4 {offsets = [1, 0, 0], sizes = [1, 1, 192], strides = [1, 1, 1]} : vector<3x1x192xf32> to vector<1x1x192xf32>
    %233 = vector.shape_cast %232 : vector<1x1x192xf32> to vector<1x192xf32>
    %234 = vector.shape_cast %233 : vector<1x192xf32> to vector<1x1x192xf32>
    %235 = vector.broadcast %234 : vector<1x1x192xf32> to vector<1x9x192xf32>
    %236 = arith.addf %231, %235 : vector<1x9x192xf32>
    %237 = vector.extract_strided_slice %236 {offsets = [0, 0, 0], sizes = [1, 9, 16], strides = [1, 1, 1]} : vector<1x9x192xf32> to vector<1x9x16xf32>
    %238 = vector.extract_strided_slice %236 {offsets = [0, 0, 64], sizes = [1, 9, 16], strides = [1, 1, 1]} : vector<1x9x192xf32> to vector<1x9x16xf32>
    %239 = vector.extract_strided_slice %236 {offsets = [0, 0, 128], sizes = [1, 9, 16], strides = [1, 1, 1]} : vector<1x9x192xf32> to vector<1x9x16xf32>
    %240 = arith.truncf %237 : vector<1x9x16xf32> to vector<1x9x16xbf16>
    %241 = arith.truncf %238 : vector<1x9x16xf32> to vector<1x9x16xbf16>
    %cst_86 = arith.constant dense<0.000000e+00> : vector<1x9x9xf32>
    %242 = tpu.matmul %240, %241, %cst_86 {dimension_numbers = #tpu.dot_dimension_numbers<[2], [2], [1], [1], [0, 0, 0, 1, 1, 1], [0], [0]>} : vector<1x9x16xbf16>, vector<1x9x16xbf16>, vector<1x9x9xf32> -> vector<1x9x9xf32>
    %cst_87 = arith.constant dense<0xFF800000> : vector<1x9xf32>
    %243 = vector.multi_reduction <maximumf>, %242, %cst_87 [2] : vector<1x9x9xf32> to vector<1x9xf32>
    %244 = vector.shape_cast %243 : vector<1x9xf32> to vector<1x9x1xf32>
    %245 = vector.broadcast %244 : vector<1x9x1xf32> to vector<1x9x9xf32>
    %246 = arith.subf %242, %245 : vector<1x9x9xf32>
    %247 = math.exp %246 : vector<1x9x9xf32>
    %cst_88 = arith.constant dense<0.000000e+00> : vector<1x9xf32>
    %248 = vector.multi_reduction <add>, %247, %cst_88 [2] : vector<1x9x9xf32> to vector<1x9xf32>
    %249 = vector.shape_cast %248 : vector<1x9xf32> to vector<1x9x1xf32>
    %250 = tpu.reciprocal %249 {approx = true} : vector<1x9x1xf32> -> vector<1x9x1xf32>
    %251 = vector.broadcast %250 : vector<1x9x1xf32> to vector<1x9x9xf32>
    %252 = arith.mulf %247, %251 : vector<1x9x9xf32>
    %253 = arith.truncf %252 : vector<1x9x9xf32> to vector<1x9x9xbf16>
    %254 = arith.truncf %239 : vector<1x9x16xf32> to vector<1x9x16xbf16>
    %cst_89 = arith.constant dense<0.000000e+00> : vector<1x9x16xf32>
    %255 = tpu.matmul %253, %254, %cst_89 {dimension_numbers = #tpu.dot_dimension_numbers<[2], [1], [1], [2], [0, 0, 0, 1, 1, 2], [0], [0]>} : vector<1x9x9xbf16>, vector<1x9x16xbf16>, vector<1x9x16xf32> -> vector<1x9x16xf32>
    %256 = vector.extract_strided_slice %5 {offsets = [1, 0, 0], sizes = [1, 64, 64], strides = [1, 1, 1]} : vector<3x64x64xf32> to vector<1x64x64xf32>
    %257 = vector.shape_cast %256 : vector<1x64x64xf32> to vector<64x64xf32>
    %258 = vector.extract_strided_slice %257 {offsets = [0, 0], sizes = [16, 64], strides = [1, 1]} : vector<64x64xf32> to vector<16x64xf32>
    %259 = arith.truncf %258 : vector<16x64xf32> to vector<16x64xbf16>
    %260 = vector.shape_cast %259 : vector<16x64xbf16> to vector<1x16x64xbf16>
    %261 = arith.truncf %255 : vector<1x9x16xf32> to vector<1x9x16xbf16>
    %cst_90 = arith.constant dense<0.000000e+00> : vector<1x9x64xf32>
    %262 = tpu.matmul %261, %260, %cst_90 {dimension_numbers = #tpu.dot_dimension_numbers<[2], [1], [1], [2], [0, 0, 0, 1, 1, 2], [0], [0]>} : vector<1x9x16xbf16>, vector<1x16x64xbf16>, vector<1x9x64xf32> -> vector<1x9x64xf32>
    %263 = vector.extract_strided_slice %236 {offsets = [0, 0, 16], sizes = [1, 9, 16], strides = [1, 1, 1]} : vector<1x9x192xf32> to vector<1x9x16xf32>
    %264 = vector.extract_strided_slice %236 {offsets = [0, 0, 80], sizes = [1, 9, 16], strides = [1, 1, 1]} : vector<1x9x192xf32> to vector<1x9x16xf32>
    %265 = vector.extract_strided_slice %236 {offsets = [0, 0, 144], sizes = [1, 9, 16], strides = [1, 1, 1]} : vector<1x9x192xf32> to vector<1x9x16xf32>
    %266 = arith.truncf %263 : vector<1x9x16xf32> to vector<1x9x16xbf16>
    %267 = arith.truncf %264 : vector<1x9x16xf32> to vector<1x9x16xbf16>
    %cst_91 = arith.constant dense<0.000000e+00> : vector<1x9x9xf32>
    %268 = tpu.matmul %266, %267, %cst_91 {dimension_numbers = #tpu.dot_dimension_numbers<[2], [2], [1], [1], [0, 0, 0, 1, 1, 1], [0], [0]>} : vector<1x9x16xbf16>, vector<1x9x16xbf16>, vector<1x9x9xf32> -> vector<1x9x9xf32>
    %cst_92 = arith.constant dense<0xFF800000> : vector<1x9xf32>
    %269 = vector.multi_reduction <maximumf>, %268, %cst_92 [2] : vector<1x9x9xf32> to vector<1x9xf32>
    %270 = vector.shape_cast %269 : vector<1x9xf32> to vector<1x9x1xf32>
    %271 = vector.broadcast %270 : vector<1x9x1xf32> to vector<1x9x9xf32>
    %272 = arith.subf %268, %271 : vector<1x9x9xf32>
    %273 = math.exp %272 : vector<1x9x9xf32>
    %cst_93 = arith.constant dense<0.000000e+00> : vector<1x9xf32>
    %274 = vector.multi_reduction <add>, %273, %cst_93 [2] : vector<1x9x9xf32> to vector<1x9xf32>
    %275 = vector.shape_cast %274 : vector<1x9xf32> to vector<1x9x1xf32>
    %276 = tpu.reciprocal %275 {approx = true} : vector<1x9x1xf32> -> vector<1x9x1xf32>
    %277 = vector.broadcast %276 : vector<1x9x1xf32> to vector<1x9x9xf32>
    %278 = arith.mulf %273, %277 : vector<1x9x9xf32>
    %279 = arith.truncf %278 : vector<1x9x9xf32> to vector<1x9x9xbf16>
    %280 = arith.truncf %265 : vector<1x9x16xf32> to vector<1x9x16xbf16>
    %cst_94 = arith.constant dense<0.000000e+00> : vector<1x9x16xf32>
    %281 = tpu.matmul %279, %280, %cst_94 {dimension_numbers = #tpu.dot_dimension_numbers<[2], [1], [1], [2], [0, 0, 0, 1, 1, 2], [0], [0]>} : vector<1x9x9xbf16>, vector<1x9x16xbf16>, vector<1x9x16xf32> -> vector<1x9x16xf32>
    %282 = vector.extract_strided_slice %5 {offsets = [1, 0, 0], sizes = [1, 64, 64], strides = [1, 1, 1]} : vector<3x64x64xf32> to vector<1x64x64xf32>
    %283 = vector.shape_cast %282 : vector<1x64x64xf32> to vector<64x64xf32>
    %284 = vector.extract_strided_slice %283 {offsets = [16, 0], sizes = [16, 64], strides = [1, 1]} : vector<64x64xf32> to vector<16x64xf32>
    %285 = arith.truncf %284 : vector<16x64xf32> to vector<16x64xbf16>
    %286 = vector.shape_cast %285 : vector<16x64xbf16> to vector<1x16x64xbf16>
    %287 = arith.truncf %281 : vector<1x9x16xf32> to vector<1x9x16xbf16>
    %cst_95 = arith.constant dense<0.000000e+00> : vector<1x9x64xf32>
    %288 = tpu.matmul %287, %286, %cst_95 {dimension_numbers = #tpu.dot_dimension_numbers<[2], [1], [1], [2], [0, 0, 0, 1, 1, 2], [0], [0]>} : vector<1x9x16xbf16>, vector<1x16x64xbf16>, vector<1x9x64xf32> -> vector<1x9x64xf32>
    %289 = vector.extract_strided_slice %236 {offsets = [0, 0, 32], sizes = [1, 9, 16], strides = [1, 1, 1]} : vector<1x9x192xf32> to vector<1x9x16xf32>
    %290 = vector.extract_strided_slice %236 {offsets = [0, 0, 96], sizes = [1, 9, 16], strides = [1, 1, 1]} : vector<1x9x192xf32> to vector<1x9x16xf32>
    %291 = vector.extract_strided_slice %236 {offsets = [0, 0, 160], sizes = [1, 9, 16], strides = [1, 1, 1]} : vector<1x9x192xf32> to vector<1x9x16xf32>
    %292 = arith.truncf %289 : vector<1x9x16xf32> to vector<1x9x16xbf16>
    %293 = arith.truncf %290 : vector<1x9x16xf32> to vector<1x9x16xbf16>
    %cst_96 = arith.constant dense<0.000000e+00> : vector<1x9x9xf32>
    %294 = tpu.matmul %292, %293, %cst_96 {dimension_numbers = #tpu.dot_dimension_numbers<[2], [2], [1], [1], [0, 0, 0, 1, 1, 1], [0], [0]>} : vector<1x9x16xbf16>, vector<1x9x16xbf16>, vector<1x9x9xf32> -> vector<1x9x9xf32>
    %cst_97 = arith.constant dense<0xFF800000> : vector<1x9xf32>
    %295 = vector.multi_reduction <maximumf>, %294, %cst_97 [2] : vector<1x9x9xf32> to vector<1x9xf32>
    %296 = vector.shape_cast %295 : vector<1x9xf32> to vector<1x9x1xf32>
    %297 = vector.broadcast %296 : vector<1x9x1xf32> to vector<1x9x9xf32>
    %298 = arith.subf %294, %297 : vector<1x9x9xf32>
    %299 = math.exp %298 : vector<1x9x9xf32>
    %cst_98 = arith.constant dense<0.000000e+00> : vector<1x9xf32>
    %300 = vector.multi_reduction <add>, %299, %cst_98 [2] : vector<1x9x9xf32> to vector<1x9xf32>
    %301 = vector.shape_cast %300 : vector<1x9xf32> to vector<1x9x1xf32>
    %302 = tpu.reciprocal %301 {approx = true} : vector<1x9x1xf32> -> vector<1x9x1xf32>
    %303 = vector.broadcast %302 : vector<1x9x1xf32> to vector<1x9x9xf32>
    %304 = arith.mulf %299, %303 : vector<1x9x9xf32>
    %305 = arith.truncf %304 : vector<1x9x9xf32> to vector<1x9x9xbf16>
    %306 = arith.truncf %291 : vector<1x9x16xf32> to vector<1x9x16xbf16>
    %cst_99 = arith.constant dense<0.000000e+00> : vector<1x9x16xf32>
    %307 = tpu.matmul %305, %306, %cst_99 {dimension_numbers = #tpu.dot_dimension_numbers<[2], [1], [1], [2], [0, 0, 0, 1, 1, 2], [0], [0]>} : vector<1x9x9xbf16>, vector<1x9x16xbf16>, vector<1x9x16xf32> -> vector<1x9x16xf32>
    %308 = vector.extract_strided_slice %5 {offsets = [1, 0, 0], sizes = [1, 64, 64], strides = [1, 1, 1]} : vector<3x64x64xf32> to vector<1x64x64xf32>
    %309 = vector.shape_cast %308 : vector<1x64x64xf32> to vector<64x64xf32>
    %310 = vector.extract_strided_slice %309 {offsets = [32, 0], sizes = [16, 64], strides = [1, 1]} : vector<64x64xf32> to vector<16x64xf32>
    %311 = arith.truncf %310 : vector<16x64xf32> to vector<16x64xbf16>
    %312 = vector.shape_cast %311 : vector<16x64xbf16> to vector<1x16x64xbf16>
    %313 = arith.truncf %307 : vector<1x9x16xf32> to vector<1x9x16xbf16>
    %cst_100 = arith.constant dense<0.000000e+00> : vector<1x9x64xf32>
    %314 = tpu.matmul %313, %312, %cst_100 {dimension_numbers = #tpu.dot_dimension_numbers<[2], [1], [1], [2], [0, 0, 0, 1, 1, 2], [0], [0]>} : vector<1x9x16xbf16>, vector<1x16x64xbf16>, vector<1x9x64xf32> -> vector<1x9x64xf32>
    %315 = vector.extract_strided_slice %236 {offsets = [0, 0, 48], sizes = [1, 9, 16], strides = [1, 1, 1]} : vector<1x9x192xf32> to vector<1x9x16xf32>
    %316 = vector.extract_strided_slice %236 {offsets = [0, 0, 112], sizes = [1, 9, 16], strides = [1, 1, 1]} : vector<1x9x192xf32> to vector<1x9x16xf32>
    %317 = vector.extract_strided_slice %236 {offsets = [0, 0, 176], sizes = [1, 9, 16], strides = [1, 1, 1]} : vector<1x9x192xf32> to vector<1x9x16xf32>
    %318 = arith.truncf %315 : vector<1x9x16xf32> to vector<1x9x16xbf16>
    %319 = arith.truncf %316 : vector<1x9x16xf32> to vector<1x9x16xbf16>
    %cst_101 = arith.constant dense<0.000000e+00> : vector<1x9x9xf32>
    %320 = tpu.matmul %318, %319, %cst_101 {dimension_numbers = #tpu.dot_dimension_numbers<[2], [2], [1], [1], [0, 0, 0, 1, 1, 1], [0], [0]>} : vector<1x9x16xbf16>, vector<1x9x16xbf16>, vector<1x9x9xf32> -> vector<1x9x9xf32>
    %cst_102 = arith.constant dense<0xFF800000> : vector<1x9xf32>
    %321 = vector.multi_reduction <maximumf>, %320, %cst_102 [2] : vector<1x9x9xf32> to vector<1x9xf32>
    %322 = vector.shape_cast %321 : vector<1x9xf32> to vector<1x9x1xf32>
    %323 = vector.broadcast %322 : vector<1x9x1xf32> to vector<1x9x9xf32>
    %324 = arith.subf %320, %323 : vector<1x9x9xf32>
    %325 = math.exp %324 : vector<1x9x9xf32>
    %cst_103 = arith.constant dense<0.000000e+00> : vector<1x9xf32>
    %326 = vector.multi_reduction <add>, %325, %cst_103 [2] : vector<1x9x9xf32> to vector<1x9xf32>
    %327 = vector.shape_cast %326 : vector<1x9xf32> to vector<1x9x1xf32>
    %328 = tpu.reciprocal %327 {approx = true} : vector<1x9x1xf32> -> vector<1x9x1xf32>
    %329 = vector.broadcast %328 : vector<1x9x1xf32> to vector<1x9x9xf32>
    %330 = arith.mulf %325, %329 : vector<1x9x9xf32>
    %331 = arith.truncf %330 : vector<1x9x9xf32> to vector<1x9x9xbf16>
    %332 = arith.truncf %317 : vector<1x9x16xf32> to vector<1x9x16xbf16>
    %cst_104 = arith.constant dense<0.000000e+00> : vector<1x9x16xf32>
    %333 = tpu.matmul %331, %332, %cst_104 {dimension_numbers = #tpu.dot_dimension_numbers<[2], [1], [1], [2], [0, 0, 0, 1, 1, 2], [0], [0]>} : vector<1x9x9xbf16>, vector<1x9x16xbf16>, vector<1x9x16xf32> -> vector<1x9x16xf32>
    %334 = vector.extract_strided_slice %5 {offsets = [1, 0, 0], sizes = [1, 64, 64], strides = [1, 1, 1]} : vector<3x64x64xf32> to vector<1x64x64xf32>
    %335 = vector.shape_cast %334 : vector<1x64x64xf32> to vector<64x64xf32>
    %336 = vector.extract_strided_slice %335 {offsets = [48, 0], sizes = [16, 64], strides = [1, 1]} : vector<64x64xf32> to vector<16x64xf32>
    %337 = arith.truncf %336 : vector<16x64xf32> to vector<16x64xbf16>
    %338 = vector.shape_cast %337 : vector<16x64xbf16> to vector<1x16x64xbf16>
    %339 = arith.truncf %333 : vector<1x9x16xf32> to vector<1x9x16xbf16>
    %cst_105 = arith.constant dense<0.000000e+00> : vector<1x9x64xf32>
    %340 = tpu.matmul %339, %338, %cst_105 {dimension_numbers = #tpu.dot_dimension_numbers<[2], [1], [1], [2], [0, 0, 0, 1, 1, 2], [0], [0]>} : vector<1x9x16xbf16>, vector<1x16x64xbf16>, vector<1x9x64xf32> -> vector<1x9x64xf32>
    %341 = arith.addf %262, %288 : vector<1x9x64xf32>
    %342 = arith.addf %341, %314 : vector<1x9x64xf32>
    %343 = arith.addf %342, %340 : vector<1x9x64xf32>
    %344 = vector.extract_strided_slice %6 {offsets = [1, 0, 0], sizes = [1, 1, 64], strides = [1, 1, 1]} : vector<3x1x64xf32> to vector<1x1x64xf32>
    %345 = vector.shape_cast %344 : vector<1x1x64xf32> to vector<1x64xf32>
    %346 = vector.shape_cast %345 : vector<1x64xf32> to vector<1x1x64xf32>
    %347 = vector.broadcast %346 : vector<1x1x64xf32> to vector<1x9x64xf32>
    %348 = arith.addf %343, %347 : vector<1x9x64xf32>
    %349 = arith.addf %225, %348 : vector<1x9x64xf32>
    %350 = vector.extract_strided_slice %7 {offsets = [1, 0, 0], sizes = [1, 1, 64], strides = [1, 1, 1]} : vector<3x1x64xf32> to vector<1x1x64xf32>
    %351 = vector.shape_cast %350 : vector<1x1x64xf32> to vector<1x64xf32>
    %352 = vector.extract_strided_slice %8 {offsets = [1, 0, 0], sizes = [1, 1, 64], strides = [1, 1, 1]} : vector<3x1x64xf32> to vector<1x1x64xf32>
    %353 = vector.shape_cast %352 : vector<1x1x64xf32> to vector<1x64xf32>
    %cst_106 = arith.constant dense<0.000000e+00> : vector<1x9xf32>
    %354 = vector.multi_reduction <add>, %349, %cst_106 [2] : vector<1x9x64xf32> to vector<1x9xf32>
    %355 = vector.shape_cast %354 : vector<1x9xf32> to vector<1x9x1xf32>
    %cst_107 = arith.constant 1.562500e-02 : f32
    %356 = vector.broadcast %cst_107 : f32 to vector<1x9x1xf32>
    %357 = arith.mulf %355, %356 : vector<1x9x1xf32>
    %358 = vector.broadcast %357 : vector<1x9x1xf32> to vector<1x9x64xf32>
    %359 = arith.subf %349, %358 : vector<1x9x64xf32>
    %360 = arith.mulf %359, %359 : vector<1x9x64xf32>
    %cst_108 = arith.constant dense<0.000000e+00> : vector<1x9xf32>
    %361 = vector.multi_reduction <add>, %360, %cst_108 [2] : vector<1x9x64xf32> to vector<1x9xf32>
    %362 = vector.shape_cast %361 : vector<1x9xf32> to vector<1x9x1xf32>
    %cst_109 = arith.constant 1.562500e-02 : f32
    %363 = vector.broadcast %cst_109 : f32 to vector<1x9x1xf32>
    %364 = arith.mulf %362, %363 : vector<1x9x1xf32>
    %cst_110 = arith.constant 9.99999974E-6 : f32
    %365 = vector.broadcast %cst_110 : f32 to vector<1x9x1xf32>
    %366 = arith.addf %364, %365 : vector<1x9x1xf32>
    %367 = math.rsqrt %366 : vector<1x9x1xf32>
    %368 = vector.broadcast %367 : vector<1x9x1xf32> to vector<1x9x64xf32>
    %369 = arith.mulf %359, %368 : vector<1x9x64xf32>
    %370 = vector.shape_cast %351 : vector<1x64xf32> to vector<1x1x64xf32>
    %371 = vector.broadcast %370 : vector<1x1x64xf32> to vector<1x9x64xf32>
    %372 = arith.mulf %369, %371 : vector<1x9x64xf32>
    %373 = vector.shape_cast %353 : vector<1x64xf32> to vector<1x1x64xf32>
    %374 = vector.broadcast %373 : vector<1x1x64xf32> to vector<1x9x64xf32>
    %375 = arith.addf %372, %374 : vector<1x9x64xf32>
    %376 = vector.extract_strided_slice %11 {offsets = [1, 0, 0], sizes = [1, 64, 128], strides = [1, 1, 1]} : vector<3x64x128xf32> to vector<1x64x128xf32>
    %377 = vector.shape_cast %376 : vector<1x64x128xf32> to vector<64x128xf32>
    %378 = arith.truncf %377 : vector<64x128xf32> to vector<64x128xbf16>
    %379 = vector.shape_cast %378 : vector<64x128xbf16> to vector<1x64x128xbf16>
    %380 = arith.truncf %375 : vector<1x9x64xf32> to vector<1x9x64xbf16>
    %cst_111 = arith.constant dense<0.000000e+00> : vector<1x9x128xf32>
    %381 = tpu.matmul %380, %379, %cst_111 {dimension_numbers = #tpu.dot_dimension_numbers<[2], [1], [1], [2], [0, 0, 0, 1, 1, 2], [0], [0]>} : vector<1x9x64xbf16>, vector<1x64x128xbf16>, vector<1x9x128xf32> -> vector<1x9x128xf32>
    %382 = vector.extract_strided_slice %12 {offsets = [1, 0, 0], sizes = [1, 1, 128], strides = [1, 1, 1]} : vector<3x1x128xf32> to vector<1x1x128xf32>
    %383 = vector.shape_cast %382 : vector<1x1x128xf32> to vector<1x128xf32>
    %384 = vector.shape_cast %383 : vector<1x128xf32> to vector<1x1x128xf32>
    %385 = vector.broadcast %384 : vector<1x1x128xf32> to vector<1x9x128xf32>
    %386 = arith.addf %381, %385 : vector<1x9x128xf32>
    %cst_112 = arith.constant 0.000000e+00 : f32
    %387 = vector.broadcast %cst_112 : f32 to vector<1x9x128xf32>
    %388 = arith.maximumf %386, %387 : vector<1x9x128xf32>
    %389 = vector.extract_strided_slice %13 {offsets = [1, 0, 0], sizes = [1, 128, 64], strides = [1, 1, 1]} : vector<3x128x64xf32> to vector<1x128x64xf32>
    %390 = vector.shape_cast %389 : vector<1x128x64xf32> to vector<128x64xf32>
    %391 = arith.truncf %390 : vector<128x64xf32> to vector<128x64xbf16>
    %392 = vector.shape_cast %391 : vector<128x64xbf16> to vector<1x128x64xbf16>
    %393 = arith.truncf %388 : vector<1x9x128xf32> to vector<1x9x128xbf16>
    %cst_113 = arith.constant dense<0.000000e+00> : vector<1x9x64xf32>
    %394 = tpu.matmul %393, %392, %cst_113 {dimension_numbers = #tpu.dot_dimension_numbers<[2], [1], [1], [2], [0, 0, 0, 1, 1, 2], [0], [0]>} : vector<1x9x128xbf16>, vector<1x128x64xbf16>, vector<1x9x64xf32> -> vector<1x9x64xf32>
    %395 = vector.extract_strided_slice %14 {offsets = [1, 0, 0], sizes = [1, 1, 64], strides = [1, 1, 1]} : vector<3x1x64xf32> to vector<1x1x64xf32>
    %396 = vector.shape_cast %395 : vector<1x1x64xf32> to vector<1x64xf32>
    %397 = vector.shape_cast %396 : vector<1x64xf32> to vector<1x1x64xf32>
    %398 = vector.broadcast %397 : vector<1x1x64xf32> to vector<1x9x64xf32>
    %399 = arith.addf %394, %398 : vector<1x9x64xf32>
    %400 = arith.addf %375, %399 : vector<1x9x64xf32>
    %401 = vector.extract_strided_slice %9 {offsets = [1, 0, 0], sizes = [1, 1, 64], strides = [1, 1, 1]} : vector<3x1x64xf32> to vector<1x1x64xf32>
    %402 = vector.shape_cast %401 : vector<1x1x64xf32> to vector<1x64xf32>
    %403 = vector.extract_strided_slice %10 {offsets = [1, 0, 0], sizes = [1, 1, 64], strides = [1, 1, 1]} : vector<3x1x64xf32> to vector<1x1x64xf32>
    %404 = vector.shape_cast %403 : vector<1x1x64xf32> to vector<1x64xf32>
    %cst_114 = arith.constant dense<0.000000e+00> : vector<1x9xf32>
    %405 = vector.multi_reduction <add>, %400, %cst_114 [2] : vector<1x9x64xf32> to vector<1x9xf32>
    %406 = vector.shape_cast %405 : vector<1x9xf32> to vector<1x9x1xf32>
    %cst_115 = arith.constant 1.562500e-02 : f32
    %407 = vector.broadcast %cst_115 : f32 to vector<1x9x1xf32>
    %408 = arith.mulf %406, %407 : vector<1x9x1xf32>
    %409 = vector.broadcast %408 : vector<1x9x1xf32> to vector<1x9x64xf32>
    %410 = arith.subf %400, %409 : vector<1x9x64xf32>
    %411 = arith.mulf %410, %410 : vector<1x9x64xf32>
    %cst_116 = arith.constant dense<0.000000e+00> : vector<1x9xf32>
    %412 = vector.multi_reduction <add>, %411, %cst_116 [2] : vector<1x9x64xf32> to vector<1x9xf32>
    %413 = vector.shape_cast %412 : vector<1x9xf32> to vector<1x9x1xf32>
    %cst_117 = arith.constant 1.562500e-02 : f32
    %414 = vector.broadcast %cst_117 : f32 to vector<1x9x1xf32>
    %415 = arith.mulf %413, %414 : vector<1x9x1xf32>
    %cst_118 = arith.constant 9.99999974E-6 : f32
    %416 = vector.broadcast %cst_118 : f32 to vector<1x9x1xf32>
    %417 = arith.addf %415, %416 : vector<1x9x1xf32>
    %418 = math.rsqrt %417 : vector<1x9x1xf32>
    %419 = vector.broadcast %418 : vector<1x9x1xf32> to vector<1x9x64xf32>
    %420 = arith.mulf %410, %419 : vector<1x9x64xf32>
    %421 = vector.shape_cast %402 : vector<1x64xf32> to vector<1x1x64xf32>
    %422 = vector.broadcast %421 : vector<1x1x64xf32> to vector<1x9x64xf32>
    %423 = arith.mulf %420, %422 : vector<1x9x64xf32>
    %424 = vector.shape_cast %404 : vector<1x64xf32> to vector<1x1x64xf32>
    %425 = vector.broadcast %424 : vector<1x1x64xf32> to vector<1x9x64xf32>
    %426 = arith.addf %423, %425 : vector<1x9x64xf32>
    %427 = vector.extract_strided_slice %3 {offsets = [2, 0, 0], sizes = [1, 64, 192], strides = [1, 1, 1]} : vector<3x64x192xf32> to vector<1x64x192xf32>
    %428 = vector.shape_cast %427 : vector<1x64x192xf32> to vector<64x192xf32>
    %429 = arith.truncf %428 : vector<64x192xf32> to vector<64x192xbf16>
    %430 = vector.shape_cast %429 : vector<64x192xbf16> to vector<1x64x192xbf16>
    %431 = arith.truncf %426 : vector<1x9x64xf32> to vector<1x9x64xbf16>
    %cst_119 = arith.constant dense<0.000000e+00> : vector<1x9x192xf32>
    %432 = tpu.matmul %431, %430, %cst_119 {dimension_numbers = #tpu.dot_dimension_numbers<[2], [1], [1], [2], [0, 0, 0, 1, 1, 2], [0], [0]>} : vector<1x9x64xbf16>, vector<1x64x192xbf16>, vector<1x9x192xf32> -> vector<1x9x192xf32>
    %433 = vector.extract_strided_slice %4 {offsets = [2, 0, 0], sizes = [1, 1, 192], strides = [1, 1, 1]} : vector<3x1x192xf32> to vector<1x1x192xf32>
    %434 = vector.shape_cast %433 : vector<1x1x192xf32> to vector<1x192xf32>
    %435 = vector.shape_cast %434 : vector<1x192xf32> to vector<1x1x192xf32>
    %436 = vector.broadcast %435 : vector<1x1x192xf32> to vector<1x9x192xf32>
    %437 = arith.addf %432, %436 : vector<1x9x192xf32>
    %438 = vector.extract_strided_slice %437 {offsets = [0, 0, 0], sizes = [1, 9, 16], strides = [1, 1, 1]} : vector<1x9x192xf32> to vector<1x9x16xf32>
    %439 = vector.extract_strided_slice %437 {offsets = [0, 0, 64], sizes = [1, 9, 16], strides = [1, 1, 1]} : vector<1x9x192xf32> to vector<1x9x16xf32>
    %440 = vector.extract_strided_slice %437 {offsets = [0, 0, 128], sizes = [1, 9, 16], strides = [1, 1, 1]} : vector<1x9x192xf32> to vector<1x9x16xf32>
    %441 = arith.truncf %438 : vector<1x9x16xf32> to vector<1x9x16xbf16>
    %442 = arith.truncf %439 : vector<1x9x16xf32> to vector<1x9x16xbf16>
    %cst_120 = arith.constant dense<0.000000e+00> : vector<1x9x9xf32>
    %443 = tpu.matmul %441, %442, %cst_120 {dimension_numbers = #tpu.dot_dimension_numbers<[2], [2], [1], [1], [0, 0, 0, 1, 1, 1], [0], [0]>} : vector<1x9x16xbf16>, vector<1x9x16xbf16>, vector<1x9x9xf32> -> vector<1x9x9xf32>
    %cst_121 = arith.constant dense<0xFF800000> : vector<1x9xf32>
    %444 = vector.multi_reduction <maximumf>, %443, %cst_121 [2] : vector<1x9x9xf32> to vector<1x9xf32>
    %445 = vector.shape_cast %444 : vector<1x9xf32> to vector<1x9x1xf32>
    %446 = vector.broadcast %445 : vector<1x9x1xf32> to vector<1x9x9xf32>
    %447 = arith.subf %443, %446 : vector<1x9x9xf32>
    %448 = math.exp %447 : vector<1x9x9xf32>
    %cst_122 = arith.constant dense<0.000000e+00> : vector<1x9xf32>
    %449 = vector.multi_reduction <add>, %448, %cst_122 [2] : vector<1x9x9xf32> to vector<1x9xf32>
    %450 = vector.shape_cast %449 : vector<1x9xf32> to vector<1x9x1xf32>
    %451 = tpu.reciprocal %450 {approx = true} : vector<1x9x1xf32> -> vector<1x9x1xf32>
    %452 = vector.broadcast %451 : vector<1x9x1xf32> to vector<1x9x9xf32>
    %453 = arith.mulf %448, %452 : vector<1x9x9xf32>
    %454 = arith.truncf %453 : vector<1x9x9xf32> to vector<1x9x9xbf16>
    %455 = arith.truncf %440 : vector<1x9x16xf32> to vector<1x9x16xbf16>
    %cst_123 = arith.constant dense<0.000000e+00> : vector<1x9x16xf32>
    %456 = tpu.matmul %454, %455, %cst_123 {dimension_numbers = #tpu.dot_dimension_numbers<[2], [1], [1], [2], [0, 0, 0, 1, 1, 2], [0], [0]>} : vector<1x9x9xbf16>, vector<1x9x16xbf16>, vector<1x9x16xf32> -> vector<1x9x16xf32>
    %457 = vector.extract_strided_slice %5 {offsets = [2, 0, 0], sizes = [1, 64, 64], strides = [1, 1, 1]} : vector<3x64x64xf32> to vector<1x64x64xf32>
    %458 = vector.shape_cast %457 : vector<1x64x64xf32> to vector<64x64xf32>
    %459 = vector.extract_strided_slice %458 {offsets = [0, 0], sizes = [16, 64], strides = [1, 1]} : vector<64x64xf32> to vector<16x64xf32>
    %460 = arith.truncf %459 : vector<16x64xf32> to vector<16x64xbf16>
    %461 = vector.shape_cast %460 : vector<16x64xbf16> to vector<1x16x64xbf16>
    %462 = arith.truncf %456 : vector<1x9x16xf32> to vector<1x9x16xbf16>
    %cst_124 = arith.constant dense<0.000000e+00> : vector<1x9x64xf32>
    %463 = tpu.matmul %462, %461, %cst_124 {dimension_numbers = #tpu.dot_dimension_numbers<[2], [1], [1], [2], [0, 0, 0, 1, 1, 2], [0], [0]>} : vector<1x9x16xbf16>, vector<1x16x64xbf16>, vector<1x9x64xf32> -> vector<1x9x64xf32>
    %464 = vector.extract_strided_slice %437 {offsets = [0, 0, 16], sizes = [1, 9, 16], strides = [1, 1, 1]} : vector<1x9x192xf32> to vector<1x9x16xf32>
    %465 = vector.extract_strided_slice %437 {offsets = [0, 0, 80], sizes = [1, 9, 16], strides = [1, 1, 1]} : vector<1x9x192xf32> to vector<1x9x16xf32>
    %466 = vector.extract_strided_slice %437 {offsets = [0, 0, 144], sizes = [1, 9, 16], strides = [1, 1, 1]} : vector<1x9x192xf32> to vector<1x9x16xf32>
    %467 = arith.truncf %464 : vector<1x9x16xf32> to vector<1x9x16xbf16>
    %468 = arith.truncf %465 : vector<1x9x16xf32> to vector<1x9x16xbf16>
    %cst_125 = arith.constant dense<0.000000e+00> : vector<1x9x9xf32>
    %469 = tpu.matmul %467, %468, %cst_125 {dimension_numbers = #tpu.dot_dimension_numbers<[2], [2], [1], [1], [0, 0, 0, 1, 1, 1], [0], [0]>} : vector<1x9x16xbf16>, vector<1x9x16xbf16>, vector<1x9x9xf32> -> vector<1x9x9xf32>
    %cst_126 = arith.constant dense<0xFF800000> : vector<1x9xf32>
    %470 = vector.multi_reduction <maximumf>, %469, %cst_126 [2] : vector<1x9x9xf32> to vector<1x9xf32>
    %471 = vector.shape_cast %470 : vector<1x9xf32> to vector<1x9x1xf32>
    %472 = vector.broadcast %471 : vector<1x9x1xf32> to vector<1x9x9xf32>
    %473 = arith.subf %469, %472 : vector<1x9x9xf32>
    %474 = math.exp %473 : vector<1x9x9xf32>
    %cst_127 = arith.constant dense<0.000000e+00> : vector<1x9xf32>
    %475 = vector.multi_reduction <add>, %474, %cst_127 [2] : vector<1x9x9xf32> to vector<1x9xf32>
    %476 = vector.shape_cast %475 : vector<1x9xf32> to vector<1x9x1xf32>
    %477 = tpu.reciprocal %476 {approx = true} : vector<1x9x1xf32> -> vector<1x9x1xf32>
    %478 = vector.broadcast %477 : vector<1x9x1xf32> to vector<1x9x9xf32>
    %479 = arith.mulf %474, %478 : vector<1x9x9xf32>
    %480 = arith.truncf %479 : vector<1x9x9xf32> to vector<1x9x9xbf16>
    %481 = arith.truncf %466 : vector<1x9x16xf32> to vector<1x9x16xbf16>
    %cst_128 = arith.constant dense<0.000000e+00> : vector<1x9x16xf32>
    %482 = tpu.matmul %480, %481, %cst_128 {dimension_numbers = #tpu.dot_dimension_numbers<[2], [1], [1], [2], [0, 0, 0, 1, 1, 2], [0], [0]>} : vector<1x9x9xbf16>, vector<1x9x16xbf16>, vector<1x9x16xf32> -> vector<1x9x16xf32>
    %483 = vector.extract_strided_slice %5 {offsets = [2, 0, 0], sizes = [1, 64, 64], strides = [1, 1, 1]} : vector<3x64x64xf32> to vector<1x64x64xf32>
    %484 = vector.shape_cast %483 : vector<1x64x64xf32> to vector<64x64xf32>
    %485 = vector.extract_strided_slice %484 {offsets = [16, 0], sizes = [16, 64], strides = [1, 1]} : vector<64x64xf32> to vector<16x64xf32>
    %486 = arith.truncf %485 : vector<16x64xf32> to vector<16x64xbf16>
    %487 = vector.shape_cast %486 : vector<16x64xbf16> to vector<1x16x64xbf16>
    %488 = arith.truncf %482 : vector<1x9x16xf32> to vector<1x9x16xbf16>
    %cst_129 = arith.constant dense<0.000000e+00> : vector<1x9x64xf32>
    %489 = tpu.matmul %488, %487, %cst_129 {dimension_numbers = #tpu.dot_dimension_numbers<[2], [1], [1], [2], [0, 0, 0, 1, 1, 2], [0], [0]>} : vector<1x9x16xbf16>, vector<1x16x64xbf16>, vector<1x9x64xf32> -> vector<1x9x64xf32>
    %490 = vector.extract_strided_slice %437 {offsets = [0, 0, 32], sizes = [1, 9, 16], strides = [1, 1, 1]} : vector<1x9x192xf32> to vector<1x9x16xf32>
    %491 = vector.extract_strided_slice %437 {offsets = [0, 0, 96], sizes = [1, 9, 16], strides = [1, 1, 1]} : vector<1x9x192xf32> to vector<1x9x16xf32>
    %492 = vector.extract_strided_slice %437 {offsets = [0, 0, 160], sizes = [1, 9, 16], strides = [1, 1, 1]} : vector<1x9x192xf32> to vector<1x9x16xf32>
    %493 = arith.truncf %490 : vector<1x9x16xf32> to vector<1x9x16xbf16>
    %494 = arith.truncf %491 : vector<1x9x16xf32> to vector<1x9x16xbf16>
    %cst_130 = arith.constant dense<0.000000e+00> : vector<1x9x9xf32>
    %495 = tpu.matmul %493, %494, %cst_130 {dimension_numbers = #tpu.dot_dimension_numbers<[2], [2], [1], [1], [0, 0, 0, 1, 1, 1], [0], [0]>} : vector<1x9x16xbf16>, vector<1x9x16xbf16>, vector<1x9x9xf32> -> vector<1x9x9xf32>
    %cst_131 = arith.constant dense<0xFF800000> : vector<1x9xf32>
    %496 = vector.multi_reduction <maximumf>, %495, %cst_131 [2] : vector<1x9x9xf32> to vector<1x9xf32>
    %497 = vector.shape_cast %496 : vector<1x9xf32> to vector<1x9x1xf32>
    %498 = vector.broadcast %497 : vector<1x9x1xf32> to vector<1x9x9xf32>
    %499 = arith.subf %495, %498 : vector<1x9x9xf32>
    %500 = math.exp %499 : vector<1x9x9xf32>
    %cst_132 = arith.constant dense<0.000000e+00> : vector<1x9xf32>
    %501 = vector.multi_reduction <add>, %500, %cst_132 [2] : vector<1x9x9xf32> to vector<1x9xf32>
    %502 = vector.shape_cast %501 : vector<1x9xf32> to vector<1x9x1xf32>
    %503 = tpu.reciprocal %502 {approx = true} : vector<1x9x1xf32> -> vector<1x9x1xf32>
    %504 = vector.broadcast %503 : vector<1x9x1xf32> to vector<1x9x9xf32>
    %505 = arith.mulf %500, %504 : vector<1x9x9xf32>
    %506 = arith.truncf %505 : vector<1x9x9xf32> to vector<1x9x9xbf16>
    %507 = arith.truncf %492 : vector<1x9x16xf32> to vector<1x9x16xbf16>
    %cst_133 = arith.constant dense<0.000000e+00> : vector<1x9x16xf32>
    %508 = tpu.matmul %506, %507, %cst_133 {dimension_numbers = #tpu.dot_dimension_numbers<[2], [1], [1], [2], [0, 0, 0, 1, 1, 2], [0], [0]>} : vector<1x9x9xbf16>, vector<1x9x16xbf16>, vector<1x9x16xf32> -> vector<1x9x16xf32>
    %509 = vector.extract_strided_slice %5 {offsets = [2, 0, 0], sizes = [1, 64, 64], strides = [1, 1, 1]} : vector<3x64x64xf32> to vector<1x64x64xf32>
    %510 = vector.shape_cast %509 : vector<1x64x64xf32> to vector<64x64xf32>
    %511 = vector.extract_strided_slice %510 {offsets = [32, 0], sizes = [16, 64], strides = [1, 1]} : vector<64x64xf32> to vector<16x64xf32>
    %512 = arith.truncf %511 : vector<16x64xf32> to vector<16x64xbf16>
    %513 = vector.shape_cast %512 : vector<16x64xbf16> to vector<1x16x64xbf16>
    %514 = arith.truncf %508 : vector<1x9x16xf32> to vector<1x9x16xbf16>
    %cst_134 = arith.constant dense<0.000000e+00> : vector<1x9x64xf32>
    %515 = tpu.matmul %514, %513, %cst_134 {dimension_numbers = #tpu.dot_dimension_numbers<[2], [1], [1], [2], [0, 0, 0, 1, 1, 2], [0], [0]>} : vector<1x9x16xbf16>, vector<1x16x64xbf16>, vector<1x9x64xf32> -> vector<1x9x64xf32>
    %516 = vector.extract_strided_slice %437 {offsets = [0, 0, 48], sizes = [1, 9, 16], strides = [1, 1, 1]} : vector<1x9x192xf32> to vector<1x9x16xf32>
    %517 = vector.extract_strided_slice %437 {offsets = [0, 0, 112], sizes = [1, 9, 16], strides = [1, 1, 1]} : vector<1x9x192xf32> to vector<1x9x16xf32>
    %518 = vector.extract_strided_slice %437 {offsets = [0, 0, 176], sizes = [1, 9, 16], strides = [1, 1, 1]} : vector<1x9x192xf32> to vector<1x9x16xf32>
    %519 = arith.truncf %516 : vector<1x9x16xf32> to vector<1x9x16xbf16>
    %520 = arith.truncf %517 : vector<1x9x16xf32> to vector<1x9x16xbf16>
    %cst_135 = arith.constant dense<0.000000e+00> : vector<1x9x9xf32>
    %521 = tpu.matmul %519, %520, %cst_135 {dimension_numbers = #tpu.dot_dimension_numbers<[2], [2], [1], [1], [0, 0, 0, 1, 1, 1], [0], [0]>} : vector<1x9x16xbf16>, vector<1x9x16xbf16>, vector<1x9x9xf32> -> vector<1x9x9xf32>
    %cst_136 = arith.constant dense<0xFF800000> : vector<1x9xf32>
    %522 = vector.multi_reduction <maximumf>, %521, %cst_136 [2] : vector<1x9x9xf32> to vector<1x9xf32>
    %523 = vector.shape_cast %522 : vector<1x9xf32> to vector<1x9x1xf32>
    %524 = vector.broadcast %523 : vector<1x9x1xf32> to vector<1x9x9xf32>
    %525 = arith.subf %521, %524 : vector<1x9x9xf32>
    %526 = math.exp %525 : vector<1x9x9xf32>
    %cst_137 = arith.constant dense<0.000000e+00> : vector<1x9xf32>
    %527 = vector.multi_reduction <add>, %526, %cst_137 [2] : vector<1x9x9xf32> to vector<1x9xf32>
    %528 = vector.shape_cast %527 : vector<1x9xf32> to vector<1x9x1xf32>
    %529 = tpu.reciprocal %528 {approx = true} : vector<1x9x1xf32> -> vector<1x9x1xf32>
    %530 = vector.broadcast %529 : vector<1x9x1xf32> to vector<1x9x9xf32>
    %531 = arith.mulf %526, %530 : vector<1x9x9xf32>
    %532 = arith.truncf %531 : vector<1x9x9xf32> to vector<1x9x9xbf16>
    %533 = arith.truncf %518 : vector<1x9x16xf32> to vector<1x9x16xbf16>
    %cst_138 = arith.constant dense<0.000000e+00> : vector<1x9x16xf32>
    %534 = tpu.matmul %532, %533, %cst_138 {dimension_numbers = #tpu.dot_dimension_numbers<[2], [1], [1], [2], [0, 0, 0, 1, 1, 2], [0], [0]>} : vector<1x9x9xbf16>, vector<1x9x16xbf16>, vector<1x9x16xf32> -> vector<1x9x16xf32>
    %535 = vector.extract_strided_slice %5 {offsets = [2, 0, 0], sizes = [1, 64, 64], strides = [1, 1, 1]} : vector<3x64x64xf32> to vector<1x64x64xf32>
    %536 = vector.shape_cast %535 : vector<1x64x64xf32> to vector<64x64xf32>
    %537 = vector.extract_strided_slice %536 {offsets = [48, 0], sizes = [16, 64], strides = [1, 1]} : vector<64x64xf32> to vector<16x64xf32>
    %538 = arith.truncf %537 : vector<16x64xf32> to vector<16x64xbf16>
    %539 = vector.shape_cast %538 : vector<16x64xbf16> to vector<1x16x64xbf16>
    %540 = arith.truncf %534 : vector<1x9x16xf32> to vector<1x9x16xbf16>
    %cst_139 = arith.constant dense<0.000000e+00> : vector<1x9x64xf32>
    %541 = tpu.matmul %540, %539, %cst_139 {dimension_numbers = #tpu.dot_dimension_numbers<[2], [1], [1], [2], [0, 0, 0, 1, 1, 2], [0], [0]>} : vector<1x9x16xbf16>, vector<1x16x64xbf16>, vector<1x9x64xf32> -> vector<1x9x64xf32>
    %542 = arith.addf %463, %489 : vector<1x9x64xf32>
    %543 = arith.addf %542, %515 : vector<1x9x64xf32>
    %544 = arith.addf %543, %541 : vector<1x9x64xf32>
    %545 = vector.extract_strided_slice %6 {offsets = [2, 0, 0], sizes = [1, 1, 64], strides = [1, 1, 1]} : vector<3x1x64xf32> to vector<1x1x64xf32>
    %546 = vector.shape_cast %545 : vector<1x1x64xf32> to vector<1x64xf32>
    %547 = vector.shape_cast %546 : vector<1x64xf32> to vector<1x1x64xf32>
    %548 = vector.broadcast %547 : vector<1x1x64xf32> to vector<1x9x64xf32>
    %549 = arith.addf %544, %548 : vector<1x9x64xf32>
    %550 = arith.addf %426, %549 : vector<1x9x64xf32>
    %551 = vector.extract_strided_slice %7 {offsets = [2, 0, 0], sizes = [1, 1, 64], strides = [1, 1, 1]} : vector<3x1x64xf32> to vector<1x1x64xf32>
    %552 = vector.shape_cast %551 : vector<1x1x64xf32> to vector<1x64xf32>
    %553 = vector.extract_strided_slice %8 {offsets = [2, 0, 0], sizes = [1, 1, 64], strides = [1, 1, 1]} : vector<3x1x64xf32> to vector<1x1x64xf32>
    %554 = vector.shape_cast %553 : vector<1x1x64xf32> to vector<1x64xf32>
    %cst_140 = arith.constant dense<0.000000e+00> : vector<1x9xf32>
    %555 = vector.multi_reduction <add>, %550, %cst_140 [2] : vector<1x9x64xf32> to vector<1x9xf32>
    %556 = vector.shape_cast %555 : vector<1x9xf32> to vector<1x9x1xf32>
    %cst_141 = arith.constant 1.562500e-02 : f32
    %557 = vector.broadcast %cst_141 : f32 to vector<1x9x1xf32>
    %558 = arith.mulf %556, %557 : vector<1x9x1xf32>
    %559 = vector.broadcast %558 : vector<1x9x1xf32> to vector<1x9x64xf32>
    %560 = arith.subf %550, %559 : vector<1x9x64xf32>
    %561 = arith.mulf %560, %560 : vector<1x9x64xf32>
    %cst_142 = arith.constant dense<0.000000e+00> : vector<1x9xf32>
    %562 = vector.multi_reduction <add>, %561, %cst_142 [2] : vector<1x9x64xf32> to vector<1x9xf32>
    %563 = vector.shape_cast %562 : vector<1x9xf32> to vector<1x9x1xf32>
    %cst_143 = arith.constant 1.562500e-02 : f32
    %564 = vector.broadcast %cst_143 : f32 to vector<1x9x1xf32>
    %565 = arith.mulf %563, %564 : vector<1x9x1xf32>
    %cst_144 = arith.constant 9.99999974E-6 : f32
    %566 = vector.broadcast %cst_144 : f32 to vector<1x9x1xf32>
    %567 = arith.addf %565, %566 : vector<1x9x1xf32>
    %568 = math.rsqrt %567 : vector<1x9x1xf32>
    %569 = vector.broadcast %568 : vector<1x9x1xf32> to vector<1x9x64xf32>
    %570 = arith.mulf %560, %569 : vector<1x9x64xf32>
    %571 = vector.shape_cast %552 : vector<1x64xf32> to vector<1x1x64xf32>
    %572 = vector.broadcast %571 : vector<1x1x64xf32> to vector<1x9x64xf32>
    %573 = arith.mulf %570, %572 : vector<1x9x64xf32>
    %574 = vector.shape_cast %554 : vector<1x64xf32> to vector<1x1x64xf32>
    %575 = vector.broadcast %574 : vector<1x1x64xf32> to vector<1x9x64xf32>
    %576 = arith.addf %573, %575 : vector<1x9x64xf32>
    %577 = vector.extract_strided_slice %11 {offsets = [2, 0, 0], sizes = [1, 64, 128], strides = [1, 1, 1]} : vector<3x64x128xf32> to vector<1x64x128xf32>
    %578 = vector.shape_cast %577 : vector<1x64x128xf32> to vector<64x128xf32>
    %579 = arith.truncf %578 : vector<64x128xf32> to vector<64x128xbf16>
    %580 = vector.shape_cast %579 : vector<64x128xbf16> to vector<1x64x128xbf16>
    %581 = arith.truncf %576 : vector<1x9x64xf32> to vector<1x9x64xbf16>
    %cst_145 = arith.constant dense<0.000000e+00> : vector<1x9x128xf32>
    %582 = tpu.matmul %581, %580, %cst_145 {dimension_numbers = #tpu.dot_dimension_numbers<[2], [1], [1], [2], [0, 0, 0, 1, 1, 2], [0], [0]>} : vector<1x9x64xbf16>, vector<1x64x128xbf16>, vector<1x9x128xf32> -> vector<1x9x128xf32>
    %583 = vector.extract_strided_slice %12 {offsets = [2, 0, 0], sizes = [1, 1, 128], strides = [1, 1, 1]} : vector<3x1x128xf32> to vector<1x1x128xf32>
    %584 = vector.shape_cast %583 : vector<1x1x128xf32> to vector<1x128xf32>
    %585 = vector.shape_cast %584 : vector<1x128xf32> to vector<1x1x128xf32>
    %586 = vector.broadcast %585 : vector<1x1x128xf32> to vector<1x9x128xf32>
    %587 = arith.addf %582, %586 : vector<1x9x128xf32>
    %cst_146 = arith.constant 0.000000e+00 : f32
    %588 = vector.broadcast %cst_146 : f32 to vector<1x9x128xf32>
    %589 = arith.maximumf %587, %588 : vector<1x9x128xf32>
    %590 = vector.extract_strided_slice %13 {offsets = [2, 0, 0], sizes = [1, 128, 64], strides = [1, 1, 1]} : vector<3x128x64xf32> to vector<1x128x64xf32>
    %591 = vector.shape_cast %590 : vector<1x128x64xf32> to vector<128x64xf32>
    %592 = arith.truncf %591 : vector<128x64xf32> to vector<128x64xbf16>
    %593 = vector.shape_cast %592 : vector<128x64xbf16> to vector<1x128x64xbf16>
    %594 = arith.truncf %589 : vector<1x9x128xf32> to vector<1x9x128xbf16>
    %cst_147 = arith.constant dense<0.000000e+00> : vector<1x9x64xf32>
    %595 = tpu.matmul %594, %593, %cst_147 {dimension_numbers = #tpu.dot_dimension_numbers<[2], [1], [1], [2], [0, 0, 0, 1, 1, 2], [0], [0]>} : vector<1x9x128xbf16>, vector<1x128x64xbf16>, vector<1x9x64xf32> -> vector<1x9x64xf32>
    %596 = vector.extract_strided_slice %14 {offsets = [2, 0, 0], sizes = [1, 1, 64], strides = [1, 1, 1]} : vector<3x1x64xf32> to vector<1x1x64xf32>
    %597 = vector.shape_cast %596 : vector<1x1x64xf32> to vector<1x64xf32>
    %598 = vector.shape_cast %597 : vector<1x64xf32> to vector<1x1x64xf32>
    %599 = vector.broadcast %598 : vector<1x1x64xf32> to vector<1x9x64xf32>
    %600 = arith.addf %595, %599 : vector<1x9x64xf32>
    %601 = arith.addf %576, %600 : vector<1x9x64xf32>
    %602 = vector.extract_strided_slice %9 {offsets = [2, 0, 0], sizes = [1, 1, 64], strides = [1, 1, 1]} : vector<3x1x64xf32> to vector<1x1x64xf32>
    %603 = vector.shape_cast %602 : vector<1x1x64xf32> to vector<1x64xf32>
    %604 = vector.extract_strided_slice %10 {offsets = [2, 0, 0], sizes = [1, 1, 64], strides = [1, 1, 1]} : vector<3x1x64xf32> to vector<1x1x64xf32>
    %605 = vector.shape_cast %604 : vector<1x1x64xf32> to vector<1x64xf32>
    %cst_148 = arith.constant dense<0.000000e+00> : vector<1x9xf32>
    %606 = vector.multi_reduction <add>, %601, %cst_148 [2] : vector<1x9x64xf32> to vector<1x9xf32>
    %607 = vector.shape_cast %606 : vector<1x9xf32> to vector<1x9x1xf32>
    %cst_149 = arith.constant 1.562500e-02 : f32
    %608 = vector.broadcast %cst_149 : f32 to vector<1x9x1xf32>
    %609 = arith.mulf %607, %608 : vector<1x9x1xf32>
    %610 = vector.broadcast %609 : vector<1x9x1xf32> to vector<1x9x64xf32>
    %611 = arith.subf %601, %610 : vector<1x9x64xf32>
    %612 = arith.mulf %611, %611 : vector<1x9x64xf32>
    %cst_150 = arith.constant dense<0.000000e+00> : vector<1x9xf32>
    %613 = vector.multi_reduction <add>, %612, %cst_150 [2] : vector<1x9x64xf32> to vector<1x9xf32>
    %614 = vector.shape_cast %613 : vector<1x9xf32> to vector<1x9x1xf32>
    %cst_151 = arith.constant 1.562500e-02 : f32
    %615 = vector.broadcast %cst_151 : f32 to vector<1x9x1xf32>
    %616 = arith.mulf %614, %615 : vector<1x9x1xf32>
    %cst_152 = arith.constant 9.99999974E-6 : f32
    %617 = vector.broadcast %cst_152 : f32 to vector<1x9x1xf32>
    %618 = arith.addf %616, %617 : vector<1x9x1xf32>
    %619 = math.rsqrt %618 : vector<1x9x1xf32>
    %620 = vector.broadcast %619 : vector<1x9x1xf32> to vector<1x9x64xf32>
    %621 = arith.mulf %611, %620 : vector<1x9x64xf32>
    %622 = vector.shape_cast %603 : vector<1x64xf32> to vector<1x1x64xf32>
    %623 = vector.broadcast %622 : vector<1x1x64xf32> to vector<1x9x64xf32>
    %624 = arith.mulf %621, %623 : vector<1x9x64xf32>
    %625 = vector.shape_cast %605 : vector<1x64xf32> to vector<1x1x64xf32>
    %626 = vector.broadcast %625 : vector<1x1x64xf32> to vector<1x9x64xf32>
    %627 = arith.addf %624, %626 : vector<1x9x64xf32>
    %628 = vector.extract_strided_slice %627 {offsets = [0, 0, 0], sizes = [1, 1, 64], strides = [1, 1, 1]} : vector<1x9x64xf32> to vector<1x1x64xf32>
    %629 = arith.truncf %15 : vector<64x64xf32> to vector<64x64xbf16>
    %630 = vector.shape_cast %629 : vector<64x64xbf16> to vector<1x64x64xbf16>
    %631 = arith.truncf %628 : vector<1x1x64xf32> to vector<1x1x64xbf16>
    %cst_153 = arith.constant dense<0.000000e+00> : vector<1x1x64xf32>
    %632 = tpu.matmul %631, %630, %cst_153 {dimension_numbers = #tpu.dot_dimension_numbers<[2], [1], [1], [2], [0, 0, 0, 1, 1, 2], [0], [0]>} : vector<1x1x64xbf16>, vector<1x64x64xbf16>, vector<1x1x64xf32> -> vector<1x1x64xf32>
    %633 = arith.truncf %16 : vector<64x64xf32> to vector<64x64xbf16>
    %634 = vector.shape_cast %633 : vector<64x64xbf16> to vector<1x64x64xbf16>
    %635 = arith.truncf %632 : vector<1x1x64xf32> to vector<1x1x64xbf16>
    %cst_154 = arith.constant dense<0.000000e+00> : vector<1x1x64xf32>
    %636 = tpu.matmul %635, %634, %cst_154 {dimension_numbers = #tpu.dot_dimension_numbers<[2], [1], [1], [2], [0, 0, 0, 1, 1, 2], [0], [0]>} : vector<1x1x64xbf16>, vector<1x64x64xbf16>, vector<1x1x64xf32> -> vector<1x1x64xf32>
    %637 = arith.truncf %17 : vector<64x128xf32> to vector<64x128xbf16>
    %638 = vector.shape_cast %637 : vector<64x128xbf16> to vector<1x64x128xbf16>
    %639 = arith.truncf %636 : vector<1x1x64xf32> to vector<1x1x64xbf16>
    %cst_155 = arith.constant dense<0.000000e+00> : vector<1x1x128xf32>
    %640 = tpu.matmul %639, %638, %cst_155 {dimension_numbers = #tpu.dot_dimension_numbers<[2], [1], [1], [2], [0, 0, 0, 1, 1, 2], [0], [0]>} : vector<1x1x64xbf16>, vector<1x64x128xbf16>, vector<1x1x128xf32> -> vector<1x1x128xf32>
    %641 = arith.addf %640, %18 : vector<1x1x128xf32>
    %c0_156 = arith.constant 0 : index
    %c0_157 = arith.constant 0 : index
    %c0_158 = arith.constant 0 : index
    %642 = vector.load %arg20[%c0_156, %c0_157, %c0_158] : memref<1x1x128xf32, #tpu.memory_space<vmem>>, vector<1x1x128xf32>
    tpu.vector_store %arg20[%c0_156, %c0_157, %c0_158], %641 {strides = array<i32>} : memref<1x1x128xf32, #tpu.memory_space<vmem>>, vector<1x1x128xf32>,
    return
  }
  func.func @transform_0(%arg0: i32) -> (i32, i32, i32) {
    %c0_i32 = arith.constant 0 : i32
    %c0_i32_0 = arith.constant 0 : i32
    %c0_i32_1 = arith.constant 0 : i32
    return %arg0, %c0_i32, %c0_i32_0 : i32, i32, i32
  }
  func.func @transform_1(%arg0: i32) -> (i32, i32) {
    %c0_i32 = arith.constant 0 : i32
    %c0_i32_0 = arith.constant 0 : i32
    %c0_i32_1 = arith.constant 0 : i32
    return %c0_i32, %c0_i32_0 : i32, i32
  }
  func.func @transform_2(%arg0: i32) -> (i32, i32) {
    %c0_i32 = arith.constant 0 : i32
    %c0_i32_0 = arith.constant 0 : i32
    %c0_i32_1 = arith.constant 0 : i32
    return %c0_i32, %c0_i32_0 : i32, i32
  }
  func.func @transform_3(%arg0: i32) -> (i32, i32, i32) {
    %c0_i32 = arith.constant 0 : i32
    %c0_i32_0 = arith.constant 0 : i32
    %c0_i32_1 = arith.constant 0 : i32
    %c0_i32_2 = arith.constant 0 : i32
    return %c0_i32, %c0_i32_0, %c0_i32_1 : i32, i32, i32
  }
  func.func @transform_4(%arg0: i32) -> (i32, i32, i32) {
    %c0_i32 = arith.constant 0 : i32
    %c0_i32_0 = arith.constant 0 : i32
    %c0_i32_1 = arith.constant 0 : i32
    %c0_i32_2 = arith.constant 0 : i32
    return %c0_i32, %c0_i32_0, %c0_i32_1 : i32, i32, i32
  }
  func.func @transform_5(%arg0: i32) -> (i32, i32, i32) {
    %c0_i32 = arith.constant 0 : i32
    %c0_i32_0 = arith.constant 0 : i32
    %c0_i32_1 = arith.constant 0 : i32
    %c0_i32_2 = arith.constant 0 : i32
    return %c0_i32, %c0_i32_0, %c0_i32_1 : i32, i32, i32
  }
  func.func @transform_6(%arg0: i32) -> (i32, i32, i32) {
    %c0_i32 = arith.constant 0 : i32
    %c0_i32_0 = arith.constant 0 : i32
    %c0_i32_1 = arith.constant 0 : i32
    %c0_i32_2 = arith.constant 0 : i32
    return %c0_i32, %c0_i32_0, %c0_i32_1 : i32, i32, i32
  }
  func.func @transform_7(%arg0: i32) -> (i32, i32, i32) {
    %c0_i32 = arith.constant 0 : i32
    %c0_i32_0 = arith.constant 0 : i32
    %c0_i32_1 = arith.constant 0 : i32
    %c0_i32_2 = arith.constant 0 : i32
    return %c0_i32, %c0_i32_0, %c0_i32_1 : i32, i32, i32
  }
  func.func @transform_8(%arg0: i32) -> (i32, i32, i32) {
    %c0_i32 = arith.constant 0 : i32
    %c0_i32_0 = arith.constant 0 : i32
    %c0_i32_1 = arith.constant 0 : i32
    %c0_i32_2 = arith.constant 0 : i32
    return %c0_i32, %c0_i32_0, %c0_i32_1 : i32, i32, i32
  }
  func.func @transform_9(%arg0: i32) -> (i32, i32, i32) {
    %c0_i32 = arith.constant 0 : i32
    %c0_i32_0 = arith.constant 0 : i32
    %c0_i32_1 = arith.constant 0 : i32
    %c0_i32_2 = arith.constant 0 : i32
    return %c0_i32, %c0_i32_0, %c0_i32_1 : i32, i32, i32
  }
  func.func @transform_10(%arg0: i32) -> (i32, i32, i32) {
    %c0_i32 = arith.constant 0 : i32
    %c0_i32_0 = arith.constant 0 : i32
    %c0_i32_1 = arith.constant 0 : i32
    %c0_i32_2 = arith.constant 0 : i32
    return %c0_i32, %c0_i32_0, %c0_i32_1 : i32, i32, i32
  }
  func.func @transform_11(%arg0: i32) -> (i32, i32, i32) {
    %c0_i32 = arith.constant 0 : i32
    %c0_i32_0 = arith.constant 0 : i32
    %c0_i32_1 = arith.constant 0 : i32
    %c0_i32_2 = arith.constant 0 : i32
    return %c0_i32, %c0_i32_0, %c0_i32_1 : i32, i32, i32
  }
  func.func @transform_12(%arg0: i32) -> (i32, i32, i32) {
    %c0_i32 = arith.constant 0 : i32
    %c0_i32_0 = arith.constant 0 : i32
    %c0_i32_1 = arith.constant 0 : i32
    %c0_i32_2 = arith.constant 0 : i32
    return %c0_i32, %c0_i32_0, %c0_i32_1 : i32, i32, i32
  }
  func.func @transform_13(%arg0: i32) -> (i32, i32, i32) {
    %c0_i32 = arith.constant 0 : i32
    %c0_i32_0 = arith.constant 0 : i32
    %c0_i32_1 = arith.constant 0 : i32
    %c0_i32_2 = arith.constant 0 : i32
    return %c0_i32, %c0_i32_0, %c0_i32_1 : i32, i32, i32
  }
  func.func @transform_14(%arg0: i32) -> (i32, i32, i32) {
    %c0_i32 = arith.constant 0 : i32
    %c0_i32_0 = arith.constant 0 : i32
    %c0_i32_1 = arith.constant 0 : i32
    %c0_i32_2 = arith.constant 0 : i32
    return %c0_i32, %c0_i32_0, %c0_i32_1 : i32, i32, i32
  }
  func.func @transform_15(%arg0: i32) -> (i32, i32) {
    %c0_i32 = arith.constant 0 : i32
    %c0_i32_0 = arith.constant 0 : i32
    %c0_i32_1 = arith.constant 0 : i32
    return %c0_i32, %c0_i32_0 : i32, i32
  }
  func.func @transform_16(%arg0: i32) -> (i32, i32) {
    %c0_i32 = arith.constant 0 : i32
    %c0_i32_0 = arith.constant 0 : i32
    %c0_i32_1 = arith.constant 0 : i32
    return %c0_i32, %c0_i32_0 : i32, i32
  }
  func.func @transform_17(%arg0: i32) -> (i32, i32) {
    %c0_i32 = arith.constant 0 : i32
    %c0_i32_0 = arith.constant 0 : i32
    %c0_i32_1 = arith.constant 0 : i32
    return %c0_i32, %c0_i32_0 : i32, i32
  }
  func.func @transform_18(%arg0: i32) -> (i32, i32, i32) {
    %c0_i32 = arith.constant 0 : i32
    %c0_i32_0 = arith.constant 0 : i32
    %c0_i32_1 = arith.constant 0 : i32
    %c0_i32_2 = arith.constant 0 : i32
    return %c0_i32, %c0_i32_0, %c0_i32_1 : i32, i32, i32
  }
  func.func @transform_19(%arg0: i32) -> (i32, i32, i32) {
    %c0_i32 = arith.constant 0 : i32
    %c0_i32_0 = arith.constant 0 : i32
    %c0_i32_1 = arith.constant 0 : i32
    return %arg0, %c0_i32, %c0_i32_0 : i32, i32, i32
  }
}

</mosaic_0001>

<llo_original>
// kernel: tpu_custom_call.1
$region0: #{tpu_custom_call.1}
  #allocation0 [shape = 'u32[]', space=smem, size = 0x4, offset = 0x4, fixed_abs, tag = 'smem constant byte address 0x4 - core index']
  #allocation1 [shape = 'u32[144,128]{1,0:T(1,128)}', space=vmem, size = 0x12000, scoped, tag = 'internal scratch']
  %s0 = inlined_call_operand.vmem [shape: f32[2,9,4], index: 0, kind: input, shape index: {}]
  %s1 = inlined_call_operand.hbm [shape: f32[9,64], index: 1, kind: input, shape index: {}]
  %s2 = inlined_call_operand.hbm [shape: f32[4,64], index: 2, kind: input, shape index: {}]
  %s3 = inlined_call_operand.vmem [shape: f32[3,64,192], index: 3, kind: input, shape index: {}]
  %s4 = inlined_call_operand.vmem [shape: f32[3,1,192], index: 4, kind: input, shape index: {}]
  %s5 = inlined_call_operand.vmem [shape: f32[3,64,64], index: 5, kind: input, shape index: {}]
  %s6 = inlined_call_operand.hbm [shape: f32[3,1,64], index: 6, kind: input, shape index: {}]
  %s7 = inlined_call_operand.hbm [shape: f32[3,1,64], index: 7, kind: input, shape index: {}]
  %s8 = inlined_call_operand.hbm [shape: f32[3,1,64], index: 8, kind: input, shape index: {}]
  %s9 = inlined_call_operand.hbm [shape: f32[3,1,64], index: 9, kind: input, shape index: {}]
  %s10 = inlined_call_operand.vmem [shape: f32[3,1,64], index: 10, kind: input, shape index: {}]
  %s11 = inlined_call_operand.hbm [shape: f32[3,64,128], index: 11, kind: input, shape index: {}]
  %s12 = inlined_call_operand.vmem [shape: f32[3,1,128], index: 12, kind: input, shape index: {}]
  %s13 = inlined_call_operand.vmem [shape: f32[3,128,64], index: 13, kind: input, shape index: {}]
  %s14 = inlined_call_operand.vmem [shape: f32[3,1,64], index: 14, kind: input, shape index: {}]
  %s15 = inlined_call_operand.vmem [shape: f32[64,64], index: 15, kind: input, shape index: {}]
  %s16 = inlined_call_operand.hbm [shape: f32[64,64], index: 16, kind: input, shape index: {}]
  %s17 = inlined_call_operand.hbm [shape: f32[64,128], index: 17, kind: input, shape index: {}]
  %s18 = inlined_call_operand.vmem [shape: f32[1,1,128], index: 18, kind: input, shape index: {}]
  %s19 = inlined_call_operand.hbm [shape: f32[2,1,128], index: 19, kind: output, shape index: {}]
  %s20 = sld [smem:[#allocation0]]
  $region145: #{tpu_custom_call.1} parent=0
    _
  %s22 = ssub.s32 1, %s20
  %s23 = scalar_select 0, %s22, %s20
  $region1: #{tpu_custom_call.1} parent=0
    #allocation2 [shape = 'u8[8192]{0}', space=vmem, size = 0x2000, scoped, tag = 'input window, operand 1, single buffered']
    #allocation3 [shape = 's32[2]{0}', space=sflag, size = 0x8, scoped, tag = 'scoped memory for tpu_custom_call.1']
    #allocation4 [shape = 's32[2]{0}', space=sflag, size = 0x8, scoped, tag = 'scoped memory for tpu_custom_call.1']
    #allocation5 [shape = 'u8[2048]{0}', space=vmem, size = 0x800, scoped, tag = 'input window, operand 2, single buffered']
    #allocation6 [shape = 's32[1]{0}', space=sflag, size = 0x4, scoped, tag = 'scoped memory for tpu_custom_call.1']
    #allocation7 [shape = 'u8[1536]{0}', space=vmem, size = 0x800, scoped, tag = 'input window, operand 6, single buffered']
    #allocation8 [shape = 'u8[1536]{0}', space=vmem, size = 0x800, scoped, tag = 'input window, operand 7, single buffered']
    #allocation9 [shape = 's32[1]{0}', space=sflag, size = 0x4, scoped, tag = 'scoped memory for tpu_custom_call.1']
    #allocation10 [shape = 'u8[1536]{0}', space=vmem, size = 0x800, scoped, tag = 'input window, operand 8, single buffered']
    #allocation11 [shape = 'u8[1536]{0}', space=vmem, size = 0x800, scoped, tag = 'input window, operand 9, single buffered']
    #allocation12 [shape = 's32[1]{0}', space=sflag, size = 0x4, scoped, tag = 'scoped memory for tpu_custom_call.1']
    #allocation13 [shape = 'u8[98304]{0}', space=vmem, size = 0x18000, scoped, tag = 'input window, operand 11, single buffered']
    #allocation14 [shape = 'u8[32768]{0}', space=vmem, size = 0x8000, scoped, tag = 'input window, operand 16, single buffered']
    #allocation15 [shape = 's32[1]{0}', space=sflag, size = 0x4, scoped, tag = 'scoped memory for tpu_custom_call.1']
    #allocation16 [shape = 'u8[32768]{0}', space=vmem, size = 0x8000, scoped, tag = 'input window, operand 17, single buffered']
    #allocation17 [shape = 'u8[1024]{0}', space=vmem, size = 0x400, scoped, tag = 'output window, operand 0']
    %24 = vsyncpa [#allocation3], 0
    %25 = vsyncpa [#allocation6], 0
    %26 = vsyncpa [#allocation9], 0
    %27 = vsyncpa [#allocation12], 0
    %28 = vsyncpa [#allocation15], 0
    %29 = vsyncpa [#allocation4], 0
    %s30 = scalar_lea.sflag [#allocation4], 1
    %31 = vsyncpa %s30, 0
    loop: start=0, step=1, limit=4
    $region2: #{tpu_custom_call.1} parent=1 // loop_pre_header
      _
    $region3: #{tpu_custom_call.1} parent=1 // loop_header
      %s33 = sphi 0, %s37
      %p34 = scmp.ge.s32.totalorder %s33, 4
      %s43 = sphi 0, %s45
      %s46 = sphi 0, %s43
      %s47 = sphi 0, %s46
      %s63 = sphi 0, %s47
      %s67 = sphi 0, %s67
      %s69 = sphi 0, %s67
      %s70 = sphi 0, %s69
      %s84 = sphi 0, %s70
      %s88 = sphi 0, %s88
      %s90 = sphi 0, %s88
      %s91 = sphi 0, %s90
      %s105 = sphi 0, %s91
      %s109 = sphi 0, %s109
      %s111 = sphi 0, %s109
      %s112 = sphi 0, %s111
      %s126 = sphi 0, %s112
      %s130 = sphi 0, %s130
      %s132 = sphi 0, %s130
      %s133 = sphi 0, %s132
      %s147 = sphi 0, %s133
      %s151 = sphi 0, %s151
      %s153 = sphi 0, %s151
      %s154 = sphi 0, %s153
      %s168 = sphi 0, %s154
      %s172 = sphi 0, %s172
      %s174 = sphi 0, %s172
      %s175 = sphi 0, %s174
      %s189 = sphi 0, %s175
      %s193 = sphi 0, %s193
      %s195 = sphi 0, %s193
      %s196 = sphi 0, %s195
      %s210 = sphi 0, %s196
      %s214 = sphi 0, %s214
      %s216 = sphi 0, %s214
      %s217 = sphi 0, %s216
      %s231 = sphi 0, %s217
      %s235 = sphi 0, %s235
      %s237 = sphi 0, %s235
      %s238 = sphi 0, %s237
      %s252 = sphi 0, %s238
      %s256 = sphi 0, %s256
      %s258 = sphi 0, %s256
      %s259 = sphi 0, %s258
      %s273 = sphi 0, %s259
      %s277 = sphi 0, %s277
      %s279 = sphi 0, %s277
      %s280 = sphi 0, %s279
      %s294 = sphi 0, %s280
      %s298 = sphi 0, %s298
      %s300 = sphi 0, %s298
      %s301 = sphi 0, %s300
      %s315 = sphi 0, %s301
      %s319 = sphi 0, %s319
      %s321 = sphi 0, %s319
      %s322 = sphi 0, %s321
      %s336 = sphi 0, %s322
      %s340 = sphi 0, %s340
      %s342 = sphi 0, %s340
      %s343 = sphi 0, %s342
      %s357 = sphi 0, %s343
      %s361 = sphi 0, %s361
      %s363 = sphi 0, %s361
      %s364 = sphi 0, %s363
      %s378 = sphi 0, %s364
      %s382 = sphi 0, %s382
      %s384 = sphi 0, %s382
      %s385 = sphi 0, %s384
      %s399 = sphi 0, %s385
      %s403 = sphi 0, %s403
      %s405 = sphi 0, %s403
      %s406 = sphi 0, %s405
      %s420 = sphi 0, %s406
      %s424 = sphi 0, %s424
      %s426 = sphi 0, %s424
      %s427 = sphi 0, %s426
      %s441 = sphi 0, %s427
      %s447 = sphi 0, %s449
      %s450 = sphi 0, %s447
      %s451 = sphi 0, %s450
      %s467 = sphi 0, %s451
    $region4: #{tpu_custom_call.1} parent=1 // loop_header_branch
      %36 = sbr.rel (%p34) target = $region8
    $region5: #{tpu_custom_call.1} parent=1 // loop_body
      %s38 = ssub.s32 %s33, 1
      %s39 = ssub.s32 %s33, 2
      %s40 = sadd.s32 %s33, 1
      %s41 = ssub.s32 %s33, %s40
      %p42 = scmp.eq.s32.totalorder %s41, 0
      %s44 = sadd.s32 %s43, 1
      %s45 = scalar_select %p42, %s43, %s44
      %p48 = pneg %p42
      %p49 = scmp.eq.s32.totalorder %s33, 1
      %p50 = por %p48, %p49
      %p51 = scmp.ne.s32.totalorder %s43, %s46
      %p52 = scmp.eq.s32.totalorder %s33, 0
      %p53 = por %p51, %p52
      %p54 = scmp.ne.s32.totalorder %s43, %s46
      %p55 = scmp.eq.s32.totalorder %s38, 1
      %p56 = por %p54, %p55
      %p57 = scmp.ne.s32.totalorder %s46, %s47
      %p58 = scmp.eq.s32.totalorder %s38, 0
      %p59 = por %p57, %p58
      %p60 = scmp.ne.s32.totalorder %s46, %s47
      %p61 = scmp.eq.s32.totalorder %s39, 1
      %p62 = por %p60, %p61
      %p64 = scmp.ne.s32.totalorder %s47, %s63
      %p65 = scmp.eq.s32.totalorder %s39, 0
      %p66 = por %p64, %p65
      %s68 = sadd.s32 %s67, 1
      %p71 = scmp.eq.s32.totalorder %s33, 1
      %p72 = scmp.ne.s32.totalorder %s67, %s69
      %p73 = scmp.eq.s32.totalorder %s33, 0
      %p74 = por %p72, %p73
      %p75 = scmp.ne.s32.totalorder %s67, %s69
      %p76 = scmp.eq.s32.totalorder %s38, 1
      %p77 = por %p75, %p76
      %p78 = scmp.ne.s32.totalorder %s69, %s70
      %p79 = scmp.eq.s32.totalorder %s38, 0
      %p80 = por %p78, %p79
      %p81 = scmp.ne.s32.totalorder %s69, %s70
      %p82 = scmp.eq.s32.totalorder %s39, 1
      %p83 = por %p81, %p82
      %p85 = scmp.ne.s32.totalorder %s70, %s84
      %p86 = scmp.eq.s32.totalorder %s39, 0
      %p87 = por %p85, %p86
      %s89 = sadd.s32 %s88, 1
      %p92 = scmp.eq.s32.totalorder %s33, 1
      %p93 = scmp.ne.s32.totalorder %s88, %s90
      %p94 = scmp.eq.s32.totalorder %s33, 0
      %p95 = por %p93, %p94
      %p96 = scmp.ne.s32.totalorder %s88, %s90
      %p97 = scmp.eq.s32.totalorder %s38, 1
      %p98 = por %p96, %p97
      %p99 = scmp.ne.s32.totalorder %s90, %s91
      %p100 = scmp.eq.s32.totalorder %s38, 0
      %p101 = por %p99, %p100
      %p102 = scmp.ne.s32.totalorder %s90, %s91
      %p103 = scmp.eq.s32.totalorder %s39, 1
      %p104 = por %p102, %p103
      %p106 = scmp.ne.s32.totalorder %s91, %s105
      %p107 = scmp.eq.s32.totalorder %s39, 0
      %p108 = por %p106, %p107
      %s110 = sadd.s32 %s109, 1
      %p113 = scmp.eq.s32.totalorder %s33, 1
      %p114 = scmp.ne.s32.totalorder %s109, %s111
      %p115 = scmp.eq.s32.totalorder %s33, 0
      %p116 = por %p114, %p115
      %p117 = scmp.ne.s32.totalorder %s109, %s111
      %p118 = scmp.eq.s32.totalorder %s38, 1
      %p119 = por %p117, %p118
      %p120 = scmp.ne.s32.totalorder %s111, %s112
      %p121 = scmp.eq.s32.totalorder %s38, 0
      %p122 = por %p120, %p121
      %p123 = scmp.ne.s32.totalorder %s111, %s112
      %p124 = scmp.eq.s32.totalorder %s39, 1
      %p125 = por %p123, %p124
      %p127 = scmp.ne.s32.totalorder %s112, %s126
      %p128 = scmp.eq.s32.totalorder %s39, 0
      %p129 = por %p127, %p128
      %s131 = sadd.s32 %s130, 1
      %p134 = scmp.eq.s32.totalorder %s33, 1
      %p135 = scmp.ne.s32.totalorder %s130, %s132
      %p136 = scmp.eq.s32.totalorder %s33, 0
      %p137 = por %p135, %p136
      %p138 = scmp.ne.s32.totalorder %s130, %s132
      %p139 = scmp.eq.s32.totalorder %s38, 1
      %p140 = por %p138, %p139
      %p141 = scmp.ne.s32.totalorder %s132, %s133
      %p142 = scmp.eq.s32.totalorder %s38, 0
      %p143 = por %p141, %p142
      %p144 = scmp.ne.s32.totalorder %s132, %s133
      %p145 = scmp.eq.s32.totalorder %s39, 1
      %p146 = por %p144, %p145
      %p148 = scmp.ne.s32.totalorder %s133, %s147
      %p149 = scmp.eq.s32.totalorder %s39, 0
      %p150 = por %p148, %p149
      %s152 = sadd.s32 %s151, 1
      %p155 = scmp.eq.s32.totalorder %s33, 1
      %p156 = scmp.ne.s32.totalorder %s151, %s153
      %p157 = scmp.eq.s32.totalorder %s33, 0
      %p158 = por %p156, %p157
      %p159 = scmp.ne.s32.totalorder %s151, %s153
      %p160 = scmp.eq.s32.totalorder %s38, 1
      %p161 = por %p159, %p160
      %p162 = scmp.ne.s32.totalorder %s153, %s154
      %p163 = scmp.eq.s32.totalorder %s38, 0
      %p164 = por %p162, %p163
      %p165 = scmp.ne.s32.totalorder %s153, %s154
      %p166 = scmp.eq.s32.totalorder %s39, 1
      %p167 = por %p165, %p166
      %p169 = scmp.ne.s32.totalorder %s154, %s168
      %p170 = scmp.eq.s32.totalorder %s39, 0
      %p171 = por %p169, %p170
      %s173 = sadd.s32 %s172, 1
      %p176 = scmp.eq.s32.totalorder %s33, 1
      %p177 = scmp.ne.s32.totalorder %s172, %s174
      %p178 = scmp.eq.s32.totalorder %s33, 0
      %p179 = por %p177, %p178
      %p180 = scmp.ne.s32.totalorder %s172, %s174
      %p181 = scmp.eq.s32.totalorder %s38, 1
      %p182 = por %p180, %p181
      %p183 = scmp.ne.s32.totalorder %s174, %s175
      %p184 = scmp.eq.s32.totalorder %s38, 0
      %p185 = por %p183, %p184
      %p186 = scmp.ne.s32.totalorder %s174, %s175
      %p187 = scmp.eq.s32.totalorder %s39, 1
      %p188 = por %p186, %p187
      %p190 = scmp.ne.s32.totalorder %s175, %s189
      %p191 = scmp.eq.s32.totalorder %s39, 0
      %p192 = por %p190, %p191
      %s194 = sadd.s32 %s193, 1
      %p197 = scmp.eq.s32.totalorder %s33, 1
      %p198 = scmp.ne.s32.totalorder %s193, %s195
      %p199 = scmp.eq.s32.totalorder %s33, 0
      %p200 = por %p198, %p199
      %p201 = scmp.ne.s32.totalorder %s193, %s195
      %p202 = scmp.eq.s32.totalorder %s38, 1
      %p203 = por %p201, %p202
      %p204 = scmp.ne.s32.totalorder %s195, %s196
      %p205 = scmp.eq.s32.totalorder %s38, 0
      %p206 = por %p204, %p205
      %p207 = scmp.ne.s32.totalorder %s195, %s196
      %p208 = scmp.eq.s32.totalorder %s39, 1
      %p209 = por %p207, %p208
      %p211 = scmp.ne.s32.totalorder %s196, %s210
      %p212 = scmp.eq.s32.totalorder %s39, 0
      %p213 = por %p211, %p212
      %s215 = sadd.s32 %s214, 1
      %p218 = scmp.eq.s32.totalorder %s33, 1
      %p219 = scmp.ne.s32.totalorder %s214, %s216
      %p220 = scmp.eq.s32.totalorder %s33, 0
      %p221 = por %p219, %p220
      %p222 = scmp.ne.s32.totalorder %s214, %s216
      %p223 = scmp.eq.s32.totalorder %s38, 1
      %p224 = por %p222, %p223
      %p225 = scmp.ne.s32.totalorder %s216, %s217
      %p226 = scmp.eq.s32.totalorder %s38, 0
      %p227 = por %p225, %p226
      %p228 = scmp.ne.s32.totalorder %s216, %s217
      %p229 = scmp.eq.s32.totalorder %s39, 1
      %p230 = por %p228, %p229
      %p232 = scmp.ne.s32.totalorder %s217, %s231
      %p233 = scmp.eq.s32.totalorder %s39, 0
      %p234 = por %p232, %p233
      %s236 = sadd.s32 %s235, 1
      %p239 = scmp.eq.s32.totalorder %s33, 1
      %p240 = scmp.ne.s32.totalorder %s235, %s237
      %p241 = scmp.eq.s32.totalorder %s33, 0
      %p242 = por %p240, %p241
      %p243 = scmp.ne.s32.totalorder %s235, %s237
      %p244 = scmp.eq.s32.totalorder %s38, 1
      %p245 = por %p243, %p244
      %p246 = scmp.ne.s32.totalorder %s237, %s238
      %p247 = scmp.eq.s32.totalorder %s38, 0
      %p248 = por %p246, %p247
      %p249 = scmp.ne.s32.totalorder %s237, %s238
      %p250 = scmp.eq.s32.totalorder %s39, 1
      %p251 = por %p249, %p250
      %p253 = scmp.ne.s32.totalorder %s238, %s252
      %p254 = scmp.eq.s32.totalorder %s39, 0
      %p255 = por %p253, %p254
      %s257 = sadd.s32 %s256, 1
      %p260 = scmp.eq.s32.totalorder %s33, 1
      %p261 = scmp.ne.s32.totalorder %s256, %s258
      %p262 = scmp.eq.s32.totalorder %s33, 0
      %p263 = por %p261, %p262
      %p264 = scmp.ne.s32.totalorder %s256, %s258
      %p265 = scmp.eq.s32.totalorder %s38, 1
      %p266 = por %p264, %p265
      %p267 = scmp.ne.s32.totalorder %s258, %s259
      %p268 = scmp.eq.s32.totalorder %s38, 0
      %p269 = por %p267, %p268
      %p270 = scmp.ne.s32.totalorder %s258, %s259
      %p271 = scmp.eq.s32.totalorder %s39, 1
      %p272 = por %p270, %p271
      %p274 = scmp.ne.s32.totalorder %s259, %s273
      %p275 = scmp.eq.s32.totalorder %s39, 0
      %p276 = por %p274, %p275
      %s278 = sadd.s32 %s277, 1
      %p281 = scmp.eq.s32.totalorder %s33, 1
      %p282 = scmp.ne.s32.totalorder %s277, %s279
      %p283 = scmp.eq.s32.totalorder %s33, 0
      %p284 = por %p282, %p283
      %p285 = scmp.ne.s32.totalorder %s277, %s279
      %p286 = scmp.eq.s32.totalorder %s38, 1
      %p287 = por %p285, %p286
      %p288 = scmp.ne.s32.totalorder %s279, %s280
      %p289 = scmp.eq.s32.totalorder %s38, 0
      %p290 = por %p288, %p289
      %p291 = scmp.ne.s32.totalorder %s279, %s280
      %p292 = scmp.eq.s32.totalorder %s39, 1
      %p293 = por %p291, %p292
      %p295 = scmp.ne.s32.totalorder %s280, %s294
      %p296 = scmp.eq.s32.totalorder %s39, 0
      %p297 = por %p295, %p296
      %s299 = sadd.s32 %s298, 1
      %p302 = scmp.eq.s32.totalorder %s33, 1
      %p303 = scmp.ne.s32.totalorder %s298, %s300
      %p304 = scmp.eq.s32.totalorder %s33, 0
      %p305 = por %p303, %p304
      %p306 = scmp.ne.s32.totalorder %s298, %s300
      %p307 = scmp.eq.s32.totalorder %s38, 1
      %p308 = por %p306, %p307
      %p309 = scmp.ne.s32.totalorder %s300, %s301
      %p310 = scmp.eq.s32.totalorder %s38, 0
      %p311 = por %p309, %p310
      %p312 = scmp.ne.s32.totalorder %s300, %s301
      %p313 = scmp.eq.s32.totalorder %s39, 1
      %p314 = por %p312, %p313
      %p316 = scmp.ne.s32.totalorder %s301, %s315
      %p317 = scmp.eq.s32.totalorder %s39, 0
      %p318 = por %p316, %p317
      %s320 = sadd.s32 %s319, 1
      %p323 = scmp.eq.s32.totalorder %s33, 1
      %p324 = scmp.ne.s32.totalorder %s319, %s321
      %p325 = scmp.eq.s32.totalorder %s33, 0
      %p326 = por %p324, %p325
      %p327 = scmp.ne.s32.totalorder %s319, %s321
      %p328 = scmp.eq.s32.totalorder %s38, 1
      %p329 = por %p327, %p328
      %p330 = scmp.ne.s32.totalorder %s321, %s322
      %p331 = scmp.eq.s32.totalorder %s38, 0
      %p332 = por %p330, %p331
      %p333 = scmp.ne.s32.totalorder %s321, %s322
      %p334 = scmp.eq.s32.totalorder %s39, 1
      %p335 = por %p333, %p334
      %p337 = scmp.ne.s32.totalorder %s322, %s336
      %p338 = scmp.eq.s32.totalorder %s39, 0
      %p339 = por %p337, %p338
      %s341 = sadd.s32 %s340, 1
      %p344 = scmp.eq.s32.totalorder %s33, 1
      %p345 = scmp.ne.s32.totalorder %s340, %s342
      %p346 = scmp.eq.s32.totalorder %s33, 0
      %p347 = por %p345, %p346
      %p348 = scmp.ne.s32.totalorder %s340, %s342
      %p349 = scmp.eq.s32.totalorder %s38, 1
      %p350 = por %p348, %p349
      %p351 = scmp.ne.s32.totalorder %s342, %s343
      %p352 = scmp.eq.s32.totalorder %s38, 0
      %p353 = por %p351, %p352
      %p354 = scmp.ne.s32.totalorder %s342, %s343
      %p355 = scmp.eq.s32.totalorder %s39, 1
      %p356 = por %p354, %p355
      %p358 = scmp.ne.s32.totalorder %s343, %s357
      %p359 = scmp.eq.s32.totalorder %s39, 0
      %p360 = por %p358, %p359
      %s362 = sadd.s32 %s361, 1
      %p365 = scmp.eq.s32.totalorder %s33, 1
      %p366 = scmp.ne.s32.totalorder %s361, %s363
      %p367 = scmp.eq.s32.totalorder %s33, 0
      %p368 = por %p366, %p367
      %p369 = scmp.ne.s32.totalorder %s361, %s363
      %p370 = scmp.eq.s32.totalorder %s38, 1
      %p371 = por %p369, %p370
      %p372 = scmp.ne.s32.totalorder %s363, %s364
      %p373 = scmp.eq.s32.totalorder %s38, 0
      %p374 = por %p372, %p373
      %p375 = scmp.ne.s32.totalorder %s363, %s364
      %p376 = scmp.eq.s32.totalorder %s39, 1
      %p377 = por %p375, %p376
      %p379 = scmp.ne.s32.totalorder %s364, %s378
      %p380 = scmp.eq.s32.totalorder %s39, 0
      %p381 = por %p379, %p380
      %s383 = sadd.s32 %s382, 1
      %p386 = scmp.eq.s32.totalorder %s33, 1
      %p387 = scmp.ne.s32.totalorder %s382, %s384
      %p388 = scmp.eq.s32.totalorder %s33, 0
      %p389 = por %p387, %p388
      %p390 = scmp.ne.s32.totalorder %s382, %s384
      %p391 = scmp.eq.s32.totalorder %s38, 1
      %p392 = por %p390, %p391
      %p393 = scmp.ne.s32.totalorder %s384, %s385
      %p394 = scmp.eq.s32.totalorder %s38, 0
      %p395 = por %p393, %p394
      %p396 = scmp.ne.s32.totalorder %s384, %s385
      %p397 = scmp.eq.s32.totalorder %s39, 1
      %p398 = por %p396, %p397
      %p400 = scmp.ne.s32.totalorder %s385, %s399
      %p401 = scmp.eq.s32.totalorder %s39, 0
      %p402 = por %p400, %p401
      %s404 = sadd.s32 %s403, 1
      %p407 = scmp.eq.s32.totalorder %s33, 1
      %p408 = scmp.ne.s32.totalorder %s403, %s405
      %p409 = scmp.eq.s32.totalorder %s33, 0
      %p410 = por %p408, %p409
      %p411 = scmp.ne.s32.totalorder %s403, %s405
      %p412 = scmp.eq.s32.totalorder %s38, 1
      %p413 = por %p411, %p412
      %p414 = scmp.ne.s32.totalorder %s405, %s406
      %p415 = scmp.eq.s32.totalorder %s38, 0
      %p416 = por %p414, %p415
      %p417 = scmp.ne.s32.totalorder %s405, %s406
      %p418 = scmp.eq.s32.totalorder %s39, 1
      %p419 = por %p417, %p418
      %p421 = scmp.ne.s32.totalorder %s406, %s420
      %p422 = scmp.eq.s32.totalorder %s39, 0
      %p423 = por %p421, %p422
      %s425 = sadd.s32 %s424, 1
      %p428 = scmp.eq.s32.totalorder %s33, 1
      %p429 = scmp.ne.s32.totalorder %s424, %s426
      %p430 = scmp.eq.s32.totalorder %s33, 0
      %p431 = por %p429, %p430
      %p432 = scmp.ne.s32.totalorder %s424, %s426
      %p433 = scmp.eq.s32.totalorder %s38, 1
      %p434 = por %p432, %p433
      %p435 = scmp.ne.s32.totalorder %s426, %s427
      %p436 = scmp.eq.s32.totalorder %s38, 0
      %p437 = por %p435, %p436
      %p438 = scmp.ne.s32.totalorder %s426, %s427
      %p439 = scmp.eq.s32.totalorder %s39, 1
      %p440 = por %p438, %p439
      %p442 = scmp.ne.s32.totalorder %s427, %s441
      %p443 = scmp.eq.s32.totalorder %s39, 0
      %p444 = por %p442, %p443
      %s445 = ssub.s32 %s33, %s40
      %p446 = scmp.eq.s32.totalorder %s445, 0
      %s448 = sadd.s32 %s447, 1
      %s449 = scalar_select %p446, %s447, %s448
      %p452 = pneg %p446
      %p453 = scmp.eq.s32.totalorder %s33, 1
      %p454 = por %p452, %p453
      %p455 = scmp.ne.s32.totalorder %s447, %s450
      %p456 = scmp.eq.s32.totalorder %s33, 0
      %p457 = por %p455, %p456
      %p458 = scmp.ne.s32.totalorder %s447, %s450
      %p459 = scmp.eq.s32.totalorder %s38, 1
      %p460 = por %p458, %p459
      %p461 = scmp.ne.s32.totalorder %s450, %s451
      %p462 = scmp.eq.s32.totalorder %s38, 0
      %p463 = por %p461, %p462
      %p464 = scmp.ne.s32.totalorder %s450, %s451
      %p465 = scmp.eq.s32.totalorder %s39, 1
      %p466 = por %p464, %p465
      %p468 = scmp.ne.s32.totalorder %s451, %s467
      %p469 = scmp.eq.s32.totalorder %s39, 0
      %p470 = por %p468, %p469
      %p471 = scmp.le.s32.totalorder 1, %s33
      %p472 = scmp.lt.s32.totalorder %s33, 3
      %p473 = pnand %p471, %p472
      %p474 = pneg %p473
      // Predicated region
      $region9: #{tpu_custom_call.1} parent=5 // pred_check
        _
      $region10: #{tpu_custom_call.1} parent=5 // pred_check_branch
        %476 = sbr.rel (%p473) target = $region12
      $region11: #{tpu_custom_call.1} parent=5 // pred_region
        %s477 = ssub.s32 %s33, 1
        // Predicated region
        $region13: #{tpu_custom_call.1} parent=11 // pred_check
          %p478 = pneg %p80
        $region14: #{tpu_custom_call.1} parent=11 // pred_check_branch
          %480 = sbr.rel (%p478) target = $region16
        $region15: #{tpu_custom_call.1} parent=11 // pred_region
          %s482 = ssub.s32 256, 256
          %483 = vsyncadd [#allocation3], %s482
          %s484 = sshll.u32 [#allocation2], 4
          %s485 = int_to_ptr.vmem [resolvable:$true] %s484
          %490 = dma.hbm_to_vmem [thread:$0]  %s1, 256, %s485, [#allocation3], 128, 128, 8
        $region16: #{tpu_custom_call.1} parent=11 // pred_fallthru
          _
        // Predicated region
        $region17: #{tpu_custom_call.1} parent=11 // pred_check
          %p491 = pneg %p101
        $region18: #{tpu_custom_call.1} parent=11 // pred_check_branch
          %493 = sbr.rel (%p491) target = $region20
        $region19: #{tpu_custom_call.1} parent=11 // pred_region
          %s495 = ssub.s32 64, 64
          %496 = vsyncadd [#allocation6], %s495
          %s498 = sshll.u32 [#allocation5], 4
          %s499 = int_to_ptr.vmem [resolvable:$true] %s498
          %501 = dma.hbm_to_vmem [thread:$0]  %s2, 64, %s499, [#allocation6]
        $region20: #{tpu_custom_call.1} parent=11 // pred_fallthru
          _
        // Predicated region
        $region21: #{tpu_custom_call.1} parent=11 // pred_check
          %p502 = pneg %p122
        $region22: #{tpu_custom_call.1} parent=11 // pred_check_branch
          %504 = sbr.rel (%p502) target = $region24
        $region23: #{tpu_custom_call.1} parent=11 // pred_region
          _
        $region24: #{tpu_custom_call.1} parent=11 // pred_fallthru
          _
        // Predicated region
        $region25: #{tpu_custom_call.1} parent=11 // pred_check
          %p505 = pneg %p143
        $region26: #{tpu_custom_call.1} parent=11 // pred_check_branch
          %507 = sbr.rel (%p505) target = $region28
        $region27: #{tpu_custom_call.1} parent=11 // pred_region
          _
        $region28: #{tpu_custom_call.1} parent=11 // pred_fallthru
          _
        // Predicated region
        $region29: #{tpu_custom_call.1} parent=11 // pred_check
          %p508 = pneg %p164
        $region30: #{tpu_custom_call.1} parent=11 // pred_check_branch
          %510 = sbr.rel (%p508) target = $region32
        $region31: #{tpu_custom_call.1} parent=11 // pred_region
          _
        $region32: #{tpu_custom_call.1} parent=11 // pred_fallthru
          _
        // Predicated region
        $region33: #{tpu_custom_call.1} parent=11 // pred_check
          %p511 = pneg %p185
        $region34: #{tpu_custom_call.1} parent=11 // pred_check_branch
          %513 = sbr.rel (%p511) target = $region36
        $region35: #{tpu_custom_call.1} parent=11 // pred_region
          %s515 = ssub.s32 48, 48
          %516 = vsyncadd [#allocation6], %s515
          %s517 = sshll.u32 [#allocation7], 4
          %s518 = int_to_ptr.vmem [resolvable:$true] %s517
          %523 = dma.hbm_to_vmem [thread:$0]  %s6, 48, %s518, [#allocation6], 16, 16, 1
        $region36: #{tpu_custom_call.1} parent=11 // pred_fallthru
          _
        // Predicated region
        $region37: #{tpu_custom_call.1} parent=11 // pred_check
          %p524 = pneg %p206
        $region38: #{tpu_custom_call.1} parent=11 // pred_check_branch
          %526 = sbr.rel (%p524) target = $region40
        $region39: #{tpu_custom_call.1} parent=11 // pred_region
          %s528 = ssub.s32 48, 48
          %529 = vsyncadd [#allocation9], %s528
          %s530 = sshll.u32 [#allocation8], 4
          %s531 = int_to_ptr.vmem [resolvable:$true] %s530
          %536 = dma.hbm_to_vmem [thread:$0]  %s7, 48, %s531, [#allocation9], 16, 16, 1
        $region40: #{tpu_custom_call.1} parent=11 // pred_fallthru
          _
        // Predicated region
        $region41: #{tpu_custom_call.1} parent=11 // pred_check
          %p537 = pneg %p227
        $region42: #{tpu_custom_call.1} parent=11 // pred_check_branch
          %539 = sbr.rel (%p537) target = $region44
        $region43: #{tpu_custom_call.1} parent=11 // pred_region
          %s541 = ssub.s32 48, 48
          %542 = vsyncadd [#allocation9], %s541
          %s543 = sshll.u32 [#allocation10], 4
          %s544 = int_to_ptr.vmem [resolvable:$true] %s543
          %549 = dma.hbm_to_vmem [thread:$0]  %s8, 48, %s544, [#allocation9], 16, 16, 1
        $region44: #{tpu_custom_call.1} parent=11 // pred_fallthru
          _
        // Predicated region
        $region45: #{tpu_custom_call.1} parent=11 // pred_check
          %p550 = pneg %p248
        $region46: #{tpu_custom_call.1} parent=11 // pred_check_branch
          %552 = sbr.rel (%p550) target = $region48
        $region47: #{tpu_custom_call.1} parent=11 // pred_region
          %s554 = ssub.s32 48, 48
          %555 = vsyncadd [#allocation12], %s554
          %s556 = sshll.u32 [#allocation11], 4
          %s557 = int_to_ptr.vmem [resolvable:$true] %s556
          %562 = dma.hbm_to_vmem [thread:$0]  %s9, 48, %s557, [#allocation12], 16, 16, 1
        $region48: #{tpu_custom_call.1} parent=11 // pred_fallthru
          _
        // Predicated region
        $region49: #{tpu_custom_call.1} parent=11 // pred_check
          %p563 = pneg %p269
        $region50: #{tpu_custom_call.1} parent=11 // pred_check_branch
          %565 = sbr.rel (%p563) target = $region52
        $region51: #{tpu_custom_call.1} parent=11 // pred_region
          _
        $region52: #{tpu_custom_call.1} parent=11 // pred_fallthru
          _
        // Predicated region
        $region53: #{tpu_custom_call.1} parent=11 // pred_check
          %p566 = pneg %p290
        $region54: #{tpu_custom_call.1} parent=11 // pred_check_branch
          %568 = sbr.rel (%p566) target = $region56
        $region55: #{tpu_custom_call.1} parent=11 // pred_region
          %s570 = ssub.s32 3072, 3072
          %571 = vsyncadd [#allocation12], %s570
          %s572 = sshll.u32 [#allocation13], 4
          %s573 = int_to_ptr.vmem [resolvable:$true] %s572
          %578 = dma.hbm_to_vmem [thread:$0]  %s11, 3072, %s573, [#allocation12], 128, 128, 8
        $region56: #{tpu_custom_call.1} parent=11 // pred_fallthru
          _
        // Predicated region
        $region57: #{tpu_custom_call.1} parent=11 // pred_check
          %p579 = pneg %p311
        $region58: #{tpu_custom_call.1} parent=11 // pred_check_branch
          %581 = sbr.rel (%p579) target = $region60
        $region59: #{tpu_custom_call.1} parent=11 // pred_region
          _
        $region60: #{tpu_custom_call.1} parent=11 // pred_fallthru
          _
        // Predicated region
        $region61: #{tpu_custom_call.1} parent=11 // pred_check
          %p582 = pneg %p332
        $region62: #{tpu_custom_call.1} parent=11 // pred_check_branch
          %584 = sbr.rel (%p582) target = $region64
        $region63: #{tpu_custom_call.1} parent=11 // pred_region
          _
        $region64: #{tpu_custom_call.1} parent=11 // pred_fallthru
          _
        // Predicated region
        $region65: #{tpu_custom_call.1} parent=11 // pred_check
          %p585 = pneg %p353
        $region66: #{tpu_custom_call.1} parent=11 // pred_check_branch
          %587 = sbr.rel (%p585) target = $region68
        $region67: #{tpu_custom_call.1} parent=11 // pred_region
          _
        $region68: #{tpu_custom_call.1} parent=11 // pred_fallthru
          _
        // Predicated region
        $region69: #{tpu_custom_call.1} parent=11 // pred_check
          %p588 = pneg %p374
        $region70: #{tpu_custom_call.1} parent=11 // pred_check_branch
          %590 = sbr.rel (%p588) target = $region72
        $region71: #{tpu_custom_call.1} parent=11 // pred_region
          _
        $region72: #{tpu_custom_call.1} parent=11 // pred_fallthru
          _
        // Predicated region
        $region73: #{tpu_custom_call.1} parent=11 // pred_check
          %p591 = pneg %p395
        $region74: #{tpu_custom_call.1} parent=11 // pred_check_branch
          %593 = sbr.rel (%p591) target = $region76
        $region75: #{tpu_custom_call.1} parent=11 // pred_region
          %s595 = ssub.s32 1024, 1024
          %596 = vsyncadd [#allocation15], %s595
          %s597 = sshll.u32 [#allocation14], 4
          %s598 = int_to_ptr.vmem [resolvable:$true] %s597
          %603 = dma.hbm_to_vmem [thread:$0]  %s16, 1024, %s598, [#allocation15], 128, 128, 8
        $region76: #{tpu_custom_call.1} parent=11 // pred_fallthru
          _
        // Predicated region
        $region77: #{tpu_custom_call.1} parent=11 // pred_check
          %p604 = pneg %p416
        $region78: #{tpu_custom_call.1} parent=11 // pred_check_branch
          %606 = sbr.rel (%p604) target = $region80
        $region79: #{tpu_custom_call.1} parent=11 // pred_region
          %s608 = ssub.s32 1024, 1024
          %609 = vsyncadd [#allocation15], %s608
          %s610 = sshll.u32 [#allocation16], 4
          %s611 = int_to_ptr.vmem [resolvable:$true] %s610
          %616 = dma.hbm_to_vmem [thread:$0]  %s17, 1024, %s611, [#allocation15], 128, 128, 8
        $region80: #{tpu_custom_call.1} parent=11 // pred_fallthru
          _
        // Predicated region
        $region81: #{tpu_custom_call.1} parent=11 // pred_check
          %p617 = pneg %p437
        $region82: #{tpu_custom_call.1} parent=11 // pred_check_branch
          %619 = sbr.rel (%p617) target = $region84
        $region83: #{tpu_custom_call.1} parent=11 // pred_region
          _
        $region84: #{tpu_custom_call.1} parent=11 // pred_fallthru
          _
      $region12: #{tpu_custom_call.1} parent=5 // pred_fallthru
        _
      %p620 = scmp.lt.s32.totalorder %s33, 2
      // Predicated region
      $region85: #{tpu_custom_call.1} parent=5 // pred_check
        %p621 = pneg %p620
      $region86: #{tpu_custom_call.1} parent=5 // pred_check_branch
        %623 = sbr.rel (%p621) target = $region88
      $region87: #{tpu_custom_call.1} parent=5 // pred_region
        // Predicated region
        $region89: #{tpu_custom_call.1} parent=87 // pred_check
          %p624 = pneg %p53
        $region90: #{tpu_custom_call.1} parent=87 // pred_check_branch
          %626 = sbr.rel (%p624) target = $region92
        $region91: #{tpu_custom_call.1} parent=87 // pred_region
          %p627 = scmp.lt.s32.totalorder %s33, 1
          %s628 = scalar_select %p627, %s33, 1
          %s629 = smul.addr %s628, 2
          %s630 = smul.addr %s629, 8
          %s631 = scalar_lea.vmem %s0, %s630
        $region92: #{tpu_custom_call.1} parent=87 // pred_fallthru
          _
      $region88: #{tpu_custom_call.1} parent=5 // pred_fallthru
        _
      %p632 = scmp.le.s32.totalorder 1, %s33
      %p633 = scmp.lt.s32.totalorder %s33, 3
      %p634 = pnand %p632, %p633
      %p635 = pneg %p634
      // Predicated region
      $region93: #{tpu_custom_call.1} parent=5 // pred_check
        _
      $region94: #{tpu_custom_call.1} parent=5 // pred_check_branch
        %637 = sbr.rel (%p634) target = $region96
      $region95: #{tpu_custom_call.1} parent=5 // pred_region
        %s638 = ssub.s32 %s33, 1
        // Predicated region
        $region97: #{tpu_custom_call.1} parent=95 // pred_check
          %p639 = pneg %p80
        $region98: #{tpu_custom_call.1} parent=95 // pred_check_branch
          %641 = sbr.rel (%p639) target = $region100
        $region99: #{tpu_custom_call.1} parent=95 // pred_region
          %642 = dma.done [#allocation3], 256
        $region100: #{tpu_custom_call.1} parent=95 // pred_fallthru
          _
        // Predicated region
        $region101: #{tpu_custom_call.1} parent=95 // pred_check
          %p643 = pneg %p101
        $region102: #{tpu_custom_call.1} parent=95 // pred_check_branch
          %645 = sbr.rel (%p643) target = $region104
        $region103: #{tpu_custom_call.1} parent=95 // pred_region
          %646 = dma.done [#allocation6], 64
        $region104: #{tpu_custom_call.1} parent=95 // pred_fallthru
          _
        // Predicated region
        $region105: #{tpu_custom_call.1} parent=95 // pred_check
          %p647 = pneg %p185
        $region106: #{tpu_custom_call.1} parent=95 // pred_check_branch
          %649 = sbr.rel (%p647) target = $region108
        $region107: #{tpu_custom_call.1} parent=95 // pred_region
          %650 = dma.done [#allocation6], 48
        $region108: #{tpu_custom_call.1} parent=95 // pred_fallthru
          _
        // Predicated region
        $region109: #{tpu_custom_call.1} parent=95 // pred_check
          %p651 = pneg %p206
        $region110: #{tpu_custom_call.1} parent=95 // pred_check_branch
          %653 = sbr.rel (%p651) target = $region112
        $region111: #{tpu_custom_call.1} parent=95 // pred_region
          %654 = dma.done [#allocation9], 48
        $region112: #{tpu_custom_call.1} parent=95 // pred_fallthru
          _
        // Predicated region
        $region113: #{tpu_custom_call.1} parent=95 // pred_check
          %p655 = pneg %p227
        $region114: #{tpu_custom_call.1} parent=95 // pred_check_branch
          %657 = sbr.rel (%p655) target = $region116
        $region115: #{tpu_custom_call.1} parent=95 // pred_region
          %658 = dma.done [#allocation9], 48
        $region116: #{tpu_custom_call.1} parent=95 // pred_fallthru
          _
        // Predicated region
        $region117: #{tpu_custom_call.1} parent=95 // pred_check
          %p659 = pneg %p248
        $region118: #{tpu_custom_call.1} parent=95 // pred_check_branch
          %661 = sbr.rel (%p659) target = $region120
        $region119: #{tpu_custom_call.1} parent=95 // pred_region
          %662 = dma.done [#allocation12], 48
        $region120: #{tpu_custom_call.1} parent=95 // pred_fallthru
          _
        // Predicated region
        $region121: #{tpu_custom_call.1} parent=95 // pred_check
          %p663 = pneg %p290
        $region122: #{tpu_custom_call.1} parent=95 // pred_check_branch
          %665 = sbr.rel (%p663) target = $region124
        $region123: #{tpu_custom_call.1} parent=95 // pred_region
          %666 = dma.done [#allocation12], 3072
        $region124: #{tpu_custom_call.1} parent=95 // pred_fallthru
          _
        // Predicated region
        $region125: #{tpu_custom_call.1} parent=95 // pred_check
          %p667 = pneg %p395
        $region126: #{tpu_custom_call.1} parent=95 // pred_check_branch
          %669 = sbr.rel (%p667) target = $region128
        $region127: #{tpu_custom_call.1} parent=95 // pred_region
          %670 = dma.done [#allocation15], 1024
        $region128: #{tpu_custom_call.1} parent=95 // pred_fallthru
          _
        // Predicated region
        $region129: #{tpu_custom_call.1} parent=95 // pred_check
          %p671 = pneg %p416
        $region130: #{tpu_custom_call.1} parent=95 // pred_check_branch
          %673 = sbr.rel (%p671) target = $region132
        $region131: #{tpu_custom_call.1} parent=95 // pred_region
          %674 = dma.done [#allocation15], 1024
        $region132: #{tpu_custom_call.1} parent=95 // pred_fallthru
          _
        %p675 = scmp.lt.s32.totalorder %s38, 1
        %s676 = scalar_select %p675, %s38, 1
        %s677 = smul.addr %s676, 2
        %s678 = smul.addr %s677, 8
        %s679 = scalar_lea.vmem %s0, %s678
        %p680 = pneg %p59
        %p681 = pneg %p56
        %p682 = pneg %p80
        %p683 = pneg %p77
        %p684 = pneg %p101
        %p685 = pneg %p98
        %p686 = pneg %p122
        %p687 = pneg %p119
        %p688 = pneg %p143
        %p689 = pneg %p140
        %p690 = pneg %p164
        %p691 = pneg %p161
        %p692 = pneg %p185
        %p693 = pneg %p182
        %p694 = pneg %p206
        %p695 = pneg %p203
        %p696 = pneg %p227
        %p697 = pneg %p224
        %p698 = pneg %p248
        %p699 = pneg %p245
        %p700 = pneg %p269
        %p701 = pneg %p266
        %p702 = pneg %p290
        %p703 = pneg %p287
        %p704 = pneg %p311
        %p705 = pneg %p308
        %p706 = pneg %p332
        %p707 = pneg %p329
        %p708 = pneg %p353
        %p709 = pneg %p350
        %p710 = pneg %p374
        %p711 = pneg %p371
        %p712 = pneg %p395
        %p713 = pneg %p392
        %p714 = pneg %p416
        %p715 = pneg %p413
        %p716 = pneg %p437
        %p717 = pneg %p434
        %p718 = pneg %p463
        %p719 = pneg %p460
        %s720 = sand.u32 %s450, 1
        %s721 = scalar_lea.sflag [#allocation4], %s720
        %s722 = sand.u32 %s450, 1
        %s723 = scalar_lea.vmem [#allocation17], %s722
        %p724 = scmp.lt.s32.totalorder %s38, 1
        %s725 = scalar_select %p724, %s38, 1
        %s726 = smul.addr %s725, 2
        %s727 = smul.addr %s726, 8
        %s728 = scalar_lea.vmem %s0, %s727
        %v730 = vld [vmem:[%s728] sm:$0xff]
        %v731 = vld [vmem:[%s728 + $0x8] sm:$0x1]
        %v732 = vld [vmem:[#allocation2] sm:$0xff]
        %v733 = vld [vmem:[#allocation2 + $0x8] sm:$0x1]
        %v734 = vld [vmem:[#allocation5] sm:$0xf]
        %v735 = vld [vmem:[%s3] sm:$0xff]
        %v736 = vld [vmem:[%s3 + $0x8] sm:$0xff]
        %v737 = vld [vmem:[%s3 + $0x10] sm:$0xff]
        %v738 = vld [vmem:[%s3 + $0x18] sm:$0xff]
        %v739 = vld [vmem:[%s3 + $0x20] sm:$0xff]
        %v740 = vld [vmem:[%s3 + $0x28] sm:$0xff]
        %v741 = vld [vmem:[%s3 + $0x30] sm:$0xff]
        %v742 = vld [vmem:[%s3 + $0x38] sm:$0xff]
        %v743 = vld [vmem:[%s3 + $0x40] sm:$0xff]
        %v744 = vld [vmem:[%s3 + $0x48] sm:$0xff]
        %v745 = vld [vmem:[%s3 + $0x50] sm:$0xff]
        %v746 = vld [vmem:[%s3 + $0x58] sm:$0xff]
        %v747 = vld [vmem:[%s3 + $0x60] sm:$0xff]
        %v748 = vld [vmem:[%s3 + $0x68] sm:$0xff]
        %v749 = vld [vmem:[%s3 + $0x70] sm:$0xff]
        %v750 = vld [vmem:[%s3 + $0x78] sm:$0xff]
        %v751 = vld [vmem:[%s3 + $0x80] sm:$0xff]
        %v752 = vld [vmem:[%s3 + $0x88] sm:$0xff]
        %v753 = vld [vmem:[%s3 + $0x90] sm:$0xff]
        %v754 = vld [vmem:[%s3 + $0x98] sm:$0xff]
        %v755 = vld [vmem:[%s3 + $0xa0] sm:$0xff]
        %v756 = vld [vmem:[%s3 + $0xa8] sm:$0xff]
        %v757 = vld [vmem:[%s3 + $0xb0] sm:$0xff]
        %v758 = vld [vmem:[%s3 + $0xb8] sm:$0xff]
        %v759 = vld [vmem:[%s3 + $0xc0] sm:$0xff]
        %v760 = vld [vmem:[%s3 + $0xc8] sm:$0xff]
        %v761 = vld [vmem:[%s3 + $0xd0] sm:$0xff]
        %v762 = vld [vmem:[%s3 + $0xd8] sm:$0xff]
        %v763 = vld [vmem:[%s3 + $0xe0] sm:$0xff]
        %v764 = vld [vmem:[%s3 + $0xe8] sm:$0xff]
        %v765 = vld [vmem:[%s3 + $0xf0] sm:$0xff]
        %v766 = vld [vmem:[%s3 + $0xf8] sm:$0xff]
        %v767 = vld [vmem:[%s3 + $0x100] sm:$0xff]
        %v768 = vld [vmem:[%s3 + $0x108] sm:$0xff]
        %v769 = vld [vmem:[%s3 + $0x110] sm:$0xff]
        %v770 = vld [vmem:[%s3 + $0x118] sm:$0xff]
        %v771 = vld [vmem:[%s3 + $0x120] sm:$0xff]
        %v772 = vld [vmem:[%s3 + $0x128] sm:$0xff]
        %v773 = vld [vmem:[%s3 + $0x130] sm:$0xff]
        %v774 = vld [vmem:[%s3 + $0x138] sm:$0xff]
        %v775 = vld [vmem:[%s3 + $0x140] sm:$0xff]
        %v776 = vld [vmem:[%s3 + $0x148] sm:$0xff]
        %v777 = vld [vmem:[%s3 + $0x150] sm:$0xff]
        %v778 = vld [vmem:[%s3 + $0x158] sm:$0xff]
        %v779 = vld [vmem:[%s3 + $0x160] sm:$0xff]
        %v780 = vld [vmem:[%s3 + $0x168] sm:$0xff]
        %v781 = vld [vmem:[%s3 + $0x170] sm:$0xff]
        %v782 = vld [vmem:[%s3 + $0x178] sm:$0xff]
        %v783 = vld [vmem:[%s4] sm:$0x3]
        %v784 = vld [vmem:[%s4 + $0x2] sm:$0x3]
        %v785 = vld [vmem:[%s4 + $0x4] sm:$0x3]
        %v786 = vld [vmem:[%s5] sm:$0xff]
        %v787 = vld [vmem:[%s5 + $0x8] sm:$0xff]
        %v788 = vld [vmem:[%s5 + $0x10] sm:$0xff]
        %v789 = vld [vmem:[%s5 + $0x18] sm:$0xff]
        %v790 = vld [vmem:[%s5 + $0x20] sm:$0xff]
        %v791 = vld [vmem:[%s5 + $0x28] sm:$0xff]
        %v792 = vld [vmem:[%s5 + $0x30] sm:$0xff]
        %v793 = vld [vmem:[%s5 + $0x38] sm:$0xff]
        %v794 = vld [vmem:[%s5 + $0x40] sm:$0xff]
        %v795 = vld [vmem:[%s5 + $0x48] sm:$0xff]
        %v796 = vld [vmem:[%s5 + $0x50] sm:$0xff]
        %v797 = vld [vmem:[%s5 + $0x58] sm:$0xff]
        %v798 = vld [vmem:[%s5 + $0x60] sm:$0xff]
        %v799 = vld [vmem:[%s5 + $0x68] sm:$0xff]
        %v800 = vld [vmem:[%s5 + $0x70] sm:$0xff]
        %v801 = vld [vmem:[%s5 + $0x78] sm:$0xff]
        %v802 = vld [vmem:[%s5 + $0x80] sm:$0xff]
        %v803 = vld [vmem:[%s5 + $0x88] sm:$0xff]
        %v804 = vld [vmem:[%s5 + $0x90] sm:$0xff]
        %v805 = vld [vmem:[%s5 + $0x98] sm:$0xff]
        %v806 = vld [vmem:[%s5 + $0xa0] sm:$0xff]
        %v807 = vld [vmem:[%s5 + $0xa8] sm:$0xff]
        %v808 = vld [vmem:[%s5 + $0xb0] sm:$0xff]
        %v809 = vld [vmem:[%s5 + $0xb8] sm:$0xff]
        %v810 = vld [vmem:[#allocation7] sm:$0x1]
        %v811 = vld [vmem:[#allocation7 + $0x1] sm:$0x1]
        %v812 = vld [vmem:[#allocation7 + $0x2] sm:$0x1]
        %v813 = vld [vmem:[#allocation8] sm:$0x1]
        %v814 = vld [vmem:[#allocation8 + $0x1] sm:$0x1]
        %v815 = vld [vmem:[#allocation8 + $0x2] sm:$0x1]
        %v816 = vld [vmem:[#allocation10] sm:$0x1]
        %v817 = vld [vmem:[#allocation10 + $0x1] sm:$0x1]
        %v818 = vld [vmem:[#allocation10 + $0x2] sm:$0x1]
        %v819 = vld [vmem:[#allocation11] sm:$0x1]
        %v820 = vld [vmem:[#allocation11 + $0x1] sm:$0x1]
        %v821 = vld [vmem:[#allocation11 + $0x2] sm:$0x1]
        %v822 = vld [vmem:[%s10] sm:$0x1]
        %v823 = vld [vmem:[%s10 + $0x1] sm:$0x1]
        %v824 = vld [vmem:[%s10 + $0x2] sm:$0x1]
        %v825 = vld [vmem:[#allocation13] sm:$0xff]
        %v826 = vld [vmem:[#allocation13 + $0x8] sm:$0xff]
        %v827 = vld [vmem:[#allocation13 + $0x10] sm:$0xff]
        %v828 = vld [vmem:[#allocation13 + $0x18] sm:$0xff]
        %v829 = vld [vmem:[#allocation13 + $0x20] sm:$0xff]
        %v830 = vld [vmem:[#allocation13 + $0x28] sm:$0xff]
        %v831 = vld [vmem:[#allocation13 + $0x30] sm:$0xff]
        %v832 = vld [vmem:[#allocation13 + $0x38] sm:$0xff]
        %v833 = vld [vmem:[#allocation13 + $0x40] sm:$0xff]
        %v834 = vld [vmem:[#allocation13 + $0x48] sm:$0xff]
        %v835 = vld [vmem:[#allocation13 + $0x50] sm:$0xff]
        %v836 = vld [vmem:[#allocation13 + $0x58] sm:$0xff]
        %v837 = vld [vmem:[#allocation13 + $0x60] sm:$0xff]
        %v838 = vld [vmem:[#allocation13 + $0x68] sm:$0xff]
        %v839 = vld [vmem:[#allocation13 + $0x70] sm:$0xff]
        %v840 = vld [vmem:[#allocation13 + $0x78] sm:$0xff]
        %v841 = vld [vmem:[#allocation13 + $0x80] sm:$0xff]
        %v842 = vld [vmem:[#allocation13 + $0x88] sm:$0xff]
        %v843 = vld [vmem:[#allocation13 + $0x90] sm:$0xff]
        %v844 = vld [vmem:[#allocation13 + $0x98] sm:$0xff]
        %v845 = vld [vmem:[#allocation13 + $0xa0] sm:$0xff]
        %v846 = vld [vmem:[#allocation13 + $0xa8] sm:$0xff]
        %v847 = vld [vmem:[#allocation13 + $0xb0] sm:$0xff]
        %v848 = vld [vmem:[#allocation13 + $0xb8] sm:$0xff]
        %v849 = vld [vmem:[%s12] sm:$0x1]
        %v850 = vld [vmem:[%s12 + $0x1] sm:$0x1]
        %v851 = vld [vmem:[%s12 + $0x2] sm:$0x1]
        %v852 = vld [vmem:[%s13] sm:$0xff]
        %v853 = vld [vmem:[%s13 + $0x8] sm:$0xff]
        %v854 = vld [vmem:[%s13 + $0x10] sm:$0xff]
        %v855 = vld [vmem:[%s13 + $0x18] sm:$0xff]
        %v856 = vld [vmem:[%s13 + $0x20] sm:$0xff]
        %v857 = vld [vmem:[%s13 + $0x28] sm:$0xff]
        %v858 = vld [vmem:[%s13 + $0x30] sm:$0xff]
        %v859 = vld [vmem:[%s13 + $0x38] sm:$0xff]
        %v860 = vld [vmem:[%s13 + $0x40] sm:$0xff]
        %v861 = vld [vmem:[%s13 + $0x48] sm:$0xff]
        %v862 = vld [vmem:[%s13 + $0x50] sm:$0xff]
        %v863 = vld [vmem:[%s13 + $0x58] sm:$0xff]
        %v864 = vld [vmem:[%s13 + $0x60] sm:$0xff]
        %v865 = vld [vmem:[%s13 + $0x68] sm:$0xff]
        %v866 = vld [vmem:[%s13 + $0x70] sm:$0xff]
        %v867 = vld [vmem:[%s13 + $0x78] sm:$0xff]
        %v868 = vld [vmem:[%s13 + $0x80] sm:$0xff]
        %v869 = vld [vmem:[%s13 + $0x88] sm:$0xff]
        %v870 = vld [vmem:[%s13 + $0x90] sm:$0xff]
        %v871 = vld [vmem:[%s13 + $0x98] sm:$0xff]
        %v872 = vld [vmem:[%s13 + $0xa0] sm:$0xff]
        %v873 = vld [vmem:[%s13 + $0xa8] sm:$0xff]
        %v874 = vld [vmem:[%s13 + $0xb0] sm:$0xff]
        %v875 = vld [vmem:[%s13 + $0xb8] sm:$0xff]
        %v876 = vld [vmem:[%s13 + $0xc0] sm:$0xff]
        %v877 = vld [vmem:[%s13 + $0xc8] sm:$0xff]
        %v878 = vld [vmem:[%s13 + $0xd0] sm:$0xff]
        %v879 = vld [vmem:[%s13 + $0xd8] sm:$0xff]
        %v880 = vld [vmem:[%s13 + $0xe0] sm:$0xff]
        %v881 = vld [vmem:[%s13 + $0xe8] sm:$0xff]
        %v882 = vld [vmem:[%s13 + $0xf0] sm:$0xff]
        %v883 = vld [vmem:[%s13 + $0xf8] sm:$0xff]
        %v884 = vld [vmem:[%s13 + $0x100] sm:$0xff]
        %v885 = vld [vmem:[%s13 + $0x108] sm:$0xff]
        %v886 = vld [vmem:[%s13 + $0x110] sm:$0xff]
        %v887 = vld [vmem:[%s13 + $0x118] sm:$0xff]
        %v888 = vld [vmem:[%s13 + $0x120] sm:$0xff]
        %v889 = vld [vmem:[%s13 + $0x128] sm:$0xff]
        %v890 = vld [vmem:[%s13 + $0x130] sm:$0xff]
        %v891 = vld [vmem:[%s13 + $0x138] sm:$0xff]
        %v892 = vld [vmem:[%s13 + $0x140] sm:$0xff]
        %v893 = vld [vmem:[%s13 + $0x148] sm:$0xff]
        %v894 = vld [vmem:[%s13 + $0x150] sm:$0xff]
        %v895 = vld [vmem:[%s13 + $0x158] sm:$0xff]
        %v896 = vld [vmem:[%s13 + $0x160] sm:$0xff]
        %v897 = vld [vmem:[%s13 + $0x168] sm:$0xff]
        %v898 = vld [vmem:[%s13 + $0x170] sm:$0xff]
        %v899 = vld [vmem:[%s13 + $0x178] sm:$0xff]
        %v900 = vld [vmem:[%s14] sm:$0x1]
        %v901 = vld [vmem:[%s14 + $0x1] sm:$0x1]
        %v902 = vld [vmem:[%s14 + $0x2] sm:$0x1]
        %v903 = vld [vmem:[%s15] sm:$0xff]
        %v904 = vld [vmem:[%s15 + $0x8] sm:$0xff]
        %v905 = vld [vmem:[%s15 + $0x10] sm:$0xff]
        %v906 = vld [vmem:[%s15 + $0x18] sm:$0xff]
        %v907 = vld [vmem:[%s15 + $0x20] sm:$0xff]
        %v908 = vld [vmem:[%s15 + $0x28] sm:$0xff]
        %v909 = vld [vmem:[%s15 + $0x30] sm:$0xff]
        %v910 = vld [vmem:[%s15 + $0x38] sm:$0xff]
        %v911 = vld [vmem:[#allocation14] sm:$0xff]
        %v912 = vld [vmem:[#allocation14 + $0x8] sm:$0xff]
        %v913 = vld [vmem:[#allocation14 + $0x10] sm:$0xff]
        %v914 = vld [vmem:[#allocation14 + $0x18] sm:$0xff]
        %v915 = vld [vmem:[#allocation14 + $0x20] sm:$0xff]
        %v916 = vld [vmem:[#allocation14 + $0x28] sm:$0xff]
        %v917 = vld [vmem:[#allocation14 + $0x30] sm:$0xff]
        %v918 = vld [vmem:[#allocation14 + $0x38] sm:$0xff]
        %v919 = vld [vmem:[#allocation16] sm:$0xff]
        %v920 = vld [vmem:[#allocation16 + $0x8] sm:$0xff]
        %v921 = vld [vmem:[#allocation16 + $0x10] sm:$0xff]
        %v922 = vld [vmem:[#allocation16 + $0x18] sm:$0xff]
        %v923 = vld [vmem:[#allocation16 + $0x20] sm:$0xff]
        %v924 = vld [vmem:[#allocation16 + $0x28] sm:$0xff]
        %v925 = vld [vmem:[#allocation16 + $0x30] sm:$0xff]
        %v926 = vld [vmem:[#allocation16 + $0x38] sm:$0xff]
        %v927 = vld [vmem:[%s18] sm:$0x1]
        %v928 = vpack.c.bf16 %v734, %v734
        %v929 = vpack.c.bf16 %v731, %v730
        %vm930 = vcmask 31744
        %v932 = vsel %vm930, %v929, 0
        %vm934 = vcmask 1041408
        %v936 = vsel %vm934, %v928, 0
        %938 = vmatprep.subr.bf16.mxu0 0
        %939 = vmatpush1.bf16.msra.mxu0 %v936
        %940 = vmatprep.subr.bf16.mxu0 0
        %941 = vmatpush1.bf16.msra.mxu0 0
        %942 = vmatprep.subr.bf16.mxu0 0
        %943 = vmatpush1.bf16.msra.mxu0 0
        %944 = vmatprep.subr.bf16.mxu0 0
        %945 = vmatpush1.bf16.msra.mxu0 0
        %946 = vmatprep.subr.bf16.mxu0 0
        %947 = vmatpush1.bf16.msra.mxu0 0
        %948 = vmatprep.subr.bf16.mxu0 0
        %949 = vmatpush1.bf16.msra.mxu0 0
        %950 = vmatprep.subr.bf16.mxu0 0
        %951 = vmatpush1.bf16.msra.mxu0 0
        %952 = vmatprep.subr.bf16.mxu0 0
        %953 = vmatpush1.bf16.msra.mxu0 0
        %954 = vmatprep.subr.bf16.mxu0 0
        %955 = vmatpush1.bf16.msra.mxu0 0
        %956 = vmatprep.subr.bf16.mxu0 0
        %957 = vmatpush1.bf16.msra.mxu0 0
        %958 = vmatprep.subr.bf16.mxu0 0
        %959 = vmatpush1.bf16.msra.mxu0 0
        %960 = vmatprep.subr.bf16.mxu0 0
        %961 = vmatpush1.bf16.msra.mxu0 0
        %962 = vmatprep.subr.bf16.mxu0 0
        %963 = vmatpush1.bf16.msra.mxu0 0
        %964 = vmatprep.subr.bf16.mxu0 0
        %965 = vmatpush1.bf16.msra.mxu0 0
        %966 = vmatprep.subr.bf16.mxu0 0
        %967 = vmatpush1.bf16.msra.mxu0 0
        %968 = vmatprep.subr.bf16.mxu0 0
        %969 = vmatpush1.bf16.msra.mxu0 0
        %970 = vmatprep.mubr.bf16.mxu0 0
        %971 = vmatmul.mubr.bf16.gmra.mrb[0].mxu0 %v932
        %v972 = vpop.f32.mrb[0].mxu0
        %v973 = vadd.f32 %v732, %v972
        %v974 = vpop.f32.mrb[0].mxu0
        %v975 = vpop.f32.mrb[0].mxu0
        %v976 = vadd.f32 %v733, %v975
        %v977 = vpop.f32.mrb[0].mxu0
        %978 = vdwg.mxu0
        %v979 = vpack.c.bf16 %v737, %v735
        %v980 = vpack.c.bf16 %v738, %v736
        %v981 = vpack.c.bf16 %v741, %v739
        %v982 = vpack.c.bf16 %v742, %v740
        %v983 = vpack.c.bf16 %v745, %v743
        %v984 = vpack.c.bf16 %v746, %v744
        %v985 = vpack.c.bf16 %v749, %v747
        %v986 = vpack.c.bf16 %v750, %v748
        %v987 = vpack.c.bf16 %v976, %v973
        %v989 = vlaneseq
        %v990 = vshrl.u32 %v989, 7
        %v991 = vsub.s32 0, %v990
        %v992 = vrot.slane %v783, %v991
        %v993 = vlaneseq
        %v994 = vshrl.u32 %v993, 7
        %v995 = vsub.s32 1, %v994
        %v996 = vrot.slane %v783, %v995
        %vm999 = vcmask 523264
        %v1001 = vsel %vm999, %v987, 0
        %1003 = vmatprep.subr.bf16.mxu0 %v980
        %1004 = vmatpush1.bf16.msra.mxu0 %v979
        %1005 = vmatprep.subr.bf16.mxu0 %v982
        %1006 = vmatpush1.bf16.msra.mxu0 %v981
        %1007 = vmatprep.subr.bf16.mxu0 %v984
        %1008 = vmatpush1.bf16.msra.mxu0 %v983
        %1009 = vmatprep.subr.bf16.mxu0 %v986
        %1010 = vmatpush1.bf16.msra.mxu0 %v985
        %1011 = vmatprep.subr.bf16.mxu0 0
        %1012 = vmatpush1.bf16.msra.mxu0 0
        %1013 = vmatprep.subr.bf16.mxu0 0
        %1014 = vmatpush1.bf16.msra.mxu0 0
        %1015 = vmatprep.subr.bf16.mxu0 0
        %1016 = vmatpush1.bf16.msra.mxu0 0
        %1017 = vmatprep.subr.bf16.mxu0 0
        %1018 = vmatpush1.bf16.msra.mxu0 0
        %1019 = vmatprep.subr.bf16.mxu0 0
        %1020 = vmatpush1.bf16.msra.mxu0 0
        %1021 = vmatprep.subr.bf16.mxu0 0
        %1022 = vmatpush1.bf16.msra.mxu0 0
        %1023 = vmatprep.subr.bf16.mxu0 0
        %1024 = vmatpush1.bf16.msra.mxu0 0
        %1025 = vmatprep.subr.bf16.mxu0 0
        %1026 = vmatpush1.bf16.msra.mxu0 0
        %1027 = vmatprep.subr.bf16.mxu0 0
        %1028 = vmatpush1.bf16.msra.mxu0 0
        %1029 = vmatprep.subr.bf16.mxu0 0
        %1030 = vmatpush1.bf16.msra.mxu0 0
        %1031 = vmatprep.subr.bf16.mxu0 0
        %1032 = vmatpush1.bf16.msra.mxu0 0
        %1033 = vmatprep.subr.bf16.mxu0 0
        %1034 = vmatpush1.bf16.msra.mxu0 0
        %1035 = vmatprep.mubr.bf16.mxu0 0
        %1036 = vmatmul.mubr.bf16.gmra.mrb[0].mxu0 %v1001
        %v1037 = vpop.f32.mrb[0].mxu0
        %v1038 = vadd.f32 %v992, %v1037
        %v1039 = vpop.f32.mrb[0].mxu0
        %v1040 = vadd.f32 %v996, %v1039
        %v1041 = vpop.f32.mrb[0].mxu0
        %v1042 = vadd.f32 %v992, %v1041
        %v1043 = vpop.f32.mrb[0].mxu0
        %v1044 = vadd.f32 %v996, %v1043
        %1045 = vdwg.mxu0
        %v1046 = vpack.c.bf16 %v1042, %v1038
        %1048 = vrot.lane.b32.xlu0 %v1046, 64
        %v1049 = vpop.permute.xlu0 %1048
        %vm1050 = vcmask 130048
        %v1052 = vsel %vm1050, %v1046, 0
        %v1055 = vsel %vm1050, %v1049, 0
        %1057 = vmatprep.subr.bf16.mxu0 0
        %1058 = vmatpush1.bf16.xpose.msra.mxu0 %v1055
        %1059 = vmatprep.subr.bf16.mxu0 0
        %1060 = vmatpush1.bf16.xpose.msra.mxu0 0
        %1061 = vmatprep.subr.bf16.mxu0 0
        %1062 = vmatpush1.bf16.xpose.msra.mxu0 0
        %1063 = vmatprep.subr.bf16.mxu0 0
        %1064 = vmatpush1.bf16.xpose.msra.mxu0 0
        %1065 = vmatprep.subr.bf16.mxu0 0
        %1066 = vmatpush1.bf16.xpose.msra.mxu0 0
        %1067 = vmatprep.subr.bf16.mxu0 0
        %1068 = vmatpush1.bf16.xpose.msra.mxu0 0
        %1069 = vmatprep.subr.bf16.mxu0 0
        %1070 = vmatpush1.bf16.xpose.msra.mxu0 0
        %1071 = vmatprep.subr.bf16.mxu0 0
        %1072 = vmatpush1.bf16.xpose.msra.mxu0 0
        %1073 = vmatprep.subr.bf16.mxu0 0
        %1074 = vmatpush1.bf16.xpose.msra.mxu0 0
        %1075 = vmatprep.subr.bf16.mxu0 0
        %1076 = vmatpush1.bf16.xpose.msra.mxu0 0
        %1077 = vmatprep.subr.bf16.mxu0 0
        %1078 = vmatpush1.bf16.xpose.msra.mxu0 0
        %1079 = vmatprep.subr.bf16.mxu0 0
        %1080 = vmatpush1.bf16.xpose.msra.mxu0 0
        %1081 = vmatprep.subr.bf16.mxu0 0
        %1082 = vmatpush1.bf16.xpose.msra.mxu0 0
        %1083 = vmatprep.subr.bf16.mxu0 0
        %1084 = vmatpush1.bf16.xpose.msra.mxu0 0
        %1085 = vmatprep.subr.bf16.mxu0 0
        %1086 = vmatpush1.bf16.xpose.msra.mxu0 0
        %1087 = vmatprep.subr.bf16.mxu0 0
        %1088 = vmatpush1.bf16.xpose.msra.mxu0 0
        %1089 = vmatprep.mubr.bf16.mxu0 0
        %1090 = vmatmul.mubr.bf16.gmra.mrb[0].mxu0 %v1052
        %v1091 = vpop.f32.mrb[0].mxu0
        %v1092 = vadd.f32 0.0, %v1091
        %v1093 = vpop.f32.mrb[0].mxu0
        %v1094 = vpop.f32.mrb[0].mxu0
        %v1095 = vadd.f32 0.0, %v1094
        %v1096 = vpop.f32.mrb[0].mxu0
        %1097 = vdwg.mxu0
        %vm1098 = vcmask 72704
        %v1099 = vsel %vm1098, %v1092, -inf
        %1100 = vmax.xlane.f32.xlu0 %v1099
        %v1101 = vpop.xlane.xlu0 %1100
        %vm1102 = vcmask 65536
        %v1103 = vsel %vm1102, %v1095, -inf
        %1104 = vmax.xlane.f32.xlu0 %v1103
        %v1105 = vpop.xlane.xlu0 %1104
        %v1106 = vsub.f32 %v1092, %v1101
        %v1107 = vsub.f32 %v1095, %v1105
        %v1108 = vmul.f32 %v1106, 1.442695
        %v1109 = vpow.pop %v1108
        %v1110 = vmul.f32 %v1107, 1.442695
        %v1111 = vpow.pop %v1110
        %v1112 = vsel %vm1098, %v1109, 0.0
        %1113 = vadd.xlane.f32.xlu0 %v1112
        %v1114 = vpop.xlane.xlu0 %1113
        %v1115 = vsel %vm1102, %v1111, 0.0
        %1116 = vadd.xlane.f32.xlu0 %v1115
        %v1117 = vpop.xlane.xlu0 %1116
        %v1118 = vrcp.pop %v1114
        %v1119 = vrcp.pop %v1117
        %v1120 = vmul.f32 %v1109, %v1118
        %v1121 = vmul.f32 %v1111, %v1119
        %v1122 = vpack.c.bf16 %v1121, %v1120
        %v1123 = vpack.c.bf16 %v1044, %v1040
        %v1125 = vsel %vm1098, %v1122, 0
        %vm1127 = vcmask 1043456
        %vm1128 = vcmask 1044480
        %v1129 = vsel %vm1127, 4294967295, 65535
        %v1130 = vsel %vm1128, %v1129, 0
        %v1132 = vand.u32 %v1123, %v1130
        %1134 = vmatprep.subr.bf16.mxu0 0
        %1135 = vmatpush1.bf16.msra.mxu0 %v1132
        %1136 = vmatprep.subr.bf16.mxu0 0
        %1137 = vmatpush1.bf16.msra.mxu0 0
        %1138 = vmatprep.subr.bf16.mxu0 0
        %1139 = vmatpush1.bf16.msra.mxu0 0
        %1140 = vmatprep.subr.bf16.mxu0 0
        %1141 = vmatpush1.bf16.msra.mxu0 0
        %1142 = vmatprep.subr.bf16.mxu0 0
        %1143 = vmatpush1.bf16.msra.mxu0 0
        %1144 = vmatprep.subr.bf16.mxu0 0
        %1145 = vmatpush1.bf16.msra.mxu0 0
        %1146 = vmatprep.subr.bf16.mxu0 0
        %1147 = vmatpush1.bf16.msra.mxu0 0
        %1148 = vmatprep.subr.bf16.mxu0 0
        %1149 = vmatpush1.bf16.msra.mxu0 0
        %1150 = vmatprep.subr.bf16.mxu0 0
        %1151 = vmatpush1.bf16.msra.mxu0 0
        %1152 = vmatprep.subr.bf16.mxu0 0
        %1153 = vmatpush1.bf16.msra.mxu0 0
        %1154 = vmatprep.subr.bf16.mxu0 0
        %1155 = vmatpush1.bf16.msra.mxu0 0
        %1156 = vmatprep.subr.bf16.mxu0 0
        %1157 = vmatpush1.bf16.msra.mxu0 0
        %1158 = vmatprep.subr.bf16.mxu0 0
        %1159 = vmatpush1.bf16.msra.mxu0 0
        %1160 = vmatprep.subr.bf16.mxu0 0
        %1161 = vmatpush1.bf16.msra.mxu0 0
        %1162 = vmatprep.subr.bf16.mxu0 0
        %1163 = vmatpush1.bf16.msra.mxu0 0
        %1164 = vmatprep.subr.bf16.mxu0 0
        %1165 = vmatpush1.bf16.msra.mxu0 0
        %1166 = vmatprep.mubr.bf16.mxu0 0
        %1167 = vmatmul.mubr.bf16.gmra.mrb[0].mxu0 %v1125
        %v1168 = vpop.f32.mrb[0].mxu0
        %v1169 = vadd.f32 0.0, %v1168
        %v1170 = vpop.f32.mrb[0].mxu0
        %v1171 = vpop.f32.mrb[0].mxu0
        %v1172 = vadd.f32 0.0, %v1171
        %v1173 = vpop.f32.mrb[0].mxu0
        %1174 = vdwg.mxu0
        %v1175 = vpack.c.bf16 %v787, %v786
        %v1176 = vpack.c.bf16 %v1172, %v1169
        %1177 = vrot.lane.b32.xlu0 %v1046, 112
        %v1178 = vpop.permute.xlu0 %1177
        %1179 = vrot.lane.b32.xlu0 %v1046, 48
        %v1180 = vpop.permute.xlu0 %1179
        %v1182 = vsel %vm1050, %v1178, 0
        %v1185 = vsel %vm1050, %v1180, 0
        %1187 = vmatprep.subr.bf16.mxu0 0
        %1188 = vmatpush1.bf16.xpose.msra.mxu0 %v1185
        %1189 = vmatprep.subr.bf16.mxu0 0
        %1190 = vmatpush1.bf16.xpose.msra.mxu0 0
        %1191 = vmatprep.subr.bf16.mxu0 0
        %1192 = vmatpush1.bf16.xpose.msra.mxu0 0
        %1193 = vmatprep.subr.bf16.mxu0 0
        %1194 = vmatpush1.bf16.xpose.msra.mxu0 0
        %1195 = vmatprep.subr.bf16.mxu0 0
        %1196 = vmatpush1.bf16.xpose.msra.mxu0 0
        %1197 = vmatprep.subr.bf16.mxu0 0
        %1198 = vmatpush1.bf16.xpose.msra.mxu0 0
        %1199 = vmatprep.subr.bf16.mxu0 0
        %1200 = vmatpush1.bf16.xpose.msra.mxu0 0
        %1201 = vmatprep.subr.bf16.mxu0 0
        %1202 = vmatpush1.bf16.xpose.msra.mxu0 0
        %1203 = vmatprep.subr.bf16.mxu0 0
        %1204 = vmatpush1.bf16.xpose.msra.mxu0 0
        %1205 = vmatprep.subr.bf16.mxu0 0
        %1206 = vmatpush1.bf16.xpose.msra.mxu0 0
        %1207 = vmatprep.subr.bf16.mxu0 0
        %1208 = vmatpush1.bf16.xpose.msra.mxu0 0
        %1209 = vmatprep.subr.bf16.mxu0 0
        %1210 = vmatpush1.bf16.xpose.msra.mxu0 0
        %1211 = vmatprep.subr.bf16.mxu0 0
        %1212 = vmatpush1.bf16.xpose.msra.mxu0 0
        %1213 = vmatprep.subr.bf16.mxu0 0
        %1214 = vmatpush1.bf16.xpose.msra.mxu0 0
        %1215 = vmatprep.subr.bf16.mxu0 0
        %1216 = vmatpush1.bf16.xpose.msra.mxu0 0
        %1217 = vmatprep.subr.bf16.mxu0 0
        %1218 = vmatpush1.bf16.xpose.msra.mxu0 0
        %1219 = vmatprep.mubr.bf16.mxu0 0
        %1220 = vmatmul.mubr.bf16.gmra.mrb[0].mxu0 %v1182
        %v1221 = vpop.f32.mrb[0].mxu0
        %v1222 = vadd.f32 0.0, %v1221
        %v1223 = vpop.f32.mrb[0].mxu0
        %v1224 = vpop.f32.mrb[0].mxu0
        %v1225 = vadd.f32 0.0, %v1224
        %v1226 = vpop.f32.mrb[0].mxu0
        %1227 = vdwg.mxu0
        %v1228 = vsel %vm1098, %v1222, -inf
        %1229 = vmax.xlane.f32.xlu0 %v1228
        %v1230 = vpop.xlane.xlu0 %1229
        %v1231 = vsel %vm1102, %v1225, -inf
        %1232 = vmax.xlane.f32.xlu0 %v1231
        %v1233 = vpop.xlane.xlu0 %1232
        %v1234 = vsub.f32 %v1222, %v1230
        %v1235 = vsub.f32 %v1225, %v1233
        %v1236 = vmul.f32 %v1234, 1.442695
        %v1237 = vpow.pop %v1236
        %v1238 = vmul.f32 %v1235, 1.442695
        %v1239 = vpow.pop %v1238
        %v1240 = vsel %vm1098, %v1237, 0.0
        %1241 = vadd.xlane.f32.xlu0 %v1240
        %v1242 = vpop.xlane.xlu0 %1241
        %v1243 = vsel %vm1102, %v1239, 0.0
        %1244 = vadd.xlane.f32.xlu0 %v1243
        %v1245 = vpop.xlane.xlu0 %1244
        %v1246 = vrcp.pop %v1242
        %v1247 = vrcp.pop %v1245
        %v1248 = vmul.f32 %v1237, %v1246
        %v1249 = vmul.f32 %v1239, %v1247
        %v1250 = vpack.c.bf16 %v1249, %v1248
        %1252 = vrot.lane.b32.xlu0 %v1123, 112
        %v1253 = vpop.permute.xlu0 %1252
        %v1255 = vsel %vm1098, %v1250, 0
        %v1258 = vand.u32 %v1253, %v1130
        %1260 = vmatprep.subr.bf16.mxu0 0
        %1261 = vmatpush1.bf16.msra.mxu0 %v1258
        %1262 = vmatprep.subr.bf16.mxu0 0
        %1263 = vmatpush1.bf16.msra.mxu0 0
        %1264 = vmatprep.subr.bf16.mxu0 0
        %1265 = vmatpush1.bf16.msra.mxu0 0
        %1266 = vmatprep.subr.bf16.mxu0 0
        %1267 = vmatpush1.bf16.msra.mxu0 0
        %1268 = vmatprep.subr.bf16.mxu0 0
        %1269 = vmatpush1.bf16.msra.mxu0 0
        %1270 = vmatprep.subr.bf16.mxu0 0
        %1271 = vmatpush1.bf16.msra.mxu0 0
        %1272 = vmatprep.subr.bf16.mxu0 0
        %1273 = vmatpush1.bf16.msra.mxu0 0
        %1274 = vmatprep.subr.bf16.mxu0 0
        %1275 = vmatpush1.bf16.msra.mxu0 0
        %1276 = vmatprep.subr.bf16.mxu0 0
        %1277 = vmatpush1.bf16.msra.mxu0 0
        %1278 = vmatprep.subr.bf16.mxu0 0
        %1279 = vmatpush1.bf16.msra.mxu0 0
        %1280 = vmatprep.subr.bf16.mxu0 0
        %1281 = vmatpush1.bf16.msra.mxu0 0
        %1282 = vmatprep.subr.bf16.mxu0 0
        %1283 = vmatpush1.bf16.msra.mxu0 0
        %1284 = vmatprep.subr.bf16.mxu0 0
        %1285 = vmatpush1.bf16.msra.mxu0 0
        %1286 = vmatprep.subr.bf16.mxu0 0
        %1287 = vmatpush1.bf16.msra.mxu0 0
        %1288 = vmatprep.subr.bf16.mxu0 0
        %1289 = vmatpush1.bf16.msra.mxu0 0
        %1290 = vmatprep.subr.bf16.mxu0 0
        %1291 = vmatpush1.bf16.msra.mxu0 0
        %1292 = vmatprep.mubr.bf16.mxu0 0
        %1293 = vmatmul.mubr.bf16.gmra.mrb[0].mxu0 %v1255
        %v1294 = vpop.f32.mrb[0].mxu0
        %v1295 = vadd.f32 0.0, %v1294
        %v1296 = vpop.f32.mrb[0].mxu0
        %v1297 = vpop.f32.mrb[0].mxu0
        %v1298 = vadd.f32 0.0, %v1297
        %v1299 = vpop.f32.mrb[0].mxu0
        %1300 = vdwg.mxu0
        %v1301 = vpack.c.bf16 %v789, %v788
        %v1302 = vpack.c.bf16 %v1298, %v1295
        %v1304 = vsel %vm1050, %v1302, 0
        %1306 = vmatprep.subr.bf16.mxu0 0
        %1307 = vmatpush1.bf16.msra.mxu0 %v1301
        %1308 = vmatprep.subr.bf16.mxu0 0
        %1309 = vmatpush1.bf16.msra.mxu0 0
        %1310 = vmatprep.subr.bf16.mxu0 0
        %1311 = vmatpush1.bf16.msra.mxu0 0
        %1312 = vmatprep.subr.bf16.mxu0 0
        %1313 = vmatpush1.bf16.msra.mxu0 0
        %1314 = vmatprep.subr.bf16.mxu0 0
        %1315 = vmatpush1.bf16.msra.mxu0 0
        %1316 = vmatprep.subr.bf16.mxu0 0
        %1317 = vmatpush1.bf16.msra.mxu0 0
        %1318 = vmatprep.subr.bf16.mxu0 0
        %1319 = vmatpush1.bf16.msra.mxu0 0
        %1320 = vmatprep.subr.bf16.mxu0 0
        %1321 = vmatpush1.bf16.msra.mxu0 0
        %1322 = vmatprep.subr.bf16.mxu0 0
        %1323 = vmatpush1.bf16.msra.mxu0 0
        %1324 = vmatprep.subr.bf16.mxu0 0
        %1325 = vmatpush1.bf16.msra.mxu0 0
        %1326 = vmatprep.subr.bf16.mxu0 0
        %1327 = vmatpush1.bf16.msra.mxu0 0
        %1328 = vmatprep.subr.bf16.mxu0 0
        %1329 = vmatpush1.bf16.msra.mxu0 0
        %1330 = vmatprep.subr.bf16.mxu0 0
        %1331 = vmatpush1.bf16.msra.mxu0 0
        %1332 = vmatprep.subr.bf16.mxu0 0
        %1333 = vmatpush1.bf16.msra.mxu0 0
        %1334 = vmatprep.subr.bf16.mxu0 0
        %1335 = vmatpush1.bf16.msra.mxu0 0
        %1336 = vmatprep.subr.bf16.mxu0 0
        %1337 = vmatpush1.bf16.msra.mxu0 0
        %1338 = vmatprep.mubr.bf16.mxu0 0
        %1339 = vmatmul.mubr.bf16.gmra.mrb[0].mxu0 %v1304
        %v1340 = vpop.f32.mrb[0].mxu0
        %v1341 = vadd.f32 0.0, %v1340
        %v1342 = vpop.f32.mrb[0].mxu0
        %v1343 = vpop.f32.mrb[0].mxu0
        %v1344 = vadd.f32 0.0, %v1343
        %v1345 = vpop.f32.mrb[0].mxu0
        %1346 = vdwg.mxu0
        %1347 = vrot.lane.b32.xlu0 %v1046, 96
        %v1348 = vpop.permute.xlu0 %1347
        %1349 = vrot.lane.b32.xlu0 %v1046, 32
        %v1350 = vpop.permute.xlu0 %1349
        %v1352 = vsel %vm1050, %v1348, 0
        %v1355 = vsel %vm1050, %v1350, 0
        %1357 = vmatprep.subr.bf16.mxu0 0
        %1358 = vmatpush1.bf16.xpose.msra.mxu0 %v1355
        %1359 = vmatprep.subr.bf16.mxu0 0
        %1360 = vmatpush1.bf16.xpose.msra.mxu0 0
        %1361 = vmatprep.subr.bf16.mxu0 0
        %1362 = vmatpush1.bf16.xpose.msra.mxu0 0
        %1363 = vmatprep.subr.bf16.mxu0 0
        %1364 = vmatpush1.bf16.xpose.msra.mxu0 0
        %1365 = vmatprep.subr.bf16.mxu0 0
        %1366 = vmatpush1.bf16.xpose.msra.mxu0 0
        %1367 = vmatprep.subr.bf16.mxu0 0
        %1368 = vmatpush1.bf16.xpose.msra.mxu0 0
        %1369 = vmatprep.subr.bf16.mxu0 0
        %1370 = vmatpush1.bf16.xpose.msra.mxu0 0
        %1371 = vmatprep.subr.bf16.mxu0 0
        %1372 = vmatpush1.bf16.xpose.msra.mxu0 0
        %1373 = vmatprep.subr.bf16.mxu0 0
        %1374 = vmatpush1.bf16.xpose.msra.mxu0 0
        %1375 = vmatprep.subr.bf16.mxu0 0
        %1376 = vmatpush1.bf16.xpose.msra.mxu0 0
        %1377 = vmatprep.subr.bf16.mxu0 0
        %1378 = vmatpush1.bf16.xpose.msra.mxu0 0
        %1379 = vmatprep.subr.bf16.mxu0 0
        %1380 = vmatpush1.bf16.xpose.msra.mxu0 0
        %1381 = vmatprep.subr.bf16.mxu0 0
        %1382 = vmatpush1.bf16.xpose.msra.mxu0 0
        %1383 = vmatprep.subr.bf16.mxu0 0
        %1384 = vmatpush1.bf16.xpose.msra.mxu0 0
        %1385 = vmatprep.subr.bf16.mxu0 0
        %1386 = vmatpush1.bf16.xpose.msra.mxu0 0
        %1387 = vmatprep.subr.bf16.mxu0 0
        %1388 = vmatpush1.bf16.xpose.msra.mxu0 0
        %1389 = vmatprep.mubr.bf16.mxu0 0
        %1390 = vmatmul.mubr.bf16.gmra.mrb[0].mxu0 %v1352
        %v1391 = vpop.f32.mrb[0].mxu0
        %v1392 = vadd.f32 0.0, %v1391
        %v1393 = vpop.f32.mrb[0].mxu0
        %v1394 = vpop.f32.mrb[0].mxu0
        %v1395 = vadd.f32 0.0, %v1394
        %v1396 = vpop.f32.mrb[0].mxu0
        %1397 = vdwg.mxu0
        %v1398 = vsel %vm1098, %v1392, -inf
        %1399 = vmax.xlane.f32.xlu0 %v1398
        %v1400 = vpop.xlane.xlu0 %1399
        %v1401 = vsel %vm1102, %v1395, -inf
        %1402 = vmax.xlane.f32.xlu0 %v1401
        %v1403 = vpop.xlane.xlu0 %1402
        %v1404 = vsub.f32 %v1392, %v1400
        %v1405 = vsub.f32 %v1395, %v1403
        %v1406 = vmul.f32 %v1404, 1.442695
        %v1407 = vpow.pop %v1406
        %v1408 = vmul.f32 %v1405, 1.442695
        %v1409 = vpow.pop %v1408
        %v1410 = vsel %vm1098, %v1407, 0.0
        %1411 = vadd.xlane.f32.xlu0 %v1410
        %v1412 = vpop.xlane.xlu0 %1411
        %v1413 = vsel %vm1102, %v1409, 0.0
        %1414 = vadd.xlane.f32.xlu0 %v1413
        %v1415 = vpop.xlane.xlu0 %1414
        %v1416 = vrcp.pop %v1412
        %v1417 = vrcp.pop %v1415
        %v1418 = vmul.f32 %v1407, %v1416
        %v1419 = vmul.f32 %v1409, %v1417
        %v1420 = vpack.c.bf16 %v1419, %v1418
        %1421 = vrot.lane.b32.xlu0 %v1123, 96
        %v1422 = vpop.permute.xlu0 %1421
        %v1424 = vsel %vm1098, %v1420, 0
        %v1427 = vand.u32 %v1422, %v1130
        %1429 = vmatprep.subr.bf16.mxu0 0
        %1430 = vmatpush1.bf16.msra.mxu0 %v1427
        %1431 = vmatprep.subr.bf16.mxu0 0
        %1432 = vmatpush1.bf16.msra.mxu0 0
        %1433 = vmatprep.subr.bf16.mxu0 0
        %1434 = vmatpush1.bf16.msra.mxu0 0
        %1435 = vmatprep.subr.bf16.mxu0 0
        %1436 = vmatpush1.bf16.msra.mxu0 0
        %1437 = vmatprep.subr.bf16.mxu0 0
        %1438 = vmatpush1.bf16.msra.mxu0 0
        %1439 = vmatprep.subr.bf16.mxu0 0
        %1440 = vmatpush1.bf16.msra.mxu0 0
        %1441 = vmatprep.subr.bf16.mxu0 0
        %1442 = vmatpush1.bf16.msra.mxu0 0
        %1443 = vmatprep.subr.bf16.mxu0 0
        %1444 = vmatpush1.bf16.msra.mxu0 0
        %1445 = vmatprep.subr.bf16.mxu0 0
        %1446 = vmatpush1.bf16.msra.mxu0 0
        %1447 = vmatprep.subr.bf16.mxu0 0
        %1448 = vmatpush1.bf16.msra.mxu0 0
        %1449 = vmatprep.subr.bf16.mxu0 0
        %1450 = vmatpush1.bf16.msra.mxu0 0
        %1451 = vmatprep.subr.bf16.mxu0 0
        %1452 = vmatpush1.bf16.msra.mxu0 0
        %1453 = vmatprep.subr.bf16.mxu0 0
        %1454 = vmatpush1.bf16.msra.mxu0 0
        %1455 = vmatprep.subr.bf16.mxu0 0
        %1456 = vmatpush1.bf16.msra.mxu0 0
        %1457 = vmatprep.subr.bf16.mxu0 0
        %1458 = vmatpush1.bf16.msra.mxu0 0
        %1459 = vmatprep.subr.bf16.mxu0 0
        %1460 = vmatpush1.bf16.msra.mxu0 0
        %1461 = vmatprep.mubr.bf16.mxu0 0
        %1462 = vmatmul.mubr.bf16.gmra.mrb[0].mxu0 %v1424
        %v1463 = vpop.f32.mrb[0].mxu0
        %v1464 = vadd.f32 0.0, %v1463
        %v1465 = vpop.f32.mrb[0].mxu0
        %v1466 = vpop.f32.mrb[0].mxu0
        %v1467 = vadd.f32 0.0, %v1466
        %v1468 = vpop.f32.mrb[0].mxu0
        %1469 = vdwg.mxu0
        %v1470 = vpack.c.bf16 %v791, %v790
        %v1471 = vpack.c.bf16 %v1467, %v1464
        %v1473 = vsel %vm1050, %v1471, 0
        %1475 = vmatprep.subr.bf16.mxu0 0
        %1476 = vmatpush1.bf16.msra.mxu0 %v1470
        %1477 = vmatprep.subr.bf16.mxu0 0
        %1478 = vmatpush1.bf16.msra.mxu0 0
        %1479 = vmatprep.subr.bf16.mxu0 0
        %1480 = vmatpush1.bf16.msra.mxu0 0
        %1481 = vmatprep.subr.bf16.mxu0 0
        %1482 = vmatpush1.bf16.msra.mxu0 0
        %1483 = vmatprep.subr.bf16.mxu0 0
        %1484 = vmatpush1.bf16.msra.mxu0 0
        %1485 = vmatprep.subr.bf16.mxu0 0
        %1486 = vmatpush1.bf16.msra.mxu0 0
        %1487 = vmatprep.subr.bf16.mxu0 0
        %1488 = vmatpush1.bf16.msra.mxu0 0
        %1489 = vmatprep.subr.bf16.mxu0 0
        %1490 = vmatpush1.bf16.msra.mxu0 0
        %1491 = vmatprep.subr.bf16.mxu0 0
        %1492 = vmatpush1.bf16.msra.mxu0 0
        %1493 = vmatprep.subr.bf16.mxu0 0
        %1494 = vmatpush1.bf16.msra.mxu0 0
        %1495 = vmatprep.subr.bf16.mxu0 0
        %1496 = vmatpush1.bf16.msra.mxu0 0
        %1497 = vmatprep.subr.bf16.mxu0 0
        %1498 = vmatpush1.bf16.msra.mxu0 0
        %1499 = vmatprep.subr.bf16.mxu0 0
        %1500 = vmatpush1.bf16.msra.mxu0 0
        %1501 = vmatprep.subr.bf16.mxu0 0
        %1502 = vmatpush1.bf16.msra.mxu0 0
        %1503 = vmatprep.subr.bf16.mxu0 0
        %1504 = vmatpush1.bf16.msra.mxu0 0
        %1505 = vmatprep.subr.bf16.mxu0 0
        %1506 = vmatpush1.bf16.msra.mxu0 0
        %1507 = vmatprep.mubr.bf16.mxu0 0
        %1508 = vmatmul.mubr.bf16.gmra.mrb[0].mxu0 %v1473
        %v1509 = vpop.f32.mrb[0].mxu0
        %v1510 = vadd.f32 0.0, %v1509
        %v1511 = vpop.f32.mrb[0].mxu0
        %v1512 = vpop.f32.mrb[0].mxu0
        %v1513 = vadd.f32 0.0, %v1512
        %v1514 = vpop.f32.mrb[0].mxu0
        %1515 = vdwg.mxu0
        %1516 = vrot.lane.b32.xlu0 %v1046, 80
        %v1517 = vpop.permute.xlu0 %1516
        %1518 = vrot.lane.b32.xlu0 %v1046, 16
        %v1519 = vpop.permute.xlu0 %1518
        %v1521 = vsel %vm1050, %v1517, 0
        %v1524 = vsel %vm1050, %v1519, 0
        %1526 = vmatprep.subr.bf16.mxu0 0
        %1527 = vmatpush1.bf16.xpose.msra.mxu0 %v1524
        %1528 = vmatprep.subr.bf16.mxu0 0
        %1529 = vmatpush1.bf16.xpose.msra.mxu0 0
        %1530 = vmatprep.subr.bf16.mxu0 0
        %1531 = vmatpush1.bf16.xpose.msra.mxu0 0
        %1532 = vmatprep.subr.bf16.mxu0 0
        %1533 = vmatpush1.bf16.xpose.msra.mxu0 0
        %1534 = vmatprep.subr.bf16.mxu0 0
        %1535 = vmatpush1.bf16.xpose.msra.mxu0 0
        %1536 = vmatprep.subr.bf16.mxu0 0
        %1537 = vmatpush1.bf16.xpose.msra.mxu0 0
        %1538 = vmatprep.subr.bf16.mxu0 0
        %1539 = vmatpush1.bf16.xpose.msra.mxu0 0
        %1540 = vmatprep.subr.bf16.mxu0 0
        %1541 = vmatpush1.bf16.xpose.msra.mxu0 0
        %1542 = vmatprep.subr.bf16.mxu0 0
        %1543 = vmatpush1.bf16.xpose.msra.mxu0 0
        %1544 = vmatprep.subr.bf16.mxu0 0
        %1545 = vmatpush1.bf16.xpose.msra.mxu0 0
        %1546 = vmatprep.subr.bf16.mxu0 0
        %1547 = vmatpush1.bf16.xpose.msra.mxu0 0
        %1548 = vmatprep.subr.bf16.mxu0 0
        %1549 = vmatpush1.bf16.xpose.msra.mxu0 0
        %1550 = vmatprep.subr.bf16.mxu0 0
        %1551 = vmatpush1.bf16.xpose.msra.mxu0 0
        %1552 = vmatprep.subr.bf16.mxu0 0
        %1553 = vmatpush1.bf16.xpose.msra.mxu0 0
        %1554 = vmatprep.subr.bf16.mxu0 0
        %1555 = vmatpush1.bf16.xpose.msra.mxu0 0
        %1556 = vmatprep.subr.bf16.mxu0 0
        %1557 = vmatpush1.bf16.xpose.msra.mxu0 0
        %1558 = vmatprep.mubr.bf16.mxu0 0
        %1559 = vmatmul.mubr.bf16.gmra.mrb[0].mxu0 %v1521
        %v1560 = vpop.f32.mrb[0].mxu0
        %v1561 = vadd.f32 0.0, %v1560
        %v1562 = vpop.f32.mrb[0].mxu0
        %v1563 = vpop.f32.mrb[0].mxu0
        %v1564 = vadd.f32 0.0, %v1563
        %v1565 = vpop.f32.mrb[0].mxu0
        %1566 = vdwg.mxu0
        %v1567 = vsel %vm1098, %v1561, -inf
        %1568 = vmax.xlane.f32.xlu0 %v1567
        %v1569 = vpop.xlane.xlu0 %1568
        %v1570 = vsel %vm1102, %v1564, -inf
        %1571 = vmax.xlane.f32.xlu0 %v1570
        %v1572 = vpop.xlane.xlu0 %1571
        %v1573 = vsub.f32 %v1561, %v1569
        %v1574 = vsub.f32 %v1564, %v1572
        %v1575 = vmul.f32 %v1573, 1.442695
        %v1576 = vpow.pop %v1575
        %v1577 = vmul.f32 %v1574, 1.442695
        %v1578 = vpow.pop %v1577
        %v1579 = vsel %vm1098, %v1576, 0.0
        %1580 = vadd.xlane.f32.xlu0 %v1579
        %v1581 = vpop.xlane.xlu0 %1580
        %v1582 = vsel %vm1102, %v1578, 0.0
        %1583 = vadd.xlane.f32.xlu0 %v1582
        %v1584 = vpop.xlane.xlu0 %1583
        %v1585 = vrcp.pop %v1581
        %v1586 = vrcp.pop %v1584
        %v1587 = vmul.f32 %v1576, %v1585
        %v1588 = vmul.f32 %v1578, %v1586
        %v1589 = vpack.c.bf16 %v1588, %v1587
        %1590 = vrot.lane.b32.xlu0 %v1123, 80
        %v1591 = vpop.permute.xlu0 %1590
        %v1593 = vsel %vm1098, %v1589, 0
        %v1596 = vand.u32 %v1591, %v1130
        %1598 = vmatprep.subr.bf16.mxu0 0
        %1599 = vmatpush1.bf16.msra.mxu0 %v1596
        %1600 = vmatprep.subr.bf16.mxu0 0
        %1601 = vmatpush1.bf16.msra.mxu0 0
        %1602 = vmatprep.subr.bf16.mxu0 0
        %1603 = vmatpush1.bf16.msra.mxu0 0
        %1604 = vmatprep.subr.bf16.mxu0 0
        %1605 = vmatpush1.bf16.msra.mxu0 0
        %1606 = vmatprep.subr.bf16.mxu0 0
        %1607 = vmatpush1.bf16.msra.mxu0 0
        %1608 = vmatprep.subr.bf16.mxu0 0
        %1609 = vmatpush1.bf16.msra.mxu0 0
        %1610 = vmatprep.subr.bf16.mxu0 0
        %1611 = vmatpush1.bf16.msra.mxu0 0
        %1612 = vmatprep.subr.bf16.mxu0 0
        %1613 = vmatpush1.bf16.msra.mxu0 0
        %1614 = vmatprep.subr.bf16.mxu0 0
        %1615 = vmatpush1.bf16.msra.mxu0 0
        %1616 = vmatprep.subr.bf16.mxu0 0
        %1617 = vmatpush1.bf16.msra.mxu0 0
        %1618 = vmatprep.subr.bf16.mxu0 0
        %1619 = vmatpush1.bf16.msra.mxu0 0
        %1620 = vmatprep.subr.bf16.mxu0 0
        %1621 = vmatpush1.bf16.msra.mxu0 0
        %1622 = vmatprep.subr.bf16.mxu0 0
        %1623 = vmatpush1.bf16.msra.mxu0 0
        %1624 = vmatprep.subr.bf16.mxu0 0
        %1625 = vmatpush1.bf16.msra.mxu0 0
        %1626 = vmatprep.subr.bf16.mxu0 0
        %1627 = vmatpush1.bf16.msra.mxu0 0
        %1628 = vmatprep.subr.bf16.mxu0 0
        %1629 = vmatpush1.bf16.msra.mxu0 0
        %1630 = vmatprep.mubr.bf16.mxu0 0
        %1631 = vmatmul.mubr.bf16.gmra.mrb[0].mxu0 %v1593
        %v1632 = vpop.f32.mrb[0].mxu0
        %v1633 = vadd.f32 0.0, %v1632
        %v1634 = vpop.f32.mrb[0].mxu0
        %v1635 = vpop.f32.mrb[0].mxu0
        %v1636 = vadd.f32 0.0, %v1635
        %v1637 = vpop.f32.mrb[0].mxu0
        %1638 = vdwg.mxu0
        %v1639 = vpack.c.bf16 %v793, %v792
        %v1640 = vpack.c.bf16 %v1636, %v1633
        %v1642 = vsel %vm1050, %v1640, 0
        %1644 = vmatprep.subr.bf16.mxu0 0
        %1645 = vmatpush1.bf16.msra.mxu0 %v1639
        %1646 = vmatprep.subr.bf16.mxu0 0
        %1647 = vmatpush1.bf16.msra.mxu0 0
        %1648 = vmatprep.subr.bf16.mxu0 0
        %1649 = vmatpush1.bf16.msra.mxu0 0
        %1650 = vmatprep.subr.bf16.mxu0 0
        %1651 = vmatpush1.bf16.msra.mxu0 0
        %1652 = vmatprep.subr.bf16.mxu0 0
        %1653 = vmatpush1.bf16.msra.mxu0 0
        %1654 = vmatprep.subr.bf16.mxu0 0
        %1655 = vmatpush1.bf16.msra.mxu0 0
        %1656 = vmatprep.subr.bf16.mxu0 0
        %1657 = vmatpush1.bf16.msra.mxu0 0
        %1658 = vmatprep.subr.bf16.mxu0 0
        %1659 = vmatpush1.bf16.msra.mxu0 0
        %1660 = vmatprep.subr.bf16.mxu0 0
        %1661 = vmatpush1.bf16.msra.mxu0 0
        %1662 = vmatprep.subr.bf16.mxu0 0
        %1663 = vmatpush1.bf16.msra.mxu0 0
        %1664 = vmatprep.subr.bf16.mxu0 0
        %1665 = vmatpush1.bf16.msra.mxu0 0
        %1666 = vmatprep.subr.bf16.mxu0 0
        %1667 = vmatpush1.bf16.msra.mxu0 0
        %1668 = vmatprep.subr.bf16.mxu0 0
        %1669 = vmatpush1.bf16.msra.mxu0 0
        %1670 = vmatprep.subr.bf16.mxu0 0
        %1671 = vmatpush1.bf16.msra.mxu0 0
        %1672 = vmatprep.subr.bf16.mxu0 0
        %1673 = vmatpush1.bf16.msra.mxu0 0
        %1674 = vmatprep.subr.bf16.mxu0 0
        %1675 = vmatpush1.bf16.msra.mxu0 0
        %1676 = vmatprep.mubr.bf16.mxu0 0
        %1677 = vmatmul.mubr.bf16.gmra.mrb[0].mxu0 %v1642
        %v1678 = vpop.f32.mrb[0].mxu0
        %v1679 = vadd.f32 0.0, %v1678
        %v1680 = vpop.f32.mrb[0].mxu0
        %v1681 = vpop.f32.mrb[0].mxu0
        %v1682 = vadd.f32 0.0, %v1681
        %v1683 = vpop.f32.mrb[0].mxu0
        %1684 = vdwg.mxu0
        %v1686 = vsel %vm1050, %v1176, 0
        %1688 = vmatprep.subr.bf16.mxu0 0
        %1689 = vmatpush1.bf16.msra.mxu0 %v1175
        %1690 = vmatprep.subr.bf16.mxu0 0
        %1691 = vmatpush1.bf16.msra.mxu0 0
        %1692 = vmatprep.subr.bf16.mxu0 0
        %1693 = vmatpush1.bf16.msra.mxu0 0
        %1694 = vmatprep.subr.bf16.mxu0 0
        %1695 = vmatpush1.bf16.msra.mxu0 0
        %1696 = vmatprep.subr.bf16.mxu0 0
        %1697 = vmatpush1.bf16.msra.mxu0 0
        %1698 = vmatprep.subr.bf16.mxu0 0
        %1699 = vmatpush1.bf16.msra.mxu0 0
        %1700 = vmatprep.subr.bf16.mxu0 0
        %1701 = vmatpush1.bf16.msra.mxu0 0
        %1702 = vmatprep.subr.bf16.mxu0 0
        %1703 = vmatpush1.bf16.msra.mxu0 0
        %1704 = vmatprep.subr.bf16.mxu0 0
        %1705 = vmatpush1.bf16.msra.mxu0 0
        %1706 = vmatprep.subr.bf16.mxu0 0
        %1707 = vmatpush1.bf16.msra.mxu0 0
        %1708 = vmatprep.subr.bf16.mxu0 0
        %1709 = vmatpush1.bf16.msra.mxu0 0
        %1710 = vmatprep.subr.bf16.mxu0 0
        %1711 = vmatpush1.bf16.msra.mxu0 0
        %1712 = vmatprep.subr.bf16.mxu0 0
        %1713 = vmatpush1.bf16.msra.mxu0 0
        %1714 = vmatprep.subr.bf16.mxu0 0
        %1715 = vmatpush1.bf16.msra.mxu0 0
        %1716 = vmatprep.subr.bf16.mxu0 0
        %1717 = vmatpush1.bf16.msra.mxu0 0
        %1718 = vmatprep.subr.bf16.mxu0 0
        %1719 = vmatpush1.bf16.msra.mxu0 0
        %1720 = vmatprep.mubr.bf16.mxu0 0
        %1721 = vmatmul.mubr.bf16.gmra.mrb[0].mxu0 %v1686
        %v1722 = vpop.f32.mrb[0].mxu0
        %v1723 = vadd.f32 %v1341, %v1722
        %v1724 = vpop.f32.mrb[0].mxu0
        %v1725 = vpop.f32.mrb[0].mxu0
        %v1726 = vadd.f32 %v1344, %v1725
        %v1727 = vpop.f32.mrb[0].mxu0
        %1728 = vdwg.mxu0
        %v1729 = vadd.f32 %v1723, %v1510
        %v1730 = vadd.f32 %v1726, %v1513
        %v1731 = vadd.f32 %v1729, %v1679
        %v1732 = vadd.f32 %v1730, %v1682
        %v1734 = vlaneseq
        %v1735 = vshrl.u32 %v1734, 7
        %v1736 = vsub.s32 0, %v1735
        %v1737 = vrot.slane %v810, %v1736
        %v1739 = vadd.f32 %v1731, %v1737
        %v1740 = vadd.f32 %v1732, %v1737
        %v1741 = vadd.f32 %v973, %v1739
        %v1742 = vadd.f32 %v976, %v1740
        %v1743 = vsel %vm999, %v1741, 0.0
        %1744 = vadd.xlane.f32.xlu0 %v1743
        %v1745 = vpop.xlane.xlu0 %1744
        %vm1746 = vcmask 516096
        %v1747 = vsel %vm1746, %v1742, 0.0
        %1748 = vadd.xlane.f32.xlu0 %v1747
        %v1749 = vpop.xlane.xlu0 %1748
        %v1750 = vmul.f32 %v1745, 0.015625
        %v1751 = vmul.f32 %v1749, 0.015625
        %v1752 = vsub.f32 %v1741, %v1750
        %v1753 = vsub.f32 %v1742, %v1751
        %v1754 = vmul.f32 %v1752, %v1752
        %v1755 = vmul.f32 %v1753, %v1753
        %v1756 = vsel %vm999, %v1754, 0.0
        %1757 = vadd.xlane.f32.xlu0 %v1756
        %v1758 = vpop.xlane.xlu0 %1757
        %v1759 = vsel %vm1746, %v1755, 0.0
        %1760 = vadd.xlane.f32.xlu0 %v1759
        %v1761 = vpop.xlane.xlu0 %1760
        %v1762 = vmul.f32 %v1758, 0.015625
        %v1763 = vmul.f32 %v1761, 0.015625
        %v1764 = vadd.f32 %v1762, 1e-05
        %v1765 = vadd.f32 %v1763, 1e-05
        %v1766 = vrsqrt.pop %v1764
        %v1767 = vrsqrt.pop %v1765
        %v1768 = vmul.f32 %v1752, %v1766
        %v1769 = vmul.f32 %v1753, %v1767
        %v1771 = vlaneseq
        %v1772 = vshrl.u32 %v1771, 7
        %v1773 = vsub.s32 0, %v1772
        %v1774 = vrot.slane %v813, %v1773
        %v1776 = vmul.f32 %v1768, %v1774
        %v1777 = vmul.f32 %v1769, %v1774
        %v1779 = vlaneseq
        %v1780 = vshrl.u32 %v1779, 7
        %v1781 = vsub.s32 0, %v1780
        %v1782 = vrot.slane %v816, %v1781
        %v1784 = vadd.f32 %v1776, %v1782
        %v1785 = vadd.f32 %v1777, %v1782
        %v1786 = vpack.c.bf16 %v826, %v825
        %v1787 = vpack.c.bf16 %v828, %v827
        %v1788 = vpack.c.bf16 %v830, %v829
        %v1789 = vpack.c.bf16 %v832, %v831
        %v1790 = vpack.c.bf16 %v1785, %v1784
        %v1792 = vlaneseq
        %v1793 = vshrl.u32 %v1792, 7
        %v1794 = vsub.s32 0, %v1793
        %v1795 = vrot.slane %v849, %v1794
        %v1798 = vsel %vm999, %v1790, 0
        %1800 = vmatprep.subr.bf16.mxu0 0
        %1801 = vmatpush1.bf16.msra.mxu0 %v1786
        %1802 = vmatprep.subr.bf16.mxu0 0
        %1803 = vmatpush1.bf16.msra.mxu0 %v1787
        %1804 = vmatprep.subr.bf16.mxu0 0
        %1805 = vmatpush1.bf16.msra.mxu0 %v1788
        %1806 = vmatprep.subr.bf16.mxu0 0
        %1807 = vmatpush1.bf16.msra.mxu0 %v1789
        %1808 = vmatprep.subr.bf16.mxu0 0
        %1809 = vmatpush1.bf16.msra.mxu0 0
        %1810 = vmatprep.subr.bf16.mxu0 0
        %1811 = vmatpush1.bf16.msra.mxu0 0
        %1812 = vmatprep.subr.bf16.mxu0 0
        %1813 = vmatpush1.bf16.msra.mxu0 0
        %1814 = vmatprep.subr.bf16.mxu0 0
        %1815 = vmatpush1.bf16.msra.mxu0 0
        %1816 = vmatprep.subr.bf16.mxu0 0
        %1817 = vmatpush1.bf16.msra.mxu0 0
        %1818 = vmatprep.subr.bf16.mxu0 0
        %1819 = vmatpush1.bf16.msra.mxu0 0
        %1820 = vmatprep.subr.bf16.mxu0 0
        %1821 = vmatpush1.bf16.msra.mxu0 0
        %1822 = vmatprep.subr.bf16.mxu0 0
        %1823 = vmatpush1.bf16.msra.mxu0 0
        %1824 = vmatprep.subr.bf16.mxu0 0
        %1825 = vmatpush1.bf16.msra.mxu0 0
        %1826 = vmatprep.subr.bf16.mxu0 0
        %1827 = vmatpush1.bf16.msra.mxu0 0
        %1828 = vmatprep.subr.bf16.mxu0 0
        %1829 = vmatpush1.bf16.msra.mxu0 0
        %1830 = vmatprep.subr.bf16.mxu0 0
        %1831 = vmatpush1.bf16.msra.mxu0 0
        %1832 = vmatprep.mubr.bf16.mxu0 0
        %1833 = vmatmul.mubr.bf16.gmra.mrb[0].mxu0 %v1798
        %v1834 = vpop.f32.mrb[0].mxu0
        %v1835 = vadd.f32 %v1795, %v1834
        %v1836 = vpop.f32.mrb[0].mxu0
        %v1837 = vpop.f32.mrb[0].mxu0
        %v1838 = vadd.f32 %v1795, %v1837
        %v1839 = vpop.f32.mrb[0].mxu0
        %1840 = vdwg.mxu0
        %v1841 = vmax.f32 %v1835, 0.0
        %v1842 = vmax.f32 %v1838, 0.0
        %v1843 = vpack.c.bf16 %v853, %v852
        %v1844 = vpack.c.bf16 %v855, %v854
        %v1845 = vpack.c.bf16 %v857, %v856
        %v1846 = vpack.c.bf16 %v859, %v858
        %v1847 = vpack.c.bf16 %v861, %v860
        %v1848 = vpack.c.bf16 %v863, %v862
        %v1849 = vpack.c.bf16 %v865, %v864
        %v1850 = vpack.c.bf16 %v867, %v866
        %v1851 = vpack.c.bf16 %v1842, %v1841
        %v1853 = vlaneseq
        %v1854 = vshrl.u32 %v1853, 7
        %v1855 = vsub.s32 0, %v1854
        %v1856 = vrot.slane %v900, %v1855
        %1858 = vmatprep.subr.bf16.mxu0 0
        %1859 = vmatpush1.bf16.msra.mxu0 %v1843
        %1860 = vmatprep.subr.bf16.mxu0 0
        %1861 = vmatpush1.bf16.msra.mxu0 %v1844
        %1862 = vmatprep.subr.bf16.mxu0 0
        %1863 = vmatpush1.bf16.msra.mxu0 %v1845
        %1864 = vmatprep.subr.bf16.mxu0 0
        %1865 = vmatpush1.bf16.msra.mxu0 %v1846
        %1866 = vmatprep.subr.bf16.mxu0 0
        %1867 = vmatpush1.bf16.msra.mxu0 %v1847
        %1868 = vmatprep.subr.bf16.mxu0 0
        %1869 = vmatpush1.bf16.msra.mxu0 %v1848
        %1870 = vmatprep.subr.bf16.mxu0 0
        %1871 = vmatpush1.bf16.msra.mxu0 %v1849
        %1872 = vmatprep.subr.bf16.mxu0 0
        %1873 = vmatpush1.bf16.msra.mxu0 %v1850
        %1874 = vmatprep.subr.bf16.mxu0 0
        %1875 = vmatpush1.bf16.msra.mxu0 0
        %1876 = vmatprep.subr.bf16.mxu0 0
        %1877 = vmatpush1.bf16.msra.mxu0 0
        %1878 = vmatprep.subr.bf16.mxu0 0
        %1879 = vmatpush1.bf16.msra.mxu0 0
        %1880 = vmatprep.subr.bf16.mxu0 0
        %1881 = vmatpush1.bf16.msra.mxu0 0
        %1882 = vmatprep.subr.bf16.mxu0 0
        %1883 = vmatpush1.bf16.msra.mxu0 0
        %1884 = vmatprep.subr.bf16.mxu0 0
        %1885 = vmatpush1.bf16.msra.mxu0 0
        %1886 = vmatprep.subr.bf16.mxu0 0
        %1887 = vmatpush1.bf16.msra.mxu0 0
        %1888 = vmatprep.subr.bf16.mxu0 0
        %1889 = vmatpush1.bf16.msra.mxu0 0
        %1890 = vmatprep.mubr.bf16.mxu0 0
        %1891 = vmatmul.mubr.bf16.gmra.mrb[0].mxu0 %v1851
        %v1892 = vpop.f32.mrb[0].mxu0
        %v1893 = vadd.f32 %v1856, %v1892
        %v1894 = vpop.f32.mrb[0].mxu0
        %v1895 = vpop.f32.mrb[0].mxu0
        %v1896 = vadd.f32 %v1856, %v1895
        %v1897 = vpop.f32.mrb[0].mxu0
        %1898 = vdwg.mxu0
        %v1899 = vadd.f32 %v1784, %v1893
        %v1900 = vadd.f32 %v1785, %v1896
        %v1901 = vsel %vm999, %v1899, 0.0
        %1902 = vadd.xlane.f32.xlu0 %v1901
        %v1903 = vpop.xlane.xlu0 %1902
        %v1904 = vsel %vm1746, %v1900, 0.0
        %1905 = vadd.xlane.f32.xlu0 %v1904
        %v1906 = vpop.xlane.xlu0 %1905
        %v1907 = vmul.f32 %v1903, 0.015625
        %v1908 = vmul.f32 %v1906, 0.015625
        %v1909 = vsub.f32 %v1899, %v1907
        %v1910 = vsub.f32 %v1900, %v1908
        %v1911 = vmul.f32 %v1909, %v1909
        %v1912 = vmul.f32 %v1910, %v1910
        %v1913 = vsel %vm999, %v1911, 0.0
        %1914 = vadd.xlane.f32.xlu0 %v1913
        %v1915 = vpop.xlane.xlu0 %1914
        %v1916 = vsel %vm1746, %v1912, 0.0
        %1917 = vadd.xlane.f32.xlu0 %v1916
        %v1918 = vpop.xlane.xlu0 %1917
        %v1919 = vmul.f32 %v1915, 0.015625
        %v1920 = vmul.f32 %v1918, 0.015625
        %v1921 = vadd.f32 %v1919, 1e-05
        %v1922 = vadd.f32 %v1920, 1e-05
        %v1923 = vrsqrt.pop %v1921
        %v1924 = vrsqrt.pop %v1922
        %v1925 = vmul.f32 %v1909, %v1923
        %v1926 = vmul.f32 %v1910, %v1924
        %v1928 = vlaneseq
        %v1929 = vshrl.u32 %v1928, 7
        %v1930 = vsub.s32 0, %v1929
        %v1931 = vrot.slane %v819, %v1930
        %v1933 = vmul.f32 %v1925, %v1931
        %v1934 = vmul.f32 %v1926, %v1931
        %v1936 = vlaneseq
        %v1937 = vshrl.u32 %v1936, 7
        %v1938 = vsub.s32 0, %v1937
        %v1939 = vrot.slane %v822, %v1938
        %v1941 = vadd.f32 %v1933, %v1939
        %v1942 = vadd.f32 %v1934, %v1939
        %v1943 = vpack.c.bf16 %v753, %v751
        %v1944 = vpack.c.bf16 %v754, %v752
        %v1945 = vpack.c.bf16 %v757, %v755
        %v1946 = vpack.c.bf16 %v758, %v756
        %v1947 = vpack.c.bf16 %v761, %v759
        %v1948 = vpack.c.bf16 %v762, %v760
        %v1949 = vpack.c.bf16 %v765, %v763
        %v1950 = vpack.c.bf16 %v766, %v764
        %v1951 = vpack.c.bf16 %v1942, %v1941
        %v1953 = vlaneseq
        %v1954 = vshrl.u32 %v1953, 7
        %v1955 = vsub.s32 0, %v1954
        %v1956 = vrot.slane %v784, %v1955
        %v1957 = vlaneseq
        %v1958 = vshrl.u32 %v1957, 7
        %v1959 = vsub.s32 1, %v1958
        %v1960 = vrot.slane %v784, %v1959
        %v1964 = vsel %vm999, %v1951, 0
        %1966 = vmatprep.subr.bf16.mxu0 %v1944
        %1967 = vmatpush1.bf16.msra.mxu0 %v1943
        %1968 = vmatprep.subr.bf16.mxu0 %v1946
        %1969 = vmatpush1.bf16.msra.mxu0 %v1945
        %1970 = vmatprep.subr.bf16.mxu0 %v1948
        %1971 = vmatpush1.bf16.msra.mxu0 %v1947
        %1972 = vmatprep.subr.bf16.mxu0 %v1950
        %1973 = vmatpush1.bf16.msra.mxu0 %v1949
        %1974 = vmatprep.subr.bf16.mxu0 0
        %1975 = vmatpush1.bf16.msra.mxu0 0
        %1976 = vmatprep.subr.bf16.mxu0 0
        %1977 = vmatpush1.bf16.msra.mxu0 0
        %1978 = vmatprep.subr.bf16.mxu0 0
        %1979 = vmatpush1.bf16.msra.mxu0 0
        %1980 = vmatprep.subr.bf16.mxu0 0
        %1981 = vmatpush1.bf16.msra.mxu0 0
        %1982 = vmatprep.subr.bf16.mxu0 0
        %1983 = vmatpush1.bf16.msra.mxu0 0
        %1984 = vmatprep.subr.bf16.mxu0 0
        %1985 = vmatpush1.bf16.msra.mxu0 0
        %1986 = vmatprep.subr.bf16.mxu0 0
        %1987 = vmatpush1.bf16.msra.mxu0 0
        %1988 = vmatprep.subr.bf16.mxu0 0
        %1989 = vmatpush1.bf16.msra.mxu0 0
        %1990 = vmatprep.subr.bf16.mxu0 0
        %1991 = vmatpush1.bf16.msra.mxu0 0
        %1992 = vmatprep.subr.bf16.mxu0 0
        %1993 = vmatpush1.bf16.msra.mxu0 0
        %1994 = vmatprep.subr.bf16.mxu0 0
        %1995 = vmatpush1.bf16.msra.mxu0 0
        %1996 = vmatprep.subr.bf16.mxu0 0
        %1997 = vmatpush1.bf16.msra.mxu0 0
        %1998 = vmatprep.mubr.bf16.mxu0 0
        %1999 = vmatmul.mubr.bf16.gmra.mrb[0].mxu0 %v1964
        %v2000 = vpop.f32.mrb[0].mxu0
        %v2001 = vadd.f32 %v1956, %v2000
        %v2002 = vpop.f32.mrb[0].mxu0
        %v2003 = vadd.f32 %v1960, %v2002
        %v2004 = vpop.f32.mrb[0].mxu0
        %v2005 = vadd.f32 %v1956, %v2004
        %v2006 = vpop.f32.mrb[0].mxu0
        %v2007 = vadd.f32 %v1960, %v2006
        %2008 = vdwg.mxu0
        %v2009 = vpack.c.bf16 %v2005, %v2001
        %2011 = vrot.lane.b32.xlu0 %v2009, 64
        %v2012 = vpop.permute.xlu0 %2011
        %v2014 = vsel %vm1050, %v2009, 0
        %v2017 = vsel %vm1050, %v2012, 0
        %2019 = vmatprep.subr.bf16.mxu0 0
        %2020 = vmatpush1.bf16.xpose.msra.mxu0 %v2017
        %2021 = vmatprep.subr.bf16.mxu0 0
        %2022 = vmatpush1.bf16.xpose.msra.mxu0 0
        %2023 = vmatprep.subr.bf16.mxu0 0
        %2024 = vmatpush1.bf16.xpose.msra.mxu0 0
        %2025 = vmatprep.subr.bf16.mxu0 0
        %2026 = vmatpush1.bf16.xpose.msra.mxu0 0
        %2027 = vmatprep.subr.bf16.mxu0 0
        %2028 = vmatpush1.bf16.xpose.msra.mxu0 0
        %2029 = vmatprep.subr.bf16.mxu0 0
        %2030 = vmatpush1.bf16.xpose.msra.mxu0 0
        %2031 = vmatprep.subr.bf16.mxu0 0
        %2032 = vmatpush1.bf16.xpose.msra.mxu0 0
        %2033 = vmatprep.subr.bf16.mxu0 0
        %2034 = vmatpush1.bf16.xpose.msra.mxu0 0
        %2035 = vmatprep.subr.bf16.mxu0 0
        %2036 = vmatpush1.bf16.xpose.msra.mxu0 0
        %2037 = vmatprep.subr.bf16.mxu0 0
        %2038 = vmatpush1.bf16.xpose.msra.mxu0 0
        %2039 = vmatprep.subr.bf16.mxu0 0
        %2040 = vmatpush1.bf16.xpose.msra.mxu0 0
        %2041 = vmatprep.subr.bf16.mxu0 0
        %2042 = vmatpush1.bf16.xpose.msra.mxu0 0
        %2043 = vmatprep.subr.bf16.mxu0 0
        %2044 = vmatpush1.bf16.xpose.msra.mxu0 0
        %2045 = vmatprep.subr.bf16.mxu0 0
        %2046 = vmatpush1.bf16.xpose.msra.mxu0 0
        %2047 = vmatprep.subr.bf16.mxu0 0
        %2048 = vmatpush1.bf16.xpose.msra.mxu0 0
        %2049 = vmatprep.subr.bf16.mxu0 0
        %2050 = vmatpush1.bf16.xpose.msra.mxu0 0
        %2051 = vmatprep.mubr.bf16.mxu0 0
        %2052 = vmatmul.mubr.bf16.gmra.mrb[0].mxu0 %v2014
        %v2053 = vpop.f32.mrb[0].mxu0
        %v2054 = vadd.f32 0.0, %v2053
        %v2055 = vpop.f32.mrb[0].mxu0
        %v2056 = vpop.f32.mrb[0].mxu0
        %v2057 = vadd.f32 0.0, %v2056
        %v2058 = vpop.f32.mrb[0].mxu0
        %2059 = vdwg.mxu0
        %v2060 = vsel %vm1098, %v2054, -inf
        %2061 = vmax.xlane.f32.xlu0 %v2060
        %v2062 = vpop.xlane.xlu0 %2061
        %v2063 = vsel %vm1102, %v2057, -inf
        %2064 = vmax.xlane.f32.xlu0 %v2063
        %v2065 = vpop.xlane.xlu0 %2064
        %v2066 = vsub.f32 %v2054, %v2062
        %v2067 = vsub.f32 %v2057, %v2065
        %v2068 = vmul.f32 %v2066, 1.442695
        %v2069 = vpow.pop %v2068
        %v2070 = vmul.f32 %v2067, 1.442695
        %v2071 = vpow.pop %v2070
        %v2072 = vsel %vm1098, %v2069, 0.0
        %2073 = vadd.xlane.f32.xlu0 %v2072
        %v2074 = vpop.xlane.xlu0 %2073
        %v2075 = vsel %vm1102, %v2071, 0.0
        %2076 = vadd.xlane.f32.xlu0 %v2075
        %v2077 = vpop.xlane.xlu0 %2076
        %v2078 = vrcp.pop %v2074
        %v2079 = vrcp.pop %v2077
        %v2080 = vmul.f32 %v2069, %v2078
        %v2081 = vmul.f32 %v2071, %v2079
        %v2082 = vpack.c.bf16 %v2081, %v2080
        %v2083 = vpack.c.bf16 %v2007, %v2003
        %v2085 = vsel %vm1098, %v2082, 0
        %v2088 = vand.u32 %v2083, %v1130
        %2090 = vmatprep.subr.bf16.mxu0 0
        %2091 = vmatpush1.bf16.msra.mxu0 %v2088
        %2092 = vmatprep.subr.bf16.mxu0 0
        %2093 = vmatpush1.bf16.msra.mxu0 0
        %2094 = vmatprep.subr.bf16.mxu0 0
        %2095 = vmatpush1.bf16.msra.mxu0 0
        %2096 = vmatprep.subr.bf16.mxu0 0
        %2097 = vmatpush1.bf16.msra.mxu0 0
        %2098 = vmatprep.subr.bf16.mxu0 0
        %2099 = vmatpush1.bf16.msra.mxu0 0
        %2100 = vmatprep.subr.bf16.mxu0 0
        %2101 = vmatpush1.bf16.msra.mxu0 0
        %2102 = vmatprep.subr.bf16.mxu0 0
        %2103 = vmatpush1.bf16.msra.mxu0 0
        %2104 = vmatprep.subr.bf16.mxu0 0
        %2105 = vmatpush1.bf16.msra.mxu0 0
        %2106 = vmatprep.subr.bf16.mxu0 0
        %2107 = vmatpush1.bf16.msra.mxu0 0
        %2108 = vmatprep.subr.bf16.mxu0 0
        %2109 = vmatpush1.bf16.msra.mxu0 0
        %2110 = vmatprep.subr.bf16.mxu0 0
        %2111 = vmatpush1.bf16.msra.mxu0 0
        %2112 = vmatprep.subr.bf16.mxu0 0
        %2113 = vmatpush1.bf16.msra.mxu0 0
        %2114 = vmatprep.subr.bf16.mxu0 0
        %2115 = vmatpush1.bf16.msra.mxu0 0
        %2116 = vmatprep.subr.bf16.mxu0 0
        %2117 = vmatpush1.bf16.msra.mxu0 0
        %2118 = vmatprep.subr.bf16.mxu0 0
        %2119 = vmatpush1.bf16.msra.mxu0 0
        %2120 = vmatprep.subr.bf16.mxu0 0
        %2121 = vmatpush1.bf16.msra.mxu0 0
        %2122 = vmatprep.mubr.bf16.mxu0 0
        %2123 = vmatmul.mubr.bf16.gmra.mrb[0].mxu0 %v2085
        %v2124 = vpop.f32.mrb[0].mxu0
        %v2125 = vadd.f32 0.0, %v2124
        %v2126 = vpop.f32.mrb[0].mxu0
        %v2127 = vpop.f32.mrb[0].mxu0
        %v2128 = vadd.f32 0.0, %v2127
        %v2129 = vpop.f32.mrb[0].mxu0
        %2130 = vdwg.mxu0
        %v2131 = vpack.c.bf16 %v795, %v794
        %v2132 = vpack.c.bf16 %v2128, %v2125
        %2133 = vrot.lane.b32.xlu0 %v2009, 112
        %v2134 = vpop.permute.xlu0 %2133
        %2135 = vrot.lane.b32.xlu0 %v2009, 48
        %v2136 = vpop.permute.xlu0 %2135
        %v2138 = vsel %vm1050, %v2134, 0
        %v2141 = vsel %vm1050, %v2136, 0
        %2143 = vmatprep.subr.bf16.mxu0 0
        %2144 = vmatpush1.bf16.xpose.msra.mxu0 %v2141
        %2145 = vmatprep.subr.bf16.mxu0 0
        %2146 = vmatpush1.bf16.xpose.msra.mxu0 0
        %2147 = vmatprep.subr.bf16.mxu0 0
        %2148 = vmatpush1.bf16.xpose.msra.mxu0 0
        %2149 = vmatprep.subr.bf16.mxu0 0
        %2150 = vmatpush1.bf16.xpose.msra.mxu0 0
        %2151 = vmatprep.subr.bf16.mxu0 0
        %2152 = vmatpush1.bf16.xpose.msra.mxu0 0
        %2153 = vmatprep.subr.bf16.mxu0 0
        %2154 = vmatpush1.bf16.xpose.msra.mxu0 0
        %2155 = vmatprep.subr.bf16.mxu0 0
        %2156 = vmatpush1.bf16.xpose.msra.mxu0 0
        %2157 = vmatprep.subr.bf16.mxu0 0
        %2158 = vmatpush1.bf16.xpose.msra.mxu0 0
        %2159 = vmatprep.subr.bf16.mxu0 0
        %2160 = vmatpush1.bf16.xpose.msra.mxu0 0
        %2161 = vmatprep.subr.bf16.mxu0 0
        %2162 = vmatpush1.bf16.xpose.msra.mxu0 0
        %2163 = vmatprep.subr.bf16.mxu0 0
        %2164 = vmatpush1.bf16.xpose.msra.mxu0 0
        %2165 = vmatprep.subr.bf16.mxu0 0
        %2166 = vmatpush1.bf16.xpose.msra.mxu0 0
        %2167 = vmatprep.subr.bf16.mxu0 0
        %2168 = vmatpush1.bf16.xpose.msra.mxu0 0
        %2169 = vmatprep.subr.bf16.mxu0 0
        %2170 = vmatpush1.bf16.xpose.msra.mxu0 0
        %2171 = vmatprep.subr.bf16.mxu0 0
        %2172 = vmatpush1.bf16.xpose.msra.mxu0 0
        %2173 = vmatprep.subr.bf16.mxu0 0
        %2174 = vmatpush1.bf16.xpose.msra.mxu0 0
        %2175 = vmatprep.mubr.bf16.mxu0 0
        %2176 = vmatmul.mubr.bf16.gmra.mrb[0].mxu0 %v2138
        %v2177 = vpop.f32.mrb[0].mxu0
        %v2178 = vadd.f32 0.0, %v2177
        %v2179 = vpop.f32.mrb[0].mxu0
        %v2180 = vpop.f32.mrb[0].mxu0
        %v2181 = vadd.f32 0.0, %v2180
        %v2182 = vpop.f32.mrb[0].mxu0
        %2183 = vdwg.mxu0
        %v2184 = vsel %vm1098, %v2178, -inf
        %2185 = vmax.xlane.f32.xlu0 %v2184
        %v2186 = vpop.xlane.xlu0 %2185
        %v2187 = vsel %vm1102, %v2181, -inf
        %2188 = vmax.xlane.f32.xlu0 %v2187
        %v2189 = vpop.xlane.xlu0 %2188
        %v2190 = vsub.f32 %v2178, %v2186
        %v2191 = vsub.f32 %v2181, %v2189
        %v2192 = vmul.f32 %v2190, 1.442695
        %v2193 = vpow.pop %v2192
        %v2194 = vmul.f32 %v2191, 1.442695
        %v2195 = vpow.pop %v2194
        %v2196 = vsel %vm1098, %v2193, 0.0
        %2197 = vadd.xlane.f32.xlu0 %v2196
        %v2198 = vpop.xlane.xlu0 %2197
        %v2199 = vsel %vm1102, %v2195, 0.0
        %2200 = vadd.xlane.f32.xlu0 %v2199
        %v2201 = vpop.xlane.xlu0 %2200
        %v2202 = vrcp.pop %v2198
        %v2203 = vrcp.pop %v2201
        %v2204 = vmul.f32 %v2193, %v2202
        %v2205 = vmul.f32 %v2195, %v2203
        %v2206 = vpack.c.bf16 %v2205, %v2204
        %2208 = vrot.lane.b32.xlu0 %v2083, 112
        %v2209 = vpop.permute.xlu0 %2208
        %v2211 = vsel %vm1098, %v2206, 0
        %v2214 = vand.u32 %v2209, %v1130
        %2216 = vmatprep.subr.bf16.mxu0 0
        %2217 = vmatpush1.bf16.msra.mxu0 %v2214
        %2218 = vmatprep.subr.bf16.mxu0 0
        %2219 = vmatpush1.bf16.msra.mxu0 0
        %2220 = vmatprep.subr.bf16.mxu0 0
        %2221 = vmatpush1.bf16.msra.mxu0 0
        %2222 = vmatprep.subr.bf16.mxu0 0
        %2223 = vmatpush1.bf16.msra.mxu0 0
        %2224 = vmatprep.subr.bf16.mxu0 0
        %2225 = vmatpush1.bf16.msra.mxu0 0
        %2226 = vmatprep.subr.bf16.mxu0 0
        %2227 = vmatpush1.bf16.msra.mxu0 0
        %2228 = vmatprep.subr.bf16.mxu0 0
        %2229 = vmatpush1.bf16.msra.mxu0 0
        %2230 = vmatprep.subr.bf16.mxu0 0
        %2231 = vmatpush1.bf16.msra.mxu0 0
        %2232 = vmatprep.subr.bf16.mxu0 0
        %2233 = vmatpush1.bf16.msra.mxu0 0
        %2234 = vmatprep.subr.bf16.mxu0 0
        %2235 = vmatpush1.bf16.msra.mxu0 0
        %2236 = vmatprep.subr.bf16.mxu0 0
        %2237 = vmatpush1.bf16.msra.mxu0 0
        %2238 = vmatprep.subr.bf16.mxu0 0
        %2239 = vmatpush1.bf16.msra.mxu0 0
        %2240 = vmatprep.subr.bf16.mxu0 0
        %2241 = vmatpush1.bf16.msra.mxu0 0
        %2242 = vmatprep.subr.bf16.mxu0 0
        %2243 = vmatpush1.bf16.msra.mxu0 0
        %2244 = vmatprep.subr.bf16.mxu0 0
        %2245 = vmatpush1.bf16.msra.mxu0 0
        %2246 = vmatprep.subr.bf16.mxu0 0
        %2247 = vmatpush1.bf16.msra.mxu0 0
        %2248 = vmatprep.mubr.bf16.mxu0 0
        %2249 = vmatmul.mubr.bf16.gmra.mrb[0].mxu0 %v2211
        %v2250 = vpop.f32.mrb[0].mxu0
        %v2251 = vadd.f32 0.0, %v2250
        %v2252 = vpop.f32.mrb[0].mxu0
        %v2253 = vpop.f32.mrb[0].mxu0
        %v2254 = vadd.f32 0.0, %v2253
        %v2255 = vpop.f32.mrb[0].mxu0
        %2256 = vdwg.mxu0
        %v2257 = vpack.c.bf16 %v797, %v796
        %v2258 = vpack.c.bf16 %v2254, %v2251
        %v2260 = vsel %vm1050, %v2258, 0
        %2262 = vmatprep.subr.bf16.mxu0 0
        %2263 = vmatpush1.bf16.msra.mxu0 %v2257
        %2264 = vmatprep.subr.bf16.mxu0 0
        %2265 = vmatpush1.bf16.msra.mxu0 0
        %2266 = vmatprep.subr.bf16.mxu0 0
        %2267 = vmatpush1.bf16.msra.mxu0 0
        %2268 = vmatprep.subr.bf16.mxu0 0
        %2269 = vmatpush1.bf16.msra.mxu0 0
        %2270 = vmatprep.subr.bf16.mxu0 0
        %2271 = vmatpush1.bf16.msra.mxu0 0
        %2272 = vmatprep.subr.bf16.mxu0 0
        %2273 = vmatpush1.bf16.msra.mxu0 0
        %2274 = vmatprep.subr.bf16.mxu0 0
        %2275 = vmatpush1.bf16.msra.mxu0 0
        %2276 = vmatprep.subr.bf16.mxu0 0
        %2277 = vmatpush1.bf16.msra.mxu0 0
        %2278 = vmatprep.subr.bf16.mxu0 0
        %2279 = vmatpush1.bf16.msra.mxu0 0
        %2280 = vmatprep.subr.bf16.mxu0 0
        %2281 = vmatpush1.bf16.msra.mxu0 0
        %2282 = vmatprep.subr.bf16.mxu0 0
        %2283 = vmatpush1.bf16.msra.mxu0 0
        %2284 = vmatprep.subr.bf16.mxu0 0
        %2285 = vmatpush1.bf16.msra.mxu0 0
        %2286 = vmatprep.subr.bf16.mxu0 0
        %2287 = vmatpush1.bf16.msra.mxu0 0
        %2288 = vmatprep.subr.bf16.mxu0 0
        %2289 = vmatpush1.bf16.msra.mxu0 0
        %2290 = vmatprep.subr.bf16.mxu0 0
        %2291 = vmatpush1.bf16.msra.mxu0 0
        %2292 = vmatprep.subr.bf16.mxu0 0
        %2293 = vmatpush1.bf16.msra.mxu0 0
        %2294 = vmatprep.mubr.bf16.mxu0 0
        %2295 = vmatmul.mubr.bf16.gmra.mrb[0].mxu0 %v2260
        %v2296 = vpop.f32.mrb[0].mxu0
        %v2297 = vadd.f32 0.0, %v2296
        %v2298 = vpop.f32.mrb[0].mxu0
        %v2299 = vpop.f32.mrb[0].mxu0
        %v2300 = vadd.f32 0.0, %v2299
        %v2301 = vpop.f32.mrb[0].mxu0
        %2302 = vdwg.mxu0
        %2303 = vrot.lane.b32.xlu0 %v2009, 96
        %v2304 = vpop.permute.xlu0 %2303
        %2305 = vrot.lane.b32.xlu0 %v2009, 32
        %v2306 = vpop.permute.xlu0 %2305
        %v2308 = vsel %vm1050, %v2304, 0
        %v2311 = vsel %vm1050, %v2306, 0
        %2313 = vmatprep.subr.bf16.mxu0 0
        %2314 = vmatpush1.bf16.xpose.msra.mxu0 %v2311
        %2315 = vmatprep.subr.bf16.mxu0 0
        %2316 = vmatpush1.bf16.xpose.msra.mxu0 0
        %2317 = vmatprep.subr.bf16.mxu0 0
        %2318 = vmatpush1.bf16.xpose.msra.mxu0 0
        %2319 = vmatprep.subr.bf16.mxu0 0
        %2320 = vmatpush1.bf16.xpose.msra.mxu0 0
        %2321 = vmatprep.subr.bf16.mxu0 0
        %2322 = vmatpush1.bf16.xpose.msra.mxu0 0
        %2323 = vmatprep.subr.bf16.mxu0 0
        %2324 = vmatpush1.bf16.xpose.msra.mxu0 0
        %2325 = vmatprep.subr.bf16.mxu0 0
        %2326 = vmatpush1.bf16.xpose.msra.mxu0 0
        %2327 = vmatprep.subr.bf16.mxu0 0
        %2328 = vmatpush1.bf16.xpose.msra.mxu0 0
        %2329 = vmatprep.subr.bf16.mxu0 0
        %2330 = vmatpush1.bf16.xpose.msra.mxu0 0
        %2331 = vmatprep.subr.bf16.mxu0 0
        %2332 = vmatpush1.bf16.xpose.msra.mxu0 0
        %2333 = vmatprep.subr.bf16.mxu0 0
        %2334 = vmatpush1.bf16.xpose.msra.mxu0 0
        %2335 = vmatprep.subr.bf16.mxu0 0
        %2336 = vmatpush1.bf16.xpose.msra.mxu0 0
        %2337 = vmatprep.subr.bf16.mxu0 0
        %2338 = vmatpush1.bf16.xpose.msra.mxu0 0
        %2339 = vmatprep.subr.bf16.mxu0 0
        %2340 = vmatpush1.bf16.xpose.msra.mxu0 0
        %2341 = vmatprep.subr.bf16.mxu0 0
        %2342 = vmatpush1.bf16.xpose.msra.mxu0 0
        %2343 = vmatprep.subr.bf16.mxu0 0
        %2344 = vmatpush1.bf16.xpose.msra.mxu0 0
        %2345 = vmatprep.mubr.bf16.mxu0 0
        %2346 = vmatmul.mubr.bf16.gmra.mrb[0].mxu0 %v2308
        %v2347 = vpop.f32.mrb[0].mxu0
        %v2348 = vadd.f32 0.0, %v2347
        %v2349 = vpop.f32.mrb[0].mxu0
        %v2350 = vpop.f32.mrb[0].mxu0
        %v2351 = vadd.f32 0.0, %v2350
        %v2352 = vpop.f32.mrb[0].mxu0
        %2353 = vdwg.mxu0
        %v2354 = vsel %vm1098, %v2348, -inf
        %2355 = vmax.xlane.f32.xlu0 %v2354
        %v2356 = vpop.xlane.xlu0 %2355
        %v2357 = vsel %vm1102, %v2351, -inf
        %2358 = vmax.xlane.f32.xlu0 %v2357
        %v2359 = vpop.xlane.xlu0 %2358
        %v2360 = vsub.f32 %v2348, %v2356
        %v2361 = vsub.f32 %v2351, %v2359
        %v2362 = vmul.f32 %v2360, 1.442695
        %v2363 = vpow.pop %v2362
        %v2364 = vmul.f32 %v2361, 1.442695
        %v2365 = vpow.pop %v2364
        %v2366 = vsel %vm1098, %v2363, 0.0
        %2367 = vadd.xlane.f32.xlu0 %v2366
        %v2368 = vpop.xlane.xlu0 %2367
        %v2369 = vsel %vm1102, %v2365, 0.0
        %2370 = vadd.xlane.f32.xlu0 %v2369
        %v2371 = vpop.xlane.xlu0 %2370
        %v2372 = vrcp.pop %v2368
        %v2373 = vrcp.pop %v2371
        %v2374 = vmul.f32 %v2363, %v2372
        %v2375 = vmul.f32 %v2365, %v2373
        %v2376 = vpack.c.bf16 %v2375, %v2374
        %2377 = vrot.lane.b32.xlu0 %v2083, 96
        %v2378 = vpop.permute.xlu0 %2377
        %v2380 = vsel %vm1098, %v2376, 0
        %v2383 = vand.u32 %v2378, %v1130
        %2385 = vmatprep.subr.bf16.mxu0 0
        %2386 = vmatpush1.bf16.msra.mxu0 %v2383
        %2387 = vmatprep.subr.bf16.mxu0 0
        %2388 = vmatpush1.bf16.msra.mxu0 0
        %2389 = vmatprep.subr.bf16.mxu0 0
        %2390 = vmatpush1.bf16.msra.mxu0 0
        %2391 = vmatprep.subr.bf16.mxu0 0
        %2392 = vmatpush1.bf16.msra.mxu0 0
        %2393 = vmatprep.subr.bf16.mxu0 0
        %2394 = vmatpush1.bf16.msra.mxu0 0
        %2395 = vmatprep.subr.bf16.mxu0 0
        %2396 = vmatpush1.bf16.msra.mxu0 0
        %2397 = vmatprep.subr.bf16.mxu0 0
        %2398 = vmatpush1.bf16.msra.mxu0 0
        %2399 = vmatprep.subr.bf16.mxu0 0
        %2400 = vmatpush1.bf16.msra.mxu0 0
        %2401 = vmatprep.subr.bf16.mxu0 0
        %2402 = vmatpush1.bf16.msra.mxu0 0
        %2403 = vmatprep.subr.bf16.mxu0 0
        %2404 = vmatpush1.bf16.msra.mxu0 0
        %2405 = vmatprep.subr.bf16.mxu0 0
        %2406 = vmatpush1.bf16.msra.mxu0 0
        %2407 = vmatprep.subr.bf16.mxu0 0
        %2408 = vmatpush1.bf16.msra.mxu0 0
        %2409 = vmatprep.subr.bf16.mxu0 0
        %2410 = vmatpush1.bf16.msra.mxu0 0
        %2411 = vmatprep.subr.bf16.mxu0 0
        %2412 = vmatpush1.bf16.msra.mxu0 0
        %2413 = vmatprep.subr.bf16.mxu0 0
        %2414 = vmatpush1.bf16.msra.mxu0 0
        %2415 = vmatprep.subr.bf16.mxu0 0
        %2416 = vmatpush1.bf16.msra.mxu0 0
        %2417 = vmatprep.mubr.bf16.mxu0 0
        %2418 = vmatmul.mubr.bf16.gmra.mrb[0].mxu0 %v2380
        %v2419 = vpop.f32.mrb[0].mxu0
        %v2420 = vadd.f32 0.0, %v2419
        %v2421 = vpop.f32.mrb[0].mxu0
        %v2422 = vpop.f32.mrb[0].mxu0
        %v2423 = vadd.f32 0.0, %v2422
        %v2424 = vpop.f32.mrb[0].mxu0
        %2425 = vdwg.mxu0
        %v2426 = vpack.c.bf16 %v799, %v798
        %v2427 = vpack.c.bf16 %v2423, %v2420
        %v2429 = vsel %vm1050, %v2427, 0
        %2431 = vmatprep.subr.bf16.mxu0 0
        %2432 = vmatpush1.bf16.msra.mxu0 %v2426
        %2433 = vmatprep.subr.bf16.mxu0 0
        %2434 = vmatpush1.bf16.msra.mxu0 0
        %2435 = vmatprep.subr.bf16.mxu0 0
        %2436 = vmatpush1.bf16.msra.mxu0 0
        %2437 = vmatprep.subr.bf16.mxu0 0
        %2438 = vmatpush1.bf16.msra.mxu0 0
        %2439 = vmatprep.subr.bf16.mxu0 0
        %2440 = vmatpush1.bf16.msra.mxu0 0
        %2441 = vmatprep.subr.bf16.mxu0 0
        %2442 = vmatpush1.bf16.msra.mxu0 0
        %2443 = vmatprep.subr.bf16.mxu0 0
        %2444 = vmatpush1.bf16.msra.mxu0 0
        %2445 = vmatprep.subr.bf16.mxu0 0
        %2446 = vmatpush1.bf16.msra.mxu0 0
        %2447 = vmatprep.subr.bf16.mxu0 0
        %2448 = vmatpush1.bf16.msra.mxu0 0
        %2449 = vmatprep.subr.bf16.mxu0 0
        %2450 = vmatpush1.bf16.msra.mxu0 0
        %2451 = vmatprep.subr.bf16.mxu0 0
        %2452 = vmatpush1.bf16.msra.mxu0 0
        %2453 = vmatprep.subr.bf16.mxu0 0
        %2454 = vmatpush1.bf16.msra.mxu0 0
        %2455 = vmatprep.subr.bf16.mxu0 0
        %2456 = vmatpush1.bf16.msra.mxu0 0
        %2457 = vmatprep.subr.bf16.mxu0 0
        %2458 = vmatpush1.bf16.msra.mxu0 0
        %2459 = vmatprep.subr.bf16.mxu0 0
        %2460 = vmatpush1.bf16.msra.mxu0 0
        %2461 = vmatprep.subr.bf16.mxu0 0
        %2462 = vmatpush1.bf16.msra.mxu0 0
        %2463 = vmatprep.mubr.bf16.mxu0 0
        %2464 = vmatmul.mubr.bf16.gmra.mrb[0].mxu0 %v2429
        %v2465 = vpop.f32.mrb[0].mxu0
        %v2466 = vadd.f32 0.0, %v2465
        %v2467 = vpop.f32.mrb[0].mxu0
        %v2468 = vpop.f32.mrb[0].mxu0
        %v2469 = vadd.f32 0.0, %v2468
        %v2470 = vpop.f32.mrb[0].mxu0
        %2471 = vdwg.mxu0
        %2472 = vrot.lane.b32.xlu0 %v2009, 80
        %v2473 = vpop.permute.xlu0 %2472
        %2474 = vrot.lane.b32.xlu0 %v2009, 16
        %v2475 = vpop.permute.xlu0 %2474
        %v2477 = vsel %vm1050, %v2473, 0
        %v2480 = vsel %vm1050, %v2475, 0
        %2482 = vmatprep.subr.bf16.mxu0 0
        %2483 = vmatpush1.bf16.xpose.msra.mxu0 %v2480
        %2484 = vmatprep.subr.bf16.mxu0 0
        %2485 = vmatpush1.bf16.xpose.msra.mxu0 0
        %2486 = vmatprep.subr.bf16.mxu0 0
        %2487 = vmatpush1.bf16.xpose.msra.mxu0 0
        %2488 = vmatprep.subr.bf16.mxu0 0
        %2489 = vmatpush1.bf16.xpose.msra.mxu0 0
        %2490 = vmatprep.subr.bf16.mxu0 0
        %2491 = vmatpush1.bf16.xpose.msra.mxu0 0
        %2492 = vmatprep.subr.bf16.mxu0 0
        %2493 = vmatpush1.bf16.xpose.msra.mxu0 0
        %2494 = vmatprep.subr.bf16.mxu0 0
        %2495 = vmatpush1.bf16.xpose.msra.mxu0 0
        %2496 = vmatprep.subr.bf16.mxu0 0
        %2497 = vmatpush1.bf16.xpose.msra.mxu0 0
        %2498 = vmatprep.subr.bf16.mxu0 0
        %2499 = vmatpush1.bf16.xpose.msra.mxu0 0
        %2500 = vmatprep.subr.bf16.mxu0 0
        %2501 = vmatpush1.bf16.xpose.msra.mxu0 0
        %2502 = vmatprep.subr.bf16.mxu0 0
        %2503 = vmatpush1.bf16.xpose.msra.mxu0 0
        %2504 = vmatprep.subr.bf16.mxu0 0
        %2505 = vmatpush1.bf16.xpose.msra.mxu0 0
        %2506 = vmatprep.subr.bf16.mxu0 0
        %2507 = vmatpush1.bf16.xpose.msra.mxu0 0
        %2508 = vmatprep.subr.bf16.mxu0 0
        %2509 = vmatpush1.bf16.xpose.msra.mxu0 0
        %2510 = vmatprep.subr.bf16.mxu0 0
        %2511 = vmatpush1.bf16.xpose.msra.mxu0 0
        %2512 = vmatprep.subr.bf16.mxu0 0
        %2513 = vmatpush1.bf16.xpose.msra.mxu0 0
        %2514 = vmatprep.mubr.bf16.mxu0 0
        %2515 = vmatmul.mubr.bf16.gmra.mrb[0].mxu0 %v2477
        %v2516 = vpop.f32.mrb[0].mxu0
        %v2517 = vadd.f32 0.0, %v2516
        %v2518 = vpop.f32.mrb[0].mxu0
        %v2519 = vpop.f32.mrb[0].mxu0
        %v2520 = vadd.f32 0.0, %v2519
        %v2521 = vpop.f32.mrb[0].mxu0
        %2522 = vdwg.mxu0
        %v2523 = vsel %vm1098, %v2517, -inf
        %2524 = vmax.xlane.f32.xlu0 %v2523
        %v2525 = vpop.xlane.xlu0 %2524
        %v2526 = vsel %vm1102, %v2520, -inf
        %2527 = vmax.xlane.f32.xlu0 %v2526
        %v2528 = vpop.xlane.xlu0 %2527
        %v2529 = vsub.f32 %v2517, %v2525
        %v2530 = vsub.f32 %v2520, %v2528
        %v2531 = vmul.f32 %v2529, 1.442695
        %v2532 = vpow.pop %v2531
        %v2533 = vmul.f32 %v2530, 1.442695
        %v2534 = vpow.pop %v2533
        %v2535 = vsel %vm1098, %v2532, 0.0
        %2536 = vadd.xlane.f32.xlu0 %v2535
        %v2537 = vpop.xlane.xlu0 %2536
        %v2538 = vsel %vm1102, %v2534, 0.0
        %2539 = vadd.xlane.f32.xlu0 %v2538
        %v2540 = vpop.xlane.xlu0 %2539
        %v2541 = vrcp.pop %v2537
        %v2542 = vrcp.pop %v2540
        %v2543 = vmul.f32 %v2532, %v2541
        %v2544 = vmul.f32 %v2534, %v2542
        %v2545 = vpack.c.bf16 %v2544, %v2543
        %2546 = vrot.lane.b32.xlu0 %v2083, 80
        %v2547 = vpop.permute.xlu0 %2546
        %v2549 = vsel %vm1098, %v2545, 0
        %v2552 = vand.u32 %v2547, %v1130
        %2554 = vmatprep.subr.bf16.mxu0 0
        %2555 = vmatpush1.bf16.msra.mxu0 %v2552
        %2556 = vmatprep.subr.bf16.mxu0 0
        %2557 = vmatpush1.bf16.msra.mxu0 0
        %2558 = vmatprep.subr.bf16.mxu0 0
        %2559 = vmatpush1.bf16.msra.mxu0 0
        %2560 = vmatprep.subr.bf16.mxu0 0
        %2561 = vmatpush1.bf16.msra.mxu0 0
        %2562 = vmatprep.subr.bf16.mxu0 0
        %2563 = vmatpush1.bf16.msra.mxu0 0
        %2564 = vmatprep.subr.bf16.mxu0 0
        %2565 = vmatpush1.bf16.msra.mxu0 0
        %2566 = vmatprep.subr.bf16.mxu0 0
        %2567 = vmatpush1.bf16.msra.mxu0 0
        %2568 = vmatprep.subr.bf16.mxu0 0
        %2569 = vmatpush1.bf16.msra.mxu0 0
        %2570 = vmatprep.subr.bf16.mxu0 0
        %2571 = vmatpush1.bf16.msra.mxu0 0
        %2572 = vmatprep.subr.bf16.mxu0 0
        %2573 = vmatpush1.bf16.msra.mxu0 0
        %2574 = vmatprep.subr.bf16.mxu0 0
        %2575 = vmatpush1.bf16.msra.mxu0 0
        %2576 = vmatprep.subr.bf16.mxu0 0
        %2577 = vmatpush1.bf16.msra.mxu0 0
        %2578 = vmatprep.subr.bf16.mxu0 0
        %2579 = vmatpush1.bf16.msra.mxu0 0
        %2580 = vmatprep.subr.bf16.mxu0 0
        %2581 = vmatpush1.bf16.msra.mxu0 0
        %2582 = vmatprep.subr.bf16.mxu0 0
        %2583 = vmatpush1.bf16.msra.mxu0 0
        %2584 = vmatprep.subr.bf16.mxu0 0
        %2585 = vmatpush1.bf16.msra.mxu0 0
        %2586 = vmatprep.mubr.bf16.mxu0 0
        %2587 = vmatmul.mubr.bf16.gmra.mrb[0].mxu0 %v2549
        %v2588 = vpop.f32.mrb[0].mxu0
        %v2589 = vadd.f32 0.0, %v2588
        %v2590 = vpop.f32.mrb[0].mxu0
        %v2591 = vpop.f32.mrb[0].mxu0
        %v2592 = vadd.f32 0.0, %v2591
        %v2593 = vpop.f32.mrb[0].mxu0
        %2594 = vdwg.mxu0
        %v2595 = vpack.c.bf16 %v801, %v800
        %v2596 = vpack.c.bf16 %v2592, %v2589
        %v2598 = vsel %vm1050, %v2596, 0
        %2600 = vmatprep.subr.bf16.mxu0 0
        %2601 = vmatpush1.bf16.msra.mxu0 %v2595
        %2602 = vmatprep.subr.bf16.mxu0 0
        %2603 = vmatpush1.bf16.msra.mxu0 0
        %2604 = vmatprep.subr.bf16.mxu0 0
        %2605 = vmatpush1.bf16.msra.mxu0 0
        %2606 = vmatprep.subr.bf16.mxu0 0
        %2607 = vmatpush1.bf16.msra.mxu0 0
        %2608 = vmatprep.subr.bf16.mxu0 0
        %2609 = vmatpush1.bf16.msra.mxu0 0
        %2610 = vmatprep.subr.bf16.mxu0 0
        %2611 = vmatpush1.bf16.msra.mxu0 0
        %2612 = vmatprep.subr.bf16.mxu0 0
        %2613 = vmatpush1.bf16.msra.mxu0 0
        %2614 = vmatprep.subr.bf16.mxu0 0
        %2615 = vmatpush1.bf16.msra.mxu0 0
        %2616 = vmatprep.subr.bf16.mxu0 0
        %2617 = vmatpush1.bf16.msra.mxu0 0
        %2618 = vmatprep.subr.bf16.mxu0 0
        %2619 = vmatpush1.bf16.msra.mxu0 0
        %2620 = vmatprep.subr.bf16.mxu0 0
        %2621 = vmatpush1.bf16.msra.mxu0 0
        %2622 = vmatprep.subr.bf16.mxu0 0
        %2623 = vmatpush1.bf16.msra.mxu0 0
        %2624 = vmatprep.subr.bf16.mxu0 0
        %2625 = vmatpush1.bf16.msra.mxu0 0
        %2626 = vmatprep.subr.bf16.mxu0 0
        %2627 = vmatpush1.bf16.msra.mxu0 0
        %2628 = vmatprep.subr.bf16.mxu0 0
        %2629 = vmatpush1.bf16.msra.mxu0 0
        %2630 = vmatprep.subr.bf16.mxu0 0
        %2631 = vmatpush1.bf16.msra.mxu0 0
        %2632 = vmatprep.mubr.bf16.mxu0 0
        %2633 = vmatmul.mubr.bf16.gmra.mrb[0].mxu0 %v2598
        %v2634 = vpop.f32.mrb[0].mxu0
        %v2635 = vadd.f32 0.0, %v2634
        %v2636 = vpop.f32.mrb[0].mxu0
        %v2637 = vpop.f32.mrb[0].mxu0
        %v2638 = vadd.f32 0.0, %v2637
        %v2639 = vpop.f32.mrb[0].mxu0
        %2640 = vdwg.mxu0
        %v2642 = vsel %vm1050, %v2132, 0
        %2644 = vmatprep.subr.bf16.mxu0 0
        %2645 = vmatpush1.bf16.msra.mxu0 %v2131
        %2646 = vmatprep.subr.bf16.mxu0 0
        %2647 = vmatpush1.bf16.msra.mxu0 0
        %2648 = vmatprep.subr.bf16.mxu0 0
        %2649 = vmatpush1.bf16.msra.mxu0 0
        %2650 = vmatprep.subr.bf16.mxu0 0
        %2651 = vmatpush1.bf16.msra.mxu0 0
        %2652 = vmatprep.subr.bf16.mxu0 0
        %2653 = vmatpush1.bf16.msra.mxu0 0
        %2654 = vmatprep.subr.bf16.mxu0 0
        %2655 = vmatpush1.bf16.msra.mxu0 0
        %2656 = vmatprep.subr.bf16.mxu0 0
        %2657 = vmatpush1.bf16.msra.mxu0 0
        %2658 = vmatprep.subr.bf16.mxu0 0
        %2659 = vmatpush1.bf16.msra.mxu0 0
        %2660 = vmatprep.subr.bf16.mxu0 0
        %2661 = vmatpush1.bf16.msra.mxu0 0
        %2662 = vmatprep.subr.bf16.mxu0 0
        %2663 = vmatpush1.bf16.msra.mxu0 0
        %2664 = vmatprep.subr.bf16.mxu0 0
        %2665 = vmatpush1.bf16.msra.mxu0 0
        %2666 = vmatprep.subr.bf16.mxu0 0
        %2667 = vmatpush1.bf16.msra.mxu0 0
        %2668 = vmatprep.subr.bf16.mxu0 0
        %2669 = vmatpush1.bf16.msra.mxu0 0
        %2670 = vmatprep.subr.bf16.mxu0 0
        %2671 = vmatpush1.bf16.msra.mxu0 0
        %2672 = vmatprep.subr.bf16.mxu0 0
        %2673 = vmatpush1.bf16.msra.mxu0 0
        %2674 = vmatprep.subr.bf16.mxu0 0
        %2675 = vmatpush1.bf16.msra.mxu0 0
        %2676 = vmatprep.mubr.bf16.mxu0 0
        %2677 = vmatmul.mubr.bf16.gmra.mrb[0].mxu0 %v2642
        %v2678 = vpop.f32.mrb[0].mxu0
        %v2679 = vadd.f32 %v2297, %v2678
        %v2680 = vpop.f32.mrb[0].mxu0
        %v2681 = vpop.f32.mrb[0].mxu0
        %v2682 = vadd.f32 %v2300, %v2681
        %v2683 = vpop.f32.mrb[0].mxu0
        %2684 = vdwg.mxu0
        %v2685 = vadd.f32 %v2679, %v2466
        %v2686 = vadd.f32 %v2682, %v2469
        %v2687 = vadd.f32 %v2685, %v2635
        %v2688 = vadd.f32 %v2686, %v2638
        %v2690 = vlaneseq
        %v2691 = vshrl.u32 %v2690, 7
        %v2692 = vsub.s32 0, %v2691
        %v2693 = vrot.slane %v811, %v2692
        %v2695 = vadd.f32 %v2687, %v2693
        %v2696 = vadd.f32 %v2688, %v2693
        %v2697 = vadd.f32 %v1941, %v2695
        %v2698 = vadd.f32 %v1942, %v2696
        %v2699 = vsel %vm999, %v2697, 0.0
        %2700 = vadd.xlane.f32.xlu0 %v2699
        %v2701 = vpop.xlane.xlu0 %2700
        %v2702 = vsel %vm1746, %v2698, 0.0
        %2703 = vadd.xlane.f32.xlu0 %v2702
        %v2704 = vpop.xlane.xlu0 %2703
        %v2705 = vmul.f32 %v2701, 0.015625
        %v2706 = vmul.f32 %v2704, 0.015625
        %v2707 = vsub.f32 %v2697, %v2705
        %v2708 = vsub.f32 %v2698, %v2706
        %v2709 = vmul.f32 %v2707, %v2707
        %v2710 = vmul.f32 %v2708, %v2708
        %v2711 = vsel %vm999, %v2709, 0.0
        %2712 = vadd.xlane.f32.xlu0 %v2711
        %v2713 = vpop.xlane.xlu0 %2712
        %v2714 = vsel %vm1746, %v2710, 0.0
        %2715 = vadd.xlane.f32.xlu0 %v2714
        %v2716 = vpop.xlane.xlu0 %2715
        %v2717 = vmul.f32 %v2713, 0.015625
        %v2718 = vmul.f32 %v2716, 0.015625
        %v2719 = vadd.f32 %v2717, 1e-05
        %v2720 = vadd.f32 %v2718, 1e-05
        %v2721 = vrsqrt.pop %v2719
        %v2722 = vrsqrt.pop %v2720
        %v2723 = vmul.f32 %v2707, %v2721
        %v2724 = vmul.f32 %v2708, %v2722
        %v2726 = vlaneseq
        %v2727 = vshrl.u32 %v2726, 7
        %v2728 = vsub.s32 0, %v2727
        %v2729 = vrot.slane %v814, %v2728
        %v2731 = vmul.f32 %v2723, %v2729
        %v2732 = vmul.f32 %v2724, %v2729
        %v2734 = vlaneseq
        %v2735 = vshrl.u32 %v2734, 7
        %v2736 = vsub.s32 0, %v2735
        %v2737 = vrot.slane %v817, %v2736
        %v2739 = vadd.f32 %v2731, %v2737
        %v2740 = vadd.f32 %v2732, %v2737
        %v2741 = vpack.c.bf16 %v834, %v833
        %v2742 = vpack.c.bf16 %v836, %v835
        %v2743 = vpack.c.bf16 %v838, %v837
        %v2744 = vpack.c.bf16 %v840, %v839
        %v2745 = vpack.c.bf16 %v2740, %v2739
        %v2747 = vlaneseq
        %v2748 = vshrl.u32 %v2747, 7
        %v2749 = vsub.s32 0, %v2748
        %v2750 = vrot.slane %v850, %v2749
        %v2753 = vsel %vm999, %v2745, 0
        %2755 = vmatprep.subr.bf16.mxu0 0
        %2756 = vmatpush1.bf16.msra.mxu0 %v2741
        %2757 = vmatprep.subr.bf16.mxu0 0
        %2758 = vmatpush1.bf16.msra.mxu0 %v2742
        %2759 = vmatprep.subr.bf16.mxu0 0
        %2760 = vmatpush1.bf16.msra.mxu0 %v2743
        %2761 = vmatprep.subr.bf16.mxu0 0
        %2762 = vmatpush1.bf16.msra.mxu0 %v2744
        %2763 = vmatprep.subr.bf16.mxu0 0
        %2764 = vmatpush1.bf16.msra.mxu0 0
        %2765 = vmatprep.subr.bf16.mxu0 0
        %2766 = vmatpush1.bf16.msra.mxu0 0
        %2767 = vmatprep.subr.bf16.mxu0 0
        %2768 = vmatpush1.bf16.msra.mxu0 0
        %2769 = vmatprep.subr.bf16.mxu0 0
        %2770 = vmatpush1.bf16.msra.mxu0 0
        %2771 = vmatprep.subr.bf16.mxu0 0
        %2772 = vmatpush1.bf16.msra.mxu0 0
        %2773 = vmatprep.subr.bf16.mxu0 0
        %2774 = vmatpush1.bf16.msra.mxu0 0
        %2775 = vmatprep.subr.bf16.mxu0 0
        %2776 = vmatpush1.bf16.msra.mxu0 0
        %2777 = vmatprep.subr.bf16.mxu0 0
        %2778 = vmatpush1.bf16.msra.mxu0 0
        %2779 = vmatprep.subr.bf16.mxu0 0
        %2780 = vmatpush1.bf16.msra.mxu0 0
        %2781 = vmatprep.subr.bf16.mxu0 0
        %2782 = vmatpush1.bf16.msra.mxu0 0
        %2783 = vmatprep.subr.bf16.mxu0 0
        %2784 = vmatpush1.bf16.msra.mxu0 0
        %2785 = vmatprep.subr.bf16.mxu0 0
        %2786 = vmatpush1.bf16.msra.mxu0 0
        %2787 = vmatprep.mubr.bf16.mxu0 0
        %2788 = vmatmul.mubr.bf16.gmra.mrb[0].mxu0 %v2753
        %v2789 = vpop.f32.mrb[0].mxu0
        %v2790 = vadd.f32 %v2750, %v2789
        %v2791 = vpop.f32.mrb[0].mxu0
        %v2792 = vpop.f32.mrb[0].mxu0
        %v2793 = vadd.f32 %v2750, %v2792
        %v2794 = vpop.f32.mrb[0].mxu0
        %2795 = vdwg.mxu0
        %v2796 = vmax.f32 %v2790, 0.0
        %v2797 = vmax.f32 %v2793, 0.0
        %v2798 = vpack.c.bf16 %v869, %v868
        %v2799 = vpack.c.bf16 %v871, %v870
        %v2800 = vpack.c.bf16 %v873, %v872
        %v2801 = vpack.c.bf16 %v875, %v874
        %v2802 = vpack.c.bf16 %v877, %v876
        %v2803 = vpack.c.bf16 %v879, %v878
        %v2804 = vpack.c.bf16 %v881, %v880
        %v2805 = vpack.c.bf16 %v883, %v882
        %v2806 = vpack.c.bf16 %v2797, %v2796
        %v2808 = vlaneseq
        %v2809 = vshrl.u32 %v2808, 7
        %v2810 = vsub.s32 0, %v2809
        %v2811 = vrot.slane %v901, %v2810
        %2813 = vmatprep.subr.bf16.mxu0 0
        %2814 = vmatpush1.bf16.msra.mxu0 %v2798
        %2815 = vmatprep.subr.bf16.mxu0 0
        %2816 = vmatpush1.bf16.msra.mxu0 %v2799
        %2817 = vmatprep.subr.bf16.mxu0 0
        %2818 = vmatpush1.bf16.msra.mxu0 %v2800
        %2819 = vmatprep.subr.bf16.mxu0 0
        %2820 = vmatpush1.bf16.msra.mxu0 %v2801
        %2821 = vmatprep.subr.bf16.mxu0 0
        %2822 = vmatpush1.bf16.msra.mxu0 %v2802
        %2823 = vmatprep.subr.bf16.mxu0 0
        %2824 = vmatpush1.bf16.msra.mxu0 %v2803
        %2825 = vmatprep.subr.bf16.mxu0 0
        %2826 = vmatpush1.bf16.msra.mxu0 %v2804
        %2827 = vmatprep.subr.bf16.mxu0 0
        %2828 = vmatpush1.bf16.msra.mxu0 %v2805
        %2829 = vmatprep.subr.bf16.mxu0 0
        %2830 = vmatpush1.bf16.msra.mxu0 0
        %2831 = vmatprep.subr.bf16.mxu0 0
        %2832 = vmatpush1.bf16.msra.mxu0 0
        %2833 = vmatprep.subr.bf16.mxu0 0
        %2834 = vmatpush1.bf16.msra.mxu0 0
        %2835 = vmatprep.subr.bf16.mxu0 0
        %2836 = vmatpush1.bf16.msra.mxu0 0
        %2837 = vmatprep.subr.bf16.mxu0 0
        %2838 = vmatpush1.bf16.msra.mxu0 0
        %2839 = vmatprep.subr.bf16.mxu0 0
        %2840 = vmatpush1.bf16.msra.mxu0 0
        %2841 = vmatprep.subr.bf16.mxu0 0
        %2842 = vmatpush1.bf16.msra.mxu0 0
        %2843 = vmatprep.subr.bf16.mxu0 0
        %2844 = vmatpush1.bf16.msra.mxu0 0
        %2845 = vmatprep.mubr.bf16.mxu0 0
        %2846 = vmatmul.mubr.bf16.gmra.mrb[0].mxu0 %v2806
        %v2847 = vpop.f32.mrb[0].mxu0
        %v2848 = vadd.f32 %v2811, %v2847
        %v2849 = vpop.f32.mrb[0].mxu0
        %v2850 = vpop.f32.mrb[0].mxu0
        %v2851 = vadd.f32 %v2811, %v2850
        %v2852 = vpop.f32.mrb[0].mxu0
        %2853 = vdwg.mxu0
        %v2854 = vadd.f32 %v2739, %v2848
        %v2855 = vadd.f32 %v2740, %v2851
        %v2856 = vsel %vm999, %v2854, 0.0
        %2857 = vadd.xlane.f32.xlu0 %v2856
        %v2858 = vpop.xlane.xlu0 %2857
        %v2859 = vsel %vm1746, %v2855, 0.0
        %2860 = vadd.xlane.f32.xlu0 %v2859
        %v2861 = vpop.xlane.xlu0 %2860
        %v2862 = vmul.f32 %v2858, 0.015625
        %v2863 = vmul.f32 %v2861, 0.015625
        %v2864 = vsub.f32 %v2854, %v2862
        %v2865 = vsub.f32 %v2855, %v2863
        %v2866 = vmul.f32 %v2864, %v2864
        %v2867 = vmul.f32 %v2865, %v2865
        %v2868 = vsel %vm999, %v2866, 0.0
        %2869 = vadd.xlane.f32.xlu0 %v2868
        %v2870 = vpop.xlane.xlu0 %2869
        %v2871 = vsel %vm1746, %v2867, 0.0
        %2872 = vadd.xlane.f32.xlu0 %v2871
        %v2873 = vpop.xlane.xlu0 %2872
        %v2874 = vmul.f32 %v2870, 0.015625
        %v2875 = vmul.f32 %v2873, 0.015625
        %v2876 = vadd.f32 %v2874, 1e-05
        %v2877 = vadd.f32 %v2875, 1e-05
        %v2878 = vrsqrt.pop %v2876
        %v2879 = vrsqrt.pop %v2877
        %v2880 = vmul.f32 %v2864, %v2878
        %v2881 = vmul.f32 %v2865, %v2879
        %v2883 = vlaneseq
        %v2884 = vshrl.u32 %v2883, 7
        %v2885 = vsub.s32 0, %v2884
        %v2886 = vrot.slane %v820, %v2885
        %v2888 = vmul.f32 %v2880, %v2886
        %v2889 = vmul.f32 %v2881, %v2886
        %v2891 = vlaneseq
        %v2892 = vshrl.u32 %v2891, 7
        %v2893 = vsub.s32 0, %v2892
        %v2894 = vrot.slane %v823, %v2893
        %v2896 = vadd.f32 %v2888, %v2894
        %v2897 = vadd.f32 %v2889, %v2894
        %v2898 = vpack.c.bf16 %v769, %v767
        %v2899 = vpack.c.bf16 %v770, %v768
        %v2900 = vpack.c.bf16 %v773, %v771
        %v2901 = vpack.c.bf16 %v774, %v772
        %v2902 = vpack.c.bf16 %v777, %v775
        %v2903 = vpack.c.bf16 %v778, %v776
        %v2904 = vpack.c.bf16 %v781, %v779
        %v2905 = vpack.c.bf16 %v782, %v780
        %v2906 = vpack.c.bf16 %v2897, %v2896
        %v2908 = vlaneseq
        %v2909 = vshrl.u32 %v2908, 7
        %v2910 = vsub.s32 0, %v2909
        %v2911 = vrot.slane %v785, %v2910
        %v2912 = vlaneseq
        %v2913 = vshrl.u32 %v2912, 7
        %v2914 = vsub.s32 1, %v2913
        %v2915 = vrot.slane %v785, %v2914
        %v2919 = vsel %vm999, %v2906, 0
        %2921 = vmatprep.subr.bf16.mxu0 %v2899
        %2922 = vmatpush1.bf16.msra.mxu0 %v2898
        %2923 = vmatprep.subr.bf16.mxu0 %v2901
        %2924 = vmatpush1.bf16.msra.mxu0 %v2900
        %2925 = vmatprep.subr.bf16.mxu0 %v2903
        %2926 = vmatpush1.bf16.msra.mxu0 %v2902
        %2927 = vmatprep.subr.bf16.mxu0 %v2905
        %2928 = vmatpush1.bf16.msra.mxu0 %v2904
        %2929 = vmatprep.subr.bf16.mxu0 0
        %2930 = vmatpush1.bf16.msra.mxu0 0
        %2931 = vmatprep.subr.bf16.mxu0 0
        %2932 = vmatpush1.bf16.msra.mxu0 0
        %2933 = vmatprep.subr.bf16.mxu0 0
        %2934 = vmatpush1.bf16.msra.mxu0 0
        %2935 = vmatprep.subr.bf16.mxu0 0
        %2936 = vmatpush1.bf16.msra.mxu0 0
        %2937 = vmatprep.subr.bf16.mxu0 0
        %2938 = vmatpush1.bf16.msra.mxu0 0
        %2939 = vmatprep.subr.bf16.mxu0 0
        %2940 = vmatpush1.bf16.msra.mxu0 0
        %2941 = vmatprep.subr.bf16.mxu0 0
        %2942 = vmatpush1.bf16.msra.mxu0 0
        %2943 = vmatprep.subr.bf16.mxu0 0
        %2944 = vmatpush1.bf16.msra.mxu0 0
        %2945 = vmatprep.subr.bf16.mxu0 0
        %2946 = vmatpush1.bf16.msra.mxu0 0
        %2947 = vmatprep.subr.bf16.mxu0 0
        %2948 = vmatpush1.bf16.msra.mxu0 0
        %2949 = vmatprep.subr.bf16.mxu0 0
        %2950 = vmatpush1.bf16.msra.mxu0 0
        %2951 = vmatprep.subr.bf16.mxu0 0
        %2952 = vmatpush1.bf16.msra.mxu0 0
        %2953 = vmatprep.mubr.bf16.mxu0 0
        %2954 = vmatmul.mubr.bf16.gmra.mrb[0].mxu0 %v2919
        %v2955 = vpop.f32.mrb[0].mxu0
        %v2956 = vadd.f32 %v2911, %v2955
        %v2957 = vpop.f32.mrb[0].mxu0
        %v2958 = vadd.f32 %v2915, %v2957
        %v2959 = vpop.f32.mrb[0].mxu0
        %v2960 = vadd.f32 %v2911, %v2959
        %v2961 = vpop.f32.mrb[0].mxu0
        %v2962 = vadd.f32 %v2915, %v2961
        %2963 = vdwg.mxu0
        %v2964 = vpack.c.bf16 %v2960, %v2956
        %2966 = vrot.lane.b32.xlu0 %v2964, 64
        %v2967 = vpop.permute.xlu0 %2966
        %v2969 = vsel %vm1050, %v2964, 0
        %v2972 = vsel %vm1050, %v2967, 0
        %2974 = vmatprep.subr.bf16.mxu0 0
        %2975 = vmatpush1.bf16.xpose.msra.mxu0 %v2972
        %2976 = vmatprep.subr.bf16.mxu0 0
        %2977 = vmatpush1.bf16.xpose.msra.mxu0 0
        %2978 = vmatprep.subr.bf16.mxu0 0
        %2979 = vmatpush1.bf16.xpose.msra.mxu0 0
        %2980 = vmatprep.subr.bf16.mxu0 0
        %2981 = vmatpush1.bf16.xpose.msra.mxu0 0
        %2982 = vmatprep.subr.bf16.mxu0 0
        %2983 = vmatpush1.bf16.xpose.msra.mxu0 0
        %2984 = vmatprep.subr.bf16.mxu0 0
        %2985 = vmatpush1.bf16.xpose.msra.mxu0 0
        %2986 = vmatprep.subr.bf16.mxu0 0
        %2987 = vmatpush1.bf16.xpose.msra.mxu0 0
        %2988 = vmatprep.subr.bf16.mxu0 0
        %2989 = vmatpush1.bf16.xpose.msra.mxu0 0
        %2990 = vmatprep.subr.bf16.mxu0 0
        %2991 = vmatpush1.bf16.xpose.msra.mxu0 0
        %2992 = vmatprep.subr.bf16.mxu0 0
        %2993 = vmatpush1.bf16.xpose.msra.mxu0 0
        %2994 = vmatprep.subr.bf16.mxu0 0
        %2995 = vmatpush1.bf16.xpose.msra.mxu0 0
        %2996 = vmatprep.subr.bf16.mxu0 0
        %2997 = vmatpush1.bf16.xpose.msra.mxu0 0
        %2998 = vmatprep.subr.bf16.mxu0 0
        %2999 = vmatpush1.bf16.xpose.msra.mxu0 0
        %3000 = vmatprep.subr.bf16.mxu0 0
        %3001 = vmatpush1.bf16.xpose.msra.mxu0 0
        %3002 = vmatprep.subr.bf16.mxu0 0
        %3003 = vmatpush1.bf16.xpose.msra.mxu0 0
        %3004 = vmatprep.subr.bf16.mxu0 0
        %3005 = vmatpush1.bf16.xpose.msra.mxu0 0
        %3006 = vmatprep.mubr.bf16.mxu0 0
        %3007 = vmatmul.mubr.bf16.gmra.mrb[0].mxu0 %v2969
        %v3008 = vpop.f32.mrb[0].mxu0
        %v3009 = vadd.f32 0.0, %v3008
        %v3010 = vpop.f32.mrb[0].mxu0
        %v3011 = vpop.f32.mrb[0].mxu0
        %v3012 = vadd.f32 0.0, %v3011
        %v3013 = vpop.f32.mrb[0].mxu0
        %3014 = vdwg.mxu0
        %v3015 = vsel %vm1098, %v3009, -inf
        %3016 = vmax.xlane.f32.xlu0 %v3015
        %v3017 = vpop.xlane.xlu0 %3016
        %v3018 = vsel %vm1102, %v3012, -inf
        %3019 = vmax.xlane.f32.xlu0 %v3018
        %v3020 = vpop.xlane.xlu0 %3019
        %v3021 = vsub.f32 %v3009, %v3017
        %v3022 = vsub.f32 %v3012, %v3020
        %v3023 = vmul.f32 %v3021, 1.442695
        %v3024 = vpow.pop %v3023
        %v3025 = vmul.f32 %v3022, 1.442695
        %v3026 = vpow.pop %v3025
        %v3027 = vsel %vm1098, %v3024, 0.0
        %3028 = vadd.xlane.f32.xlu0 %v3027
        %v3029 = vpop.xlane.xlu0 %3028
        %v3030 = vsel %vm1102, %v3026, 0.0
        %3031 = vadd.xlane.f32.xlu0 %v3030
        %v3032 = vpop.xlane.xlu0 %3031
        %v3033 = vrcp.pop %v3029
        %v3034 = vrcp.pop %v3032
        %v3035 = vmul.f32 %v3024, %v3033
        %v3036 = vmul.f32 %v3026, %v3034
        %v3037 = vpack.c.bf16 %v3036, %v3035
        %v3038 = vpack.c.bf16 %v2962, %v2958
        %v3040 = vsel %vm1098, %v3037, 0
        %v3043 = vand.u32 %v3038, %v1130
        %3045 = vmatprep.subr.bf16.mxu0 0
        %3046 = vmatpush1.bf16.msra.mxu0 %v3043
        %3047 = vmatprep.subr.bf16.mxu0 0
        %3048 = vmatpush1.bf16.msra.mxu0 0
        %3049 = vmatprep.subr.bf16.mxu0 0
        %3050 = vmatpush1.bf16.msra.mxu0 0
        %3051 = vmatprep.subr.bf16.mxu0 0
        %3052 = vmatpush1.bf16.msra.mxu0 0
        %3053 = vmatprep.subr.bf16.mxu0 0
        %3054 = vmatpush1.bf16.msra.mxu0 0
        %3055 = vmatprep.subr.bf16.mxu0 0
        %3056 = vmatpush1.bf16.msra.mxu0 0
        %3057 = vmatprep.subr.bf16.mxu0 0
        %3058 = vmatpush1.bf16.msra.mxu0 0
        %3059 = vmatprep.subr.bf16.mxu0 0
        %3060 = vmatpush1.bf16.msra.mxu0 0
        %3061 = vmatprep.subr.bf16.mxu0 0
        %3062 = vmatpush1.bf16.msra.mxu0 0
        %3063 = vmatprep.subr.bf16.mxu0 0
        %3064 = vmatpush1.bf16.msra.mxu0 0
        %3065 = vmatprep.subr.bf16.mxu0 0
        %3066 = vmatpush1.bf16.msra.mxu0 0
        %3067 = vmatprep.subr.bf16.mxu0 0
        %3068 = vmatpush1.bf16.msra.mxu0 0
        %3069 = vmatprep.subr.bf16.mxu0 0
        %3070 = vmatpush1.bf16.msra.mxu0 0
        %3071 = vmatprep.subr.bf16.mxu0 0
        %3072 = vmatpush1.bf16.msra.mxu0 0
        %3073 = vmatprep.subr.bf16.mxu0 0
        %3074 = vmatpush1.bf16.msra.mxu0 0
        %3075 = vmatprep.subr.bf16.mxu0 0
        %3076 = vmatpush1.bf16.msra.mxu0 0
        %3077 = vmatprep.mubr.bf16.mxu0 0
        %3078 = vmatmul.mubr.bf16.gmra.mrb[0].mxu0 %v3040
        %v3079 = vpop.f32.mrb[0].mxu0
        %v3080 = vadd.f32 0.0, %v3079
        %v3081 = vpop.f32.mrb[0].mxu0
        %v3082 = vpop.f32.mrb[0].mxu0
        %v3083 = vadd.f32 0.0, %v3082
        %v3084 = vpop.f32.mrb[0].mxu0
        %3085 = vdwg.mxu0
        %v3086 = vpack.c.bf16 %v803, %v802
        %v3087 = vpack.c.bf16 %v3083, %v3080
        %3088 = vrot.lane.b32.xlu0 %v2964, 112
        %v3089 = vpop.permute.xlu0 %3088
        %3090 = vrot.lane.b32.xlu0 %v2964, 48
        %v3091 = vpop.permute.xlu0 %3090
        %v3093 = vsel %vm1050, %v3089, 0
        %v3096 = vsel %vm1050, %v3091, 0
        %3098 = vmatprep.subr.bf16.mxu0 0
        %3099 = vmatpush1.bf16.xpose.msra.mxu0 %v3096
        %3100 = vmatprep.subr.bf16.mxu0 0
        %3101 = vmatpush1.bf16.xpose.msra.mxu0 0
        %3102 = vmatprep.subr.bf16.mxu0 0
        %3103 = vmatpush1.bf16.xpose.msra.mxu0 0
        %3104 = vmatprep.subr.bf16.mxu0 0
        %3105 = vmatpush1.bf16.xpose.msra.mxu0 0
        %3106 = vmatprep.subr.bf16.mxu0 0
        %3107 = vmatpush1.bf16.xpose.msra.mxu0 0
        %3108 = vmatprep.subr.bf16.mxu0 0
        %3109 = vmatpush1.bf16.xpose.msra.mxu0 0
        %3110 = vmatprep.subr.bf16.mxu0 0
        %3111 = vmatpush1.bf16.xpose.msra.mxu0 0
        %3112 = vmatprep.subr.bf16.mxu0 0
        %3113 = vmatpush1.bf16.xpose.msra.mxu0 0
        %3114 = vmatprep.subr.bf16.mxu0 0
        %3115 = vmatpush1.bf16.xpose.msra.mxu0 0
        %3116 = vmatprep.subr.bf16.mxu0 0
        %3117 = vmatpush1.bf16.xpose.msra.mxu0 0
        %3118 = vmatprep.subr.bf16.mxu0 0
        %3119 = vmatpush1.bf16.xpose.msra.mxu0 0
        %3120 = vmatprep.subr.bf16.mxu0 0
        %3121 = vmatpush1.bf16.xpose.msra.mxu0 0
        %3122 = vmatprep.subr.bf16.mxu0 0
        %3123 = vmatpush1.bf16.xpose.msra.mxu0 0
        %3124 = vmatprep.subr.bf16.mxu0 0
        %3125 = vmatpush1.bf16.xpose.msra.mxu0 0
        %3126 = vmatprep.subr.bf16.mxu0 0
        %3127 = vmatpush1.bf16.xpose.msra.mxu0 0
        %3128 = vmatprep.subr.bf16.mxu0 0
        %3129 = vmatpush1.bf16.xpose.msra.mxu0 0
        %3130 = vmatprep.mubr.bf16.mxu0 0
        %3131 = vmatmul.mubr.bf16.gmra.mrb[0].mxu0 %v3093
        %v3132 = vpop.f32.mrb[0].mxu0
        %v3133 = vadd.f32 0.0, %v3132
        %v3134 = vpop.f32.mrb[0].mxu0
        %v3135 = vpop.f32.mrb[0].mxu0
        %v3136 = vadd.f32 0.0, %v3135
        %v3137 = vpop.f32.mrb[0].mxu0
        %3138 = vdwg.mxu0
        %v3139 = vsel %vm1098, %v3133, -inf
        %3140 = vmax.xlane.f32.xlu0 %v3139
        %v3141 = vpop.xlane.xlu0 %3140
        %v3142 = vsel %vm1102, %v3136, -inf
        %3143 = vmax.xlane.f32.xlu0 %v3142
        %v3144 = vpop.xlane.xlu0 %3143
        %v3145 = vsub.f32 %v3133, %v3141
        %v3146 = vsub.f32 %v3136, %v3144
        %v3147 = vmul.f32 %v3145, 1.442695
        %v3148 = vpow.pop %v3147
        %v3149 = vmul.f32 %v3146, 1.442695
        %v3150 = vpow.pop %v3149
        %v3151 = vsel %vm1098, %v3148, 0.0
        %3152 = vadd.xlane.f32.xlu0 %v3151
        %v3153 = vpop.xlane.xlu0 %3152
        %v3154 = vsel %vm1102, %v3150, 0.0
        %3155 = vadd.xlane.f32.xlu0 %v3154
        %v3156 = vpop.xlane.xlu0 %3155
        %v3157 = vrcp.pop %v3153
        %v3158 = vrcp.pop %v3156
        %v3159 = vmul.f32 %v3148, %v3157
        %v3160 = vmul.f32 %v3150, %v3158
        %v3161 = vpack.c.bf16 %v3160, %v3159
        %3163 = vrot.lane.b32.xlu0 %v3038, 112
        %v3164 = vpop.permute.xlu0 %3163
        %v3166 = vsel %vm1098, %v3161, 0
        %v3169 = vand.u32 %v3164, %v1130
        %3171 = vmatprep.subr.bf16.mxu0 0
        %3172 = vmatpush1.bf16.msra.mxu0 %v3169
        %3173 = vmatprep.subr.bf16.mxu0 0
        %3174 = vmatpush1.bf16.msra.mxu0 0
        %3175 = vmatprep.subr.bf16.mxu0 0
        %3176 = vmatpush1.bf16.msra.mxu0 0
        %3177 = vmatprep.subr.bf16.mxu0 0
        %3178 = vmatpush1.bf16.msra.mxu0 0
        %3179 = vmatprep.subr.bf16.mxu0 0
        %3180 = vmatpush1.bf16.msra.mxu0 0
        %3181 = vmatprep.subr.bf16.mxu0 0
        %3182 = vmatpush1.bf16.msra.mxu0 0
        %3183 = vmatprep.subr.bf16.mxu0 0
        %3184 = vmatpush1.bf16.msra.mxu0 0
        %3185 = vmatprep.subr.bf16.mxu0 0
        %3186 = vmatpush1.bf16.msra.mxu0 0
        %3187 = vmatprep.subr.bf16.mxu0 0
        %3188 = vmatpush1.bf16.msra.mxu0 0
        %3189 = vmatprep.subr.bf16.mxu0 0
        %3190 = vmatpush1.bf16.msra.mxu0 0
        %3191 = vmatprep.subr.bf16.mxu0 0
        %3192 = vmatpush1.bf16.msra.mxu0 0
        %3193 = vmatprep.subr.bf16.mxu0 0
        %3194 = vmatpush1.bf16.msra.mxu0 0
        %3195 = vmatprep.subr.bf16.mxu0 0
        %3196 = vmatpush1.bf16.msra.mxu0 0
        %3197 = vmatprep.subr.bf16.mxu0 0
        %3198 = vmatpush1.bf16.msra.mxu0 0
        %3199 = vmatprep.subr.bf16.mxu0 0
        %3200 = vmatpush1.bf16.msra.mxu0 0
        %3201 = vmatprep.subr.bf16.mxu0 0
        %3202 = vmatpush1.bf16.msra.mxu0 0
        %3203 = vmatprep.mubr.bf16.mxu0 0
        %3204 = vmatmul.mubr.bf16.gmra.mrb[0].mxu0 %v3166
        %v3205 = vpop.f32.mrb[0].mxu0
        %v3206 = vadd.f32 0.0, %v3205
        %v3207 = vpop.f32.mrb[0].mxu0
        %v3208 = vpop.f32.mrb[0].mxu0
        %v3209 = vadd.f32 0.0, %v3208
        %v3210 = vpop.f32.mrb[0].mxu0
        %3211 = vdwg.mxu0
        %v3212 = vpack.c.bf16 %v805, %v804
        %v3213 = vpack.c.bf16 %v3209, %v3206
        %v3215 = vsel %vm1050, %v3213, 0
        %3217 = vmatprep.subr.bf16.mxu0 0
        %3218 = vmatpush1.bf16.msra.mxu0 %v3212
        %3219 = vmatprep.subr.bf16.mxu0 0
        %3220 = vmatpush1.bf16.msra.mxu0 0
        %3221 = vmatprep.subr.bf16.mxu0 0
        %3222 = vmatpush1.bf16.msra.mxu0 0
        %3223 = vmatprep.subr.bf16.mxu0 0
        %3224 = vmatpush1.bf16.msra.mxu0 0
        %3225 = vmatprep.subr.bf16.mxu0 0
        %3226 = vmatpush1.bf16.msra.mxu0 0
        %3227 = vmatprep.subr.bf16.mxu0 0
        %3228 = vmatpush1.bf16.msra.mxu0 0
        %3229 = vmatprep.subr.bf16.mxu0 0
        %3230 = vmatpush1.bf16.msra.mxu0 0
        %3231 = vmatprep.subr.bf16.mxu0 0
        %3232 = vmatpush1.bf16.msra.mxu0 0
        %3233 = vmatprep.subr.bf16.mxu0 0
        %3234 = vmatpush1.bf16.msra.mxu0 0
        %3235 = vmatprep.subr.bf16.mxu0 0
        %3236 = vmatpush1.bf16.msra.mxu0 0
        %3237 = vmatprep.subr.bf16.mxu0 0
        %3238 = vmatpush1.bf16.msra.mxu0 0
        %3239 = vmatprep.subr.bf16.mxu0 0
        %3240 = vmatpush1.bf16.msra.mxu0 0
        %3241 = vmatprep.subr.bf16.mxu0 0
        %3242 = vmatpush1.bf16.msra.mxu0 0
        %3243 = vmatprep.subr.bf16.mxu0 0
        %3244 = vmatpush1.bf16.msra.mxu0 0
        %3245 = vmatprep.subr.bf16.mxu0 0
        %3246 = vmatpush1.bf16.msra.mxu0 0
        %3247 = vmatprep.subr.bf16.mxu0 0
        %3248 = vmatpush1.bf16.msra.mxu0 0
        %3249 = vmatprep.mubr.bf16.mxu0 0
        %3250 = vmatmul.mubr.bf16.gmra.mrb[0].mxu0 %v3215
        %v3251 = vpop.f32.mrb[0].mxu0
        %v3252 = vadd.f32 0.0, %v3251
        %v3253 = vpop.f32.mrb[0].mxu0
        %v3254 = vpop.f32.mrb[0].mxu0
        %v3255 = vadd.f32 0.0, %v3254
        %v3256 = vpop.f32.mrb[0].mxu0
        %3257 = vdwg.mxu0
        %3258 = vrot.lane.b32.xlu0 %v2964, 96
        %v3259 = vpop.permute.xlu0 %3258
        %3260 = vrot.lane.b32.xlu0 %v2964, 32
        %v3261 = vpop.permute.xlu0 %3260
        %v3263 = vsel %vm1050, %v3259, 0
        %v3266 = vsel %vm1050, %v3261, 0
        %3268 = vmatprep.subr.bf16.mxu0 0
        %3269 = vmatpush1.bf16.xpose.msra.mxu0 %v3266
        %3270 = vmatprep.subr.bf16.mxu0 0
        %3271 = vmatpush1.bf16.xpose.msra.mxu0 0
        %3272 = vmatprep.subr.bf16.mxu0 0
        %3273 = vmatpush1.bf16.xpose.msra.mxu0 0
        %3274 = vmatprep.subr.bf16.mxu0 0
        %3275 = vmatpush1.bf16.xpose.msra.mxu0 0
        %3276 = vmatprep.subr.bf16.mxu0 0
        %3277 = vmatpush1.bf16.xpose.msra.mxu0 0
        %3278 = vmatprep.subr.bf16.mxu0 0
        %3279 = vmatpush1.bf16.xpose.msra.mxu0 0
        %3280 = vmatprep.subr.bf16.mxu0 0
        %3281 = vmatpush1.bf16.xpose.msra.mxu0 0
        %3282 = vmatprep.subr.bf16.mxu0 0
        %3283 = vmatpush1.bf16.xpose.msra.mxu0 0
        %3284 = vmatprep.subr.bf16.mxu0 0
        %3285 = vmatpush1.bf16.xpose.msra.mxu0 0
        %3286 = vmatprep.subr.bf16.mxu0 0
        %3287 = vmatpush1.bf16.xpose.msra.mxu0 0
        %3288 = vmatprep.subr.bf16.mxu0 0
        %3289 = vmatpush1.bf16.xpose.msra.mxu0 0
        %3290 = vmatprep.subr.bf16.mxu0 0
        %3291 = vmatpush1.bf16.xpose.msra.mxu0 0
        %3292 = vmatprep.subr.bf16.mxu0 0
        %3293 = vmatpush1.bf16.xpose.msra.mxu0 0
        %3294 = vmatprep.subr.bf16.mxu0 0
        %3295 = vmatpush1.bf16.xpose.msra.mxu0 0
        %3296 = vmatprep.subr.bf16.mxu0 0
        %3297 = vmatpush1.bf16.xpose.msra.mxu0 0
        %3298 = vmatprep.subr.bf16.mxu0 0
        %3299 = vmatpush1.bf16.xpose.msra.mxu0 0
        %3300 = vmatprep.mubr.bf16.mxu0 0
        %3301 = vmatmul.mubr.bf16.gmra.mrb[0].mxu0 %v3263
        %v3302 = vpop.f32.mrb[0].mxu0
        %v3303 = vadd.f32 0.0, %v3302
        %v3304 = vpop.f32.mrb[0].mxu0
        %v3305 = vpop.f32.mrb[0].mxu0
        %v3306 = vadd.f32 0.0, %v3305
        %v3307 = vpop.f32.mrb[0].mxu0
        %3308 = vdwg.mxu0
        %v3309 = vsel %vm1098, %v3303, -inf
        %3310 = vmax.xlane.f32.xlu0 %v3309
        %v3311 = vpop.xlane.xlu0 %3310
        %v3312 = vsel %vm1102, %v3306, -inf
        %3313 = vmax.xlane.f32.xlu0 %v3312
        %v3314 = vpop.xlane.xlu0 %3313
        %v3315 = vsub.f32 %v3303, %v3311
        %v3316 = vsub.f32 %v3306, %v3314
        %v3317 = vmul.f32 %v3315, 1.442695
        %v3318 = vpow.pop %v3317
        %v3319 = vmul.f32 %v3316, 1.442695
        %v3320 = vpow.pop %v3319
        %v3321 = vsel %vm1098, %v3318, 0.0
        %3322 = vadd.xlane.f32.xlu0 %v3321
        %v3323 = vpop.xlane.xlu0 %3322
        %v3324 = vsel %vm1102, %v3320, 0.0
        %3325 = vadd.xlane.f32.xlu0 %v3324
        %v3326 = vpop.xlane.xlu0 %3325
        %v3327 = vrcp.pop %v3323
        %v3328 = vrcp.pop %v3326
        %v3329 = vmul.f32 %v3318, %v3327
        %v3330 = vmul.f32 %v3320, %v3328
        %v3331 = vpack.c.bf16 %v3330, %v3329
        %3332 = vrot.lane.b32.xlu0 %v3038, 96
        %v3333 = vpop.permute.xlu0 %3332
        %v3335 = vsel %vm1098, %v3331, 0
        %v3338 = vand.u32 %v3333, %v1130
        %3340 = vmatprep.subr.bf16.mxu0 0
        %3341 = vmatpush1.bf16.msra.mxu0 %v3338
        %3342 = vmatprep.subr.bf16.mxu0 0
        %3343 = vmatpush1.bf16.msra.mxu0 0
        %3344 = vmatprep.subr.bf16.mxu0 0
        %3345 = vmatpush1.bf16.msra.mxu0 0
        %3346 = vmatprep.subr.bf16.mxu0 0
        %3347 = vmatpush1.bf16.msra.mxu0 0
        %3348 = vmatprep.subr.bf16.mxu0 0
        %3349 = vmatpush1.bf16.msra.mxu0 0
        %3350 = vmatprep.subr.bf16.mxu0 0
        %3351 = vmatpush1.bf16.msra.mxu0 0
        %3352 = vmatprep.subr.bf16.mxu0 0
        %3353 = vmatpush1.bf16.msra.mxu0 0
        %3354 = vmatprep.subr.bf16.mxu0 0
        %3355 = vmatpush1.bf16.msra.mxu0 0
        %3356 = vmatprep.subr.bf16.mxu0 0
        %3357 = vmatpush1.bf16.msra.mxu0 0
        %3358 = vmatprep.subr.bf16.mxu0 0
        %3359 = vmatpush1.bf16.msra.mxu0 0
        %3360 = vmatprep.subr.bf16.mxu0 0
        %3361 = vmatpush1.bf16.msra.mxu0 0
        %3362 = vmatprep.subr.bf16.mxu0 0
        %3363 = vmatpush1.bf16.msra.mxu0 0
        %3364 = vmatprep.subr.bf16.mxu0 0
        %3365 = vmatpush1.bf16.msra.mxu0 0
        %3366 = vmatprep.subr.bf16.mxu0 0
        %3367 = vmatpush1.bf16.msra.mxu0 0
        %3368 = vmatprep.subr.bf16.mxu0 0
        %3369 = vmatpush1.bf16.msra.mxu0 0
        %3370 = vmatprep.subr.bf16.mxu0 0
        %3371 = vmatpush1.bf16.msra.mxu0 0
        %3372 = vmatprep.mubr.bf16.mxu0 0
        %3373 = vmatmul.mubr.bf16.gmra.mrb[0].mxu0 %v3335
        %v3374 = vpop.f32.mrb[0].mxu0
        %v3375 = vadd.f32 0.0, %v3374
        %v3376 = vpop.f32.mrb[0].mxu0
        %v3377 = vpop.f32.mrb[0].mxu0
        %v3378 = vadd.f32 0.0, %v3377
        %v3379 = vpop.f32.mrb[0].mxu0
        %3380 = vdwg.mxu0
        %v3381 = vpack.c.bf16 %v807, %v806
        %v3382 = vpack.c.bf16 %v3378, %v3375
        %v3384 = vsel %vm1050, %v3382, 0
        %3386 = vmatprep.subr.bf16.mxu0 0
        %3387 = vmatpush1.bf16.msra.mxu0 %v3381
        %3388 = vmatprep.subr.bf16.mxu0 0
        %3389 = vmatpush1.bf16.msra.mxu0 0
        %3390 = vmatprep.subr.bf16.mxu0 0
        %3391 = vmatpush1.bf16.msra.mxu0 0
        %3392 = vmatprep.subr.bf16.mxu0 0
        %3393 = vmatpush1.bf16.msra.mxu0 0
        %3394 = vmatprep.subr.bf16.mxu0 0
        %3395 = vmatpush1.bf16.msra.mxu0 0
        %3396 = vmatprep.subr.bf16.mxu0 0
        %3397 = vmatpush1.bf16.msra.mxu0 0
        %3398 = vmatprep.subr.bf16.mxu0 0
        %3399 = vmatpush1.bf16.msra.mxu0 0
        %3400 = vmatprep.subr.bf16.mxu0 0
        %3401 = vmatpush1.bf16.msra.mxu0 0
        %3402 = vmatprep.subr.bf16.mxu0 0
        %3403 = vmatpush1.bf16.msra.mxu0 0
        %3404 = vmatprep.subr.bf16.mxu0 0
        %3405 = vmatpush1.bf16.msra.mxu0 0
        %3406 = vmatprep.subr.bf16.mxu0 0
        %3407 = vmatpush1.bf16.msra.mxu0 0
        %3408 = vmatprep.subr.bf16.mxu0 0
        %3409 = vmatpush1.bf16.msra.mxu0 0
        %3410 = vmatprep.subr.bf16.mxu0 0
        %3411 = vmatpush1.bf16.msra.mxu0 0
        %3412 = vmatprep.subr.bf16.mxu0 0
        %3413 = vmatpush1.bf16.msra.mxu0 0
        %3414 = vmatprep.subr.bf16.mxu0 0
        %3415 = vmatpush1.bf16.msra.mxu0 0
        %3416 = vmatprep.subr.bf16.mxu0 0
        %3417 = vmatpush1.bf16.msra.mxu0 0
        %3418 = vmatprep.mubr.bf16.mxu0 0
        %3419 = vmatmul.mubr.bf16.gmra.mrb[0].mxu0 %v3384
        %v3420 = vpop.f32.mrb[0].mxu0
        %v3421 = vadd.f32 0.0, %v3420
        %v3422 = vpop.f32.mrb[0].mxu0
        %v3423 = vpop.f32.mrb[0].mxu0
        %v3424 = vadd.f32 0.0, %v3423
        %v3425 = vpop.f32.mrb[0].mxu0
        %3426 = vdwg.mxu0
        %3427 = vrot.lane.b32.xlu0 %v2964, 80
        %v3428 = vpop.permute.xlu0 %3427
        %3429 = vrot.lane.b32.xlu0 %v2964, 16
        %v3430 = vpop.permute.xlu0 %3429
        %v3432 = vsel %vm1050, %v3428, 0
        %v3435 = vsel %vm1050, %v3430, 0
        %3437 = vmatprep.subr.bf16.mxu0 0
        %3438 = vmatpush1.bf16.xpose.msra.mxu0 %v3435
        %3439 = vmatprep.subr.bf16.mxu0 0
        %3440 = vmatpush1.bf16.xpose.msra.mxu0 0
        %3441 = vmatprep.subr.bf16.mxu0 0
        %3442 = vmatpush1.bf16.xpose.msra.mxu0 0
        %3443 = vmatprep.subr.bf16.mxu0 0
        %3444 = vmatpush1.bf16.xpose.msra.mxu0 0
        %3445 = vmatprep.subr.bf16.mxu0 0
        %3446 = vmatpush1.bf16.xpose.msra.mxu0 0
        %3447 = vmatprep.subr.bf16.mxu0 0
        %3448 = vmatpush1.bf16.xpose.msra.mxu0 0
        %3449 = vmatprep.subr.bf16.mxu0 0
        %3450 = vmatpush1.bf16.xpose.msra.mxu0 0
        %3451 = vmatprep.subr.bf16.mxu0 0
        %3452 = vmatpush1.bf16.xpose.msra.mxu0 0
        %3453 = vmatprep.subr.bf16.mxu0 0
        %3454 = vmatpush1.bf16.xpose.msra.mxu0 0
        %3455 = vmatprep.subr.bf16.mxu0 0
        %3456 = vmatpush1.bf16.xpose.msra.mxu0 0
        %3457 = vmatprep.subr.bf16.mxu0 0
        %3458 = vmatpush1.bf16.xpose.msra.mxu0 0
        %3459 = vmatprep.subr.bf16.mxu0 0
        %3460 = vmatpush1.bf16.xpose.msra.mxu0 0
        %3461 = vmatprep.subr.bf16.mxu0 0
        %3462 = vmatpush1.bf16.xpose.msra.mxu0 0
        %3463 = vmatprep.subr.bf16.mxu0 0
        %3464 = vmatpush1.bf16.xpose.msra.mxu0 0
        %3465 = vmatprep.subr.bf16.mxu0 0
        %3466 = vmatpush1.bf16.xpose.msra.mxu0 0
        %3467 = vmatprep.subr.bf16.mxu0 0
        %3468 = vmatpush1.bf16.xpose.msra.mxu0 0
        %3469 = vmatprep.mubr.bf16.mxu0 0
        %3470 = vmatmul.mubr.bf16.gmra.mrb[0].mxu0 %v3432
        %v3471 = vpop.f32.mrb[0].mxu0
        %v3472 = vadd.f32 0.0, %v3471
        %v3473 = vpop.f32.mrb[0].mxu0
        %v3474 = vpop.f32.mrb[0].mxu0
        %v3475 = vadd.f32 0.0, %v3474
        %v3476 = vpop.f32.mrb[0].mxu0
        %3477 = vdwg.mxu0
        %v3478 = vsel %vm1098, %v3472, -inf
        %3479 = vmax.xlane.f32.xlu0 %v3478
        %v3480 = vpop.xlane.xlu0 %3479
        %v3481 = vsel %vm1102, %v3475, -inf
        %3482 = vmax.xlane.f32.xlu0 %v3481
        %v3483 = vpop.xlane.xlu0 %3482
        %v3484 = vsub.f32 %v3472, %v3480
        %v3485 = vsub.f32 %v3475, %v3483
        %v3486 = vmul.f32 %v3484, 1.442695
        %v3487 = vpow.pop %v3486
        %v3488 = vmul.f32 %v3485, 1.442695
        %v3489 = vpow.pop %v3488
        %v3490 = vsel %vm1098, %v3487, 0.0
        %3491 = vadd.xlane.f32.xlu0 %v3490
        %v3492 = vpop.xlane.xlu0 %3491
        %v3493 = vsel %vm1102, %v3489, 0.0
        %3494 = vadd.xlane.f32.xlu0 %v3493
        %v3495 = vpop.xlane.xlu0 %3494
        %v3496 = vrcp.pop %v3492
        %v3497 = vrcp.pop %v3495
        %v3498 = vmul.f32 %v3487, %v3496
        %v3499 = vmul.f32 %v3489, %v3497
        %v3500 = vpack.c.bf16 %v3499, %v3498
        %3501 = vrot.lane.b32.xlu0 %v3038, 80
        %v3502 = vpop.permute.xlu0 %3501
        %v3504 = vsel %vm1098, %v3500, 0
        %v3507 = vand.u32 %v3502, %v1130
        %3509 = vmatprep.subr.bf16.mxu0 0
        %3510 = vmatpush1.bf16.msra.mxu0 %v3507
        %3511 = vmatprep.subr.bf16.mxu0 0
        %3512 = vmatpush1.bf16.msra.mxu0 0
        %3513 = vmatprep.subr.bf16.mxu0 0
        %3514 = vmatpush1.bf16.msra.mxu0 0
        %3515 = vmatprep.subr.bf16.mxu0 0
        %3516 = vmatpush1.bf16.msra.mxu0 0
        %3517 = vmatprep.subr.bf16.mxu0 0
        %3518 = vmatpush1.bf16.msra.mxu0 0
        %3519 = vmatprep.subr.bf16.mxu0 0
        %3520 = vmatpush1.bf16.msra.mxu0 0
        %3521 = vmatprep.subr.bf16.mxu0 0
        %3522 = vmatpush1.bf16.msra.mxu0 0
        %3523 = vmatprep.subr.bf16.mxu0 0
        %3524 = vmatpush1.bf16.msra.mxu0 0
        %3525 = vmatprep.subr.bf16.mxu0 0
        %3526 = vmatpush1.bf16.msra.mxu0 0
        %3527 = vmatprep.subr.bf16.mxu0 0
        %3528 = vmatpush1.bf16.msra.mxu0 0
        %3529 = vmatprep.subr.bf16.mxu0 0
        %3530 = vmatpush1.bf16.msra.mxu0 0
        %3531 = vmatprep.subr.bf16.mxu0 0
        %3532 = vmatpush1.bf16.msra.mxu0 0
        %3533 = vmatprep.subr.bf16.mxu0 0
        %3534 = vmatpush1.bf16.msra.mxu0 0
        %3535 = vmatprep.subr.bf16.mxu0 0
        %3536 = vmatpush1.bf16.msra.mxu0 0
        %3537 = vmatprep.subr.bf16.mxu0 0
        %3538 = vmatpush1.bf16.msra.mxu0 0
        %3539 = vmatprep.subr.bf16.mxu0 0
        %3540 = vmatpush1.bf16.msra.mxu0 0
        %3541 = vmatprep.mubr.bf16.mxu0 0
        %3542 = vmatmul.mubr.bf16.gmra.mrb[0].mxu0 %v3504
        %v3543 = vpop.f32.mrb[0].mxu0
        %v3544 = vadd.f32 0.0, %v3543
        %v3545 = vpop.f32.mrb[0].mxu0
        %v3546 = vpop.f32.mrb[0].mxu0
        %v3547 = vadd.f32 0.0, %v3546
        %v3548 = vpop.f32.mrb[0].mxu0
        %3549 = vdwg.mxu0
        %v3550 = vpack.c.bf16 %v809, %v808
        %v3551 = vpack.c.bf16 %v3547, %v3544
        %v3553 = vsel %vm1050, %v3551, 0
        %3555 = vmatprep.subr.bf16.mxu0 0
        %3556 = vmatpush1.bf16.msra.mxu0 %v3550
        %3557 = vmatprep.subr.bf16.mxu0 0
        %3558 = vmatpush1.bf16.msra.mxu0 0
        %3559 = vmatprep.subr.bf16.mxu0 0
        %3560 = vmatpush1.bf16.msra.mxu0 0
        %3561 = vmatprep.subr.bf16.mxu0 0
        %3562 = vmatpush1.bf16.msra.mxu0 0
        %3563 = vmatprep.subr.bf16.mxu0 0
        %3564 = vmatpush1.bf16.msra.mxu0 0
        %3565 = vmatprep.subr.bf16.mxu0 0
        %3566 = vmatpush1.bf16.msra.mxu0 0
        %3567 = vmatprep.subr.bf16.mxu0 0
        %3568 = vmatpush1.bf16.msra.mxu0 0
        %3569 = vmatprep.subr.bf16.mxu0 0
        %3570 = vmatpush1.bf16.msra.mxu0 0
        %3571 = vmatprep.subr.bf16.mxu0 0
        %3572 = vmatpush1.bf16.msra.mxu0 0
        %3573 = vmatprep.subr.bf16.mxu0 0
        %3574 = vmatpush1.bf16.msra.mxu0 0
        %3575 = vmatprep.subr.bf16.mxu0 0
        %3576 = vmatpush1.bf16.msra.mxu0 0
        %3577 = vmatprep.subr.bf16.mxu0 0
        %3578 = vmatpush1.bf16.msra.mxu0 0
        %3579 = vmatprep.subr.bf16.mxu0 0
        %3580 = vmatpush1.bf16.msra.mxu0 0
        %3581 = vmatprep.subr.bf16.mxu0 0
        %3582 = vmatpush1.bf16.msra.mxu0 0
        %3583 = vmatprep.subr.bf16.mxu0 0
        %3584 = vmatpush1.bf16.msra.mxu0 0
        %3585 = vmatprep.subr.bf16.mxu0 0
        %3586 = vmatpush1.bf16.msra.mxu0 0
        %3587 = vmatprep.mubr.bf16.mxu0 0
        %3588 = vmatmul.mubr.bf16.gmra.mrb[0].mxu0 %v3553
        %v3589 = vpop.f32.mrb[0].mxu0
        %v3590 = vadd.f32 0.0, %v3589
        %v3591 = vpop.f32.mrb[0].mxu0
        %v3592 = vpop.f32.mrb[0].mxu0
        %v3593 = vadd.f32 0.0, %v3592
        %v3594 = vpop.f32.mrb[0].mxu0
        %3595 = vdwg.mxu0
        %v3597 = vsel %vm1050, %v3087, 0
        %3599 = vmatprep.subr.bf16.mxu0 0
        %3600 = vmatpush1.bf16.msra.mxu0 %v3086
        %3601 = vmatprep.subr.bf16.mxu0 0
        %3602 = vmatpush1.bf16.msra.mxu0 0
        %3603 = vmatprep.subr.bf16.mxu0 0
        %3604 = vmatpush1.bf16.msra.mxu0 0
        %3605 = vmatprep.subr.bf16.mxu0 0
        %3606 = vmatpush1.bf16.msra.mxu0 0
        %3607 = vmatprep.subr.bf16.mxu0 0
        %3608 = vmatpush1.bf16.msra.mxu0 0
        %3609 = vmatprep.subr.bf16.mxu0 0
        %3610 = vmatpush1.bf16.msra.mxu0 0
        %3611 = vmatprep.subr.bf16.mxu0 0
        %3612 = vmatpush1.bf16.msra.mxu0 0
        %3613 = vmatprep.subr.bf16.mxu0 0
        %3614 = vmatpush1.bf16.msra.mxu0 0
        %3615 = vmatprep.subr.bf16.mxu0 0
        %3616 = vmatpush1.bf16.msra.mxu0 0
        %3617 = vmatprep.subr.bf16.mxu0 0
        %3618 = vmatpush1.bf16.msra.mxu0 0
        %3619 = vmatprep.subr.bf16.mxu0 0
        %3620 = vmatpush1.bf16.msra.mxu0 0
        %3621 = vmatprep.subr.bf16.mxu0 0
        %3622 = vmatpush1.bf16.msra.mxu0 0
        %3623 = vmatprep.subr.bf16.mxu0 0
        %3624 = vmatpush1.bf16.msra.mxu0 0
        %3625 = vmatprep.subr.bf16.mxu0 0
        %3626 = vmatpush1.bf16.msra.mxu0 0
        %3627 = vmatprep.subr.bf16.mxu0 0
        %3628 = vmatpush1.bf16.msra.mxu0 0
        %3629 = vmatprep.subr.bf16.mxu0 0
        %3630 = vmatpush1.bf16.msra.mxu0 0
        %3631 = vmatprep.mubr.bf16.mxu0 0
        %3632 = vmatmul.mubr.bf16.gmra.mrb[0].mxu0 %v3597
        %v3633 = vpop.f32.mrb[0].mxu0
        %v3634 = vadd.f32 %v3252, %v3633
        %v3635 = vpop.f32.mrb[0].mxu0
        %v3636 = vpop.f32.mrb[0].mxu0
        %v3637 = vadd.f32 %v3255, %v3636
        %v3638 = vpop.f32.mrb[0].mxu0
        %3639 = vdwg.mxu0
        %v3640 = vadd.f32 %v3634, %v3421
        %v3641 = vadd.f32 %v3637, %v3424
        %v3642 = vadd.f32 %v3640, %v3590
        %v3643 = vadd.f32 %v3641, %v3593
        %v3645 = vlaneseq
        %v3646 = vshrl.u32 %v3645, 7
        %v3647 = vsub.s32 0, %v3646
        %v3648 = vrot.slane %v812, %v3647
        %v3650 = vadd.f32 %v3642, %v3648
        %v3651 = vadd.f32 %v3643, %v3648
        %v3652 = vadd.f32 %v2896, %v3650
        %v3653 = vadd.f32 %v2897, %v3651
        %v3654 = vsel %vm999, %v3652, 0.0
        %3655 = vadd.xlane.f32.xlu0 %v3654
        %v3656 = vpop.xlane.xlu0 %3655
        %v3657 = vsel %vm1746, %v3653, 0.0
        %3658 = vadd.xlane.f32.xlu0 %v3657
        %v3659 = vpop.xlane.xlu0 %3658
        %v3660 = vmul.f32 %v3656, 0.015625
        %v3661 = vmul.f32 %v3659, 0.015625
        %v3662 = vsub.f32 %v3652, %v3660
        %v3663 = vsub.f32 %v3653, %v3661
        %v3664 = vmul.f32 %v3662, %v3662
        %v3665 = vmul.f32 %v3663, %v3663
        %v3666 = vsel %vm999, %v3664, 0.0
        %3667 = vadd.xlane.f32.xlu0 %v3666
        %v3668 = vpop.xlane.xlu0 %3667
        %v3669 = vsel %vm1746, %v3665, 0.0
        %3670 = vadd.xlane.f32.xlu0 %v3669
        %v3671 = vpop.xlane.xlu0 %3670
        %v3672 = vmul.f32 %v3668, 0.015625
        %v3673 = vmul.f32 %v3671, 0.015625
        %v3674 = vadd.f32 %v3672, 1e-05
        %v3675 = vadd.f32 %v3673, 1e-05
        %v3676 = vrsqrt.pop %v3674
        %v3677 = vrsqrt.pop %v3675
        %v3678 = vmul.f32 %v3662, %v3676
        %v3679 = vmul.f32 %v3663, %v3677
        %v3681 = vlaneseq
        %v3682 = vshrl.u32 %v3681, 7
        %v3683 = vsub.s32 0, %v3682
        %v3684 = vrot.slane %v815, %v3683
        %v3686 = vmul.f32 %v3678, %v3684
        %v3687 = vmul.f32 %v3679, %v3684
        %v3689 = vlaneseq
        %v3690 = vshrl.u32 %v3689, 7
        %v3691 = vsub.s32 0, %v3690
        %v3692 = vrot.slane %v818, %v3691
        %v3694 = vadd.f32 %v3686, %v3692
        %v3695 = vadd.f32 %v3687, %v3692
        %v3696 = vpack.c.bf16 %v842, %v841
        %v3697 = vpack.c.bf16 %v844, %v843
        %v3698 = vpack.c.bf16 %v846, %v845
        %v3699 = vpack.c.bf16 %v848, %v847
        %v3700 = vpack.c.bf16 %v3695, %v3694
        %v3702 = vlaneseq
        %v3703 = vshrl.u32 %v3702, 7
        %v3704 = vsub.s32 0, %v3703
        %v3705 = vrot.slane %v851, %v3704
        %v3708 = vsel %vm999, %v3700, 0
        %3710 = vmatprep.subr.bf16.mxu0 0
        %3711 = vmatpush1.bf16.msra.mxu0 %v3696
        %3712 = vmatprep.subr.bf16.mxu0 0
        %3713 = vmatpush1.bf16.msra.mxu0 %v3697
        %3714 = vmatprep.subr.bf16.mxu0 0
        %3715 = vmatpush1.bf16.msra.mxu0 %v3698
        %3716 = vmatprep.subr.bf16.mxu0 0
        %3717 = vmatpush1.bf16.msra.mxu0 %v3699
        %3718 = vmatprep.subr.bf16.mxu0 0
        %3719 = vmatpush1.bf16.msra.mxu0 0
        %3720 = vmatprep.subr.bf16.mxu0 0
        %3721 = vmatpush1.bf16.msra.mxu0 0
        %3722 = vmatprep.subr.bf16.mxu0 0
        %3723 = vmatpush1.bf16.msra.mxu0 0
        %3724 = vmatprep.subr.bf16.mxu0 0
        %3725 = vmatpush1.bf16.msra.mxu0 0
        %3726 = vmatprep.subr.bf16.mxu0 0
        %3727 = vmatpush1.bf16.msra.mxu0 0
        %3728 = vmatprep.subr.bf16.mxu0 0
        %3729 = vmatpush1.bf16.msra.mxu0 0
        %3730 = vmatprep.subr.bf16.mxu0 0
        %3731 = vmatpush1.bf16.msra.mxu0 0
        %3732 = vmatprep.subr.bf16.mxu0 0
        %3733 = vmatpush1.bf16.msra.mxu0 0
        %3734 = vmatprep.subr.bf16.mxu0 0
        %3735 = vmatpush1.bf16.msra.mxu0 0
        %3736 = vmatprep.subr.bf16.mxu0 0
        %3737 = vmatpush1.bf16.msra.mxu0 0
        %3738 = vmatprep.subr.bf16.mxu0 0
        %3739 = vmatpush1.bf16.msra.mxu0 0
        %3740 = vmatprep.subr.bf16.mxu0 0
        %3741 = vmatpush1.bf16.msra.mxu0 0
        %3742 = vmatprep.mubr.bf16.mxu0 0
        %3743 = vmatmul.mubr.bf16.gmra.mrb[0].mxu0 %v3708
        %v3744 = vpop.f32.mrb[0].mxu0
        %v3745 = vadd.f32 %v3705, %v3744
        %v3746 = vpop.f32.mrb[0].mxu0
        %v3747 = vpop.f32.mrb[0].mxu0
        %v3748 = vadd.f32 %v3705, %v3747
        %v3749 = vpop.f32.mrb[0].mxu0
        %3750 = vdwg.mxu0
        %v3751 = vmax.f32 %v3745, 0.0
        %v3752 = vmax.f32 %v3748, 0.0
        %v3753 = vpack.c.bf16 %v885, %v884
        %v3754 = vpack.c.bf16 %v887, %v886
        %v3755 = vpack.c.bf16 %v889, %v888
        %v3756 = vpack.c.bf16 %v891, %v890
        %v3757 = vpack.c.bf16 %v893, %v892
        %v3758 = vpack.c.bf16 %v895, %v894
        %v3759 = vpack.c.bf16 %v897, %v896
        %v3760 = vpack.c.bf16 %v899, %v898
        %v3761 = vpack.c.bf16 %v3752, %v3751
        %v3763 = vlaneseq
        %v3764 = vshrl.u32 %v3763, 7
        %v3765 = vsub.s32 0, %v3764
        %v3766 = vrot.slane %v902, %v3765
        %3768 = vmatprep.subr.bf16.mxu0 0
        %3769 = vmatpush1.bf16.msra.mxu0 %v3753
        %3770 = vmatprep.subr.bf16.mxu0 0
        %3771 = vmatpush1.bf16.msra.mxu0 %v3754
        %3772 = vmatprep.subr.bf16.mxu0 0
        %3773 = vmatpush1.bf16.msra.mxu0 %v3755
        %3774 = vmatprep.subr.bf16.mxu0 0
        %3775 = vmatpush1.bf16.msra.mxu0 %v3756
        %3776 = vmatprep.subr.bf16.mxu0 0
        %3777 = vmatpush1.bf16.msra.mxu0 %v3757
        %3778 = vmatprep.subr.bf16.mxu0 0
        %3779 = vmatpush1.bf16.msra.mxu0 %v3758
        %3780 = vmatprep.subr.bf16.mxu0 0
        %3781 = vmatpush1.bf16.msra.mxu0 %v3759
        %3782 = vmatprep.subr.bf16.mxu0 0
        %3783 = vmatpush1.bf16.msra.mxu0 %v3760
        %3784 = vmatprep.subr.bf16.mxu0 0
        %3785 = vmatpush1.bf16.msra.mxu0 0
        %3786 = vmatprep.subr.bf16.mxu0 0
        %3787 = vmatpush1.bf16.msra.mxu0 0
        %3788 = vmatprep.subr.bf16.mxu0 0
        %3789 = vmatpush1.bf16.msra.mxu0 0
        %3790 = vmatprep.subr.bf16.mxu0 0
        %3791 = vmatpush1.bf16.msra.mxu0 0
        %3792 = vmatprep.subr.bf16.mxu0 0
        %3793 = vmatpush1.bf16.msra.mxu0 0
        %3794 = vmatprep.subr.bf16.mxu0 0
        %3795 = vmatpush1.bf16.msra.mxu0 0
        %3796 = vmatprep.subr.bf16.mxu0 0
        %3797 = vmatpush1.bf16.msra.mxu0 0
        %3798 = vmatprep.subr.bf16.mxu0 0
        %3799 = vmatpush1.bf16.msra.mxu0 0
        %3800 = vmatprep.mubr.bf16.mxu0 0
        %3801 = vmatmul.mubr.bf16.gmra.mrb[0].mxu0 %v3761
        %v3802 = vpop.f32.mrb[0].mxu0
        %v3803 = vadd.f32 %v3766, %v3802
        %v3804 = vpop.f32.mrb[0].mxu0
        %v3805 = vpop.f32.mrb[0].mxu0
        %v3806 = vpop.f32.mrb[0].mxu0
        %3807 = vdwg.mxu0
        %v3808 = vadd.f32 %v3694, %v3803
        %v3809 = vsel %vm999, %v3808, 0.0
        %3810 = vadd.xlane.f32.xlu0 %v3809
        %v3811 = vpop.xlane.xlu0 %3810
        %v3812 = vmul.f32 %v3811, 0.015625
        %v3813 = vsub.f32 %v3808, %v3812
        %v3814 = vmul.f32 %v3813, %v3813
        %v3815 = vsel %vm999, %v3814, 0.0
        %3816 = vadd.xlane.f32.xlu0 %v3815
        %v3817 = vpop.xlane.xlu0 %3816
        %v3818 = vmul.f32 %v3817, 0.015625
        %v3819 = vadd.f32 %v3818, 1e-05
        %v3820 = vrsqrt.pop %v3819
        %v3821 = vmul.f32 %v3813, %v3820
        %v3823 = vlaneseq
        %v3824 = vshrl.u32 %v3823, 7
        %v3825 = vsub.s32 0, %v3824
        %v3826 = vrot.slane %v821, %v3825
        %v3828 = vmul.f32 %v3821, %v3826
        %v3830 = vlaneseq
        %v3831 = vshrl.u32 %v3830, 7
        %v3832 = vsub.s32 0, %v3831
        %v3833 = vrot.slane %v824, %v3832
        %v3835 = vadd.f32 %v3828, %v3833
        %v3836 = vpack.c.bf16 %v904, %v903
        %v3837 = vpack.c.bf16 %v906, %v905
        %v3838 = vpack.c.bf16 %v908, %v907
        %v3839 = vpack.c.bf16 %v910, %v909
        %v3840 = vpack.c.bf16 %v3835, %v3835
        %v3842 = vsel %vm999, %v3840, 0
        %3844 = vmatprep.subr.bf16.mxu0 0
        %3845 = vmatpush1.bf16.msra.mxu0 %v3836
        %3846 = vmatprep.subr.bf16.mxu0 0
        %3847 = vmatpush1.bf16.msra.mxu0 %v3837
        %3848 = vmatprep.subr.bf16.mxu0 0
        %3849 = vmatpush1.bf16.msra.mxu0 %v3838
        %3850 = vmatprep.subr.bf16.mxu0 0
        %3851 = vmatpush1.bf16.msra.mxu0 %v3839
        %3852 = vmatprep.subr.bf16.mxu0 0
        %3853 = vmatpush1.bf16.msra.mxu0 0
        %3854 = vmatprep.subr.bf16.mxu0 0
        %3855 = vmatpush1.bf16.msra.mxu0 0
        %3856 = vmatprep.subr.bf16.mxu0 0
        %3857 = vmatpush1.bf16.msra.mxu0 0
        %3858 = vmatprep.subr.bf16.mxu0 0
        %3859 = vmatpush1.bf16.msra.mxu0 0
        %3860 = vmatprep.subr.bf16.mxu0 0
        %3861 = vmatpush1.bf16.msra.mxu0 0
        %3862 = vmatprep.subr.bf16.mxu0 0
        %3863 = vmatpush1.bf16.msra.mxu0 0
        %3864 = vmatprep.subr.bf16.mxu0 0
        %3865 = vmatpush1.bf16.msra.mxu0 0
        %3866 = vmatprep.subr.bf16.mxu0 0
        %3867 = vmatpush1.bf16.msra.mxu0 0
        %3868 = vmatprep.subr.bf16.mxu0 0
        %3869 = vmatpush1.bf16.msra.mxu0 0
        %3870 = vmatprep.subr.bf16.mxu0 0
        %3871 = vmatpush1.bf16.msra.mxu0 0
        %3872 = vmatprep.subr.bf16.mxu0 0
        %3873 = vmatpush1.bf16.msra.mxu0 0
        %3874 = vmatprep.subr.bf16.mxu0 0
        %3875 = vmatpush1.bf16.msra.mxu0 0
        %3876 = vmatprep.mubr.bf16.mxu0 0
        %3877 = vmatmul.mubr.bf16.gmra.mrb[0].mxu0 %v3842
        %v3878 = vpop.f32.mrb[0].mxu0
        %v3879 = vadd.f32 0.0, %v3878
        %v3880 = vpop.f32.mrb[0].mxu0
        %v3881 = vpop.f32.mrb[0].mxu0
        %v3882 = vpop.f32.mrb[0].mxu0
        %3883 = vdwg.mxu0
        %v3884 = vpack.c.bf16 %v912, %v911
        %v3885 = vpack.c.bf16 %v914, %v913
        %v3886 = vpack.c.bf16 %v916, %v915
        %v3887 = vpack.c.bf16 %v918, %v917
        %v3888 = vpack.c.bf16 %v3879, %v3879
        %v3890 = vsel %vm999, %v3888, 0
        %3892 = vmatprep.subr.bf16.mxu0 0
        %3893 = vmatpush1.bf16.msra.mxu0 %v3884
        %3894 = vmatprep.subr.bf16.mxu0 0
        %3895 = vmatpush1.bf16.msra.mxu0 %v3885
        %3896 = vmatprep.subr.bf16.mxu0 0
        %3897 = vmatpush1.bf16.msra.mxu0 %v3886
        %3898 = vmatprep.subr.bf16.mxu0 0
        %3899 = vmatpush1.bf16.msra.mxu0 %v3887
        %3900 = vmatprep.subr.bf16.mxu0 0
        %3901 = vmatpush1.bf16.msra.mxu0 0
        %3902 = vmatprep.subr.bf16.mxu0 0
        %3903 = vmatpush1.bf16.msra.mxu0 0
        %3904 = vmatprep.subr.bf16.mxu0 0
        %3905 = vmatpush1.bf16.msra.mxu0 0
        %3906 = vmatprep.subr.bf16.mxu0 0
        %3907 = vmatpush1.bf16.msra.mxu0 0
        %3908 = vmatprep.subr.bf16.mxu0 0
        %3909 = vmatpush1.bf16.msra.mxu0 0
        %3910 = vmatprep.subr.bf16.mxu0 0
        %3911 = vmatpush1.bf16.msra.mxu0 0
        %3912 = vmatprep.subr.bf16.mxu0 0
        %3913 = vmatpush1.bf16.msra.mxu0 0
        %3914 = vmatprep.subr.bf16.mxu0 0
        %3915 = vmatpush1.bf16.msra.mxu0 0
        %3916 = vmatprep.subr.bf16.mxu0 0
        %3917 = vmatpush1.bf16.msra.mxu0 0
        %3918 = vmatprep.subr.bf16.mxu0 0
        %3919 = vmatpush1.bf16.msra.mxu0 0
        %3920 = vmatprep.subr.bf16.mxu0 0
        %3921 = vmatpush1.bf16.msra.mxu0 0
        %3922 = vmatprep.subr.bf16.mxu0 0
        %3923 = vmatpush1.bf16.msra.mxu0 0
        %3924 = vmatprep.mubr.bf16.mxu0 0
        %3925 = vmatmul.mubr.bf16.gmra.mrb[0].mxu0 %v3890
        %v3926 = vpop.f32.mrb[0].mxu0
        %v3927 = vadd.f32 0.0, %v3926
        %v3928 = vpop.f32.mrb[0].mxu0
        %v3929 = vpop.f32.mrb[0].mxu0
        %v3930 = vpop.f32.mrb[0].mxu0
        %3931 = vdwg.mxu0
        %v3932 = vpack.c.bf16 %v920, %v919
        %v3933 = vpack.c.bf16 %v922, %v921
        %v3934 = vpack.c.bf16 %v924, %v923
        %v3935 = vpack.c.bf16 %v926, %v925
        %v3936 = vpack.c.bf16 %v3927, %v3927
        %v3938 = vsel %vm999, %v3936, 0
        %3940 = vmatprep.subr.bf16.mxu0 0
        %3941 = vmatpush1.bf16.msra.mxu0 %v3932
        %3942 = vmatprep.subr.bf16.mxu0 0
        %3943 = vmatpush1.bf16.msra.mxu0 %v3933
        %3944 = vmatprep.subr.bf16.mxu0 0
        %3945 = vmatpush1.bf16.msra.mxu0 %v3934
        %3946 = vmatprep.subr.bf16.mxu0 0
        %3947 = vmatpush1.bf16.msra.mxu0 %v3935
        %3948 = vmatprep.subr.bf16.mxu0 0
        %3949 = vmatpush1.bf16.msra.mxu0 0
        %3950 = vmatprep.subr.bf16.mxu0 0
        %3951 = vmatpush1.bf16.msra.mxu0 0
        %3952 = vmatprep.subr.bf16.mxu0 0
        %3953 = vmatpush1.bf16.msra.mxu0 0
        %3954 = vmatprep.subr.bf16.mxu0 0
        %3955 = vmatpush1.bf16.msra.mxu0 0
        %3956 = vmatprep.subr.bf16.mxu0 0
        %3957 = vmatpush1.bf16.msra.mxu0 0
        %3958 = vmatprep.subr.bf16.mxu0 0
        %3959 = vmatpush1.bf16.msra.mxu0 0
        %3960 = vmatprep.subr.bf16.mxu0 0
        %3961 = vmatpush1.bf16.msra.mxu0 0
        %3962 = vmatprep.subr.bf16.mxu0 0
        %3963 = vmatpush1.bf16.msra.mxu0 0
        %3964 = vmatprep.subr.bf16.mxu0 0
        %3965 = vmatpush1.bf16.msra.mxu0 0
        %3966 = vmatprep.subr.bf16.mxu0 0
        %3967 = vmatpush1.bf16.msra.mxu0 0
        %3968 = vmatprep.subr.bf16.mxu0 0
        %3969 = vmatpush1.bf16.msra.mxu0 0
        %3970 = vmatprep.subr.bf16.mxu0 0
        %3971 = vmatpush1.bf16.msra.mxu0 0
        %3972 = vmatprep.mubr.bf16.mxu0 0
        %3973 = vmatmul.mubr.bf16.gmra.mrb[0].mxu0 %v3938
        %v3974 = vpop.f32.mrb[0].mxu0
        %v3975 = vadd.f32 %v927, %v3974
        %v3976 = vpop.f32.mrb[0].mxu0
        %v3977 = vpop.f32.mrb[0].mxu0
        %v3978 = vpop.f32.mrb[0].mxu0
        %3979 = vdwg.mxu0
        %3980 = vst [vmem:[%s723] sm:$0x1] %v3975
        %s3981 = sand.u32 %s450, 1
        %s3982 = scalar_lea.sflag [#allocation4], %s3981
        %s3983 = sand.u32 %s450, 1
        %s3984 = scalar_lea.vmem [#allocation17], %s3983
        // Predicated region
        $region133: #{tpu_custom_call.1} parent=95 // pred_check
          %p3985 = pneg %p460
        $region134: #{tpu_custom_call.1} parent=95 // pred_check_branch
          %3987 = sbr.rel (%p3985) target = $region136
        $region135: #{tpu_custom_call.1} parent=95 // pred_region
          %s3989 = ssub.s32 16, 16
          %3990 = vsyncadd %s3982, %s3989
          %s3991 = smul.addr %s38, 16
          %s3992 = scalar_lea.hbm %s19, %s3991
          %s3994 = sshll.u32 %s3984, 4
          %s3995 = int_to_ptr.vmem [resolvable:$true] %s3994
          %3997 = dma.vmem_to_hbm [thread:$0]  %s3995, 16, %s3992, %s3982
        $region136: #{tpu_custom_call.1} parent=95 // pred_fallthru
          _
      $region96: #{tpu_custom_call.1} parent=5 // pred_fallthru
        _
      %p3998 = scmp.le.s32.totalorder 2, %s33
      // Predicated region
      $region137: #{tpu_custom_call.1} parent=5 // pred_check
        %p3999 = pneg %p3998
      $region138: #{tpu_custom_call.1} parent=5 // pred_check_branch
        %4001 = sbr.rel (%p3999) target = $region140
      $region139: #{tpu_custom_call.1} parent=5 // pred_region
        %s4002 = ssub.s32 %s33, 2
        // Predicated region
        $region141: #{tpu_custom_call.1} parent=139 // pred_check
          %p4003 = pneg %p466
        $region142: #{tpu_custom_call.1} parent=139 // pred_check_branch
          %4005 = sbr.rel (%p4003) target = $region144
        $region143: #{tpu_custom_call.1} parent=139 // pred_region
          %s4006 = sand.u32 %s451, 1
          %s4007 = scalar_lea.sflag [#allocation4], %s4006
          %s4008 = sand.u32 %s451, 1
          %s4009 = scalar_lea.vmem [#allocation17], %s4008
          %4010 = dma.done %s4007, 16
        $region144: #{tpu_custom_call.1} parent=139 // pred_fallthru
          _
      $region140: #{tpu_custom_call.1} parent=5 // pred_fallthru
        _
    $region6: #{tpu_custom_call.1} parent=1 // loop_footer
      %s37 = sadd.s32 1, %s33
    $region7: #{tpu_custom_call.1} parent=1 // loop_footer_branch
      %32 = sbr.rel target = $region3
    $region8: #{tpu_custom_call.1} parent=1 // loop_exit
      _
    %4011 = vsyncpa [#allocation3], 1
    %s4012 = scalar_lea.sflag [#allocation3], 1
    %4013 = vsyncpa %s4012, 1
    %4014 = vsyncpa [#allocation6], 1
    %4015 = vsyncpa [#allocation9], 1
    %4016 = vsyncpa [#allocation12], 1
    %4017 = vsyncpa [#allocation15], 1
    %4018 = vsyncpa [#allocation4], 1
    %s4019 = scalar_lea.sflag [#allocation4], 1
    %4020 = vsyncpa %s4019, 1

</llo_original>
